<compile_context>
chip_gen: v7x
topology: tpu7x:2x2x1
jax: 0.10.0
libtpu: 0.0.40
codegen_flags: <defaults>
</compile_context>

<pallas_src>
import math

import jax
import jax.numpy as jnp
from jax.experimental import pallas as pl
from jax.experimental.pallas import tpu as pltpu

F32 = jnp.float32
_INV_SQRT2 = 0.7071067811865476
_LN_EPS = 1e-6  # Pyraformer SubLayers use nn.LayerNorm(d_model, eps=1e-6)


# ----------------------------- in-kernel helpers -----------------------------
def _layernorm(x, gamma, beta, eps=_LN_EPS):
    mu = jnp.mean(x, axis=-1, keepdims=True)
    var = jnp.mean((x - mu) ** 2, axis=-1, keepdims=True)
    return (x - mu) * jax.lax.rsqrt(var + eps) * gamma + beta


def _gelu_exact(x):
    # matches torch.nn.functional.gelu (erf form)
    return 0.5 * x * (1.0 + jax.lax.erf(x * _INV_SQRT2))


# ------------------------------ fused kernel ---------------------------------
def _make_decoder_kernel(n_head, d_k, d_v):
    H = n_head
    inv_temp = 1.0 / math.sqrt(float(d_k))

    def attn_ffn(q, kv, mask_bool, w):
        (wq3, wk3, wv3, wo3, bo, g1, b1, w1, bb1, w2, bb2, g2, b2) = w
        Lq, D = q.shape
        Lk = kv.shape[0]
        residual = q

        # all heads batched on the leading axis (no per-head Python loop)
        qb = jnp.broadcast_to(q[None], (H, Lq, D))
        kvb = jnp.broadcast_to(kv[None], (H, Lk, D))
        qh = jnp.einsum("hqd,hde->hqe", qb, wq3, preferred_element_type=F32)    # (H, Lq, dk)
        kh = jnp.einsum("hkd,hde->hke", kvb, wk3, preferred_element_type=F32)   # (H, Lk, dk)
        vh = jnp.einsum("hkd,hde->hke", kvb, wv3, preferred_element_type=F32)   # (H, Lk, dv)

        sc = jnp.einsum("hqe,hke->hqk", qh, kh, preferred_element_type=F32) * inv_temp
        if mask_bool is not None:
            sc = jnp.where(mask_bool[None], -1e9, sc)          # masked_fill(mask == 0, -1e9)

        # softmax over keys, batched over all heads; divide via approx reciprocal (EUP)
        sc = sc - jnp.max(sc, axis=-1, keepdims=True)
        p = jnp.exp(sc)
        p = p * pl.reciprocal(jnp.sum(p, axis=-1, keepdims=True), approx=True)

        ctx = jnp.einsum("hqk,hke->hqe", p, vh, preferred_element_type=F32)     # (H, Lq, dv)
        projh = jnp.einsum("hqe,hed->hqd", ctx, wo3, preferred_element_type=F32)  # (H, Lq, D)
        x = jnp.sum(projh, axis=0) + bo + residual
        x = _layernorm(x, g1, b1)                               # normalize_before=False -> post-LN

        # position-wise feed forward
        res2 = x
        hidden = _gelu_exact(jnp.dot(x, w1, preferred_element_type=F32) + bb1)
        y = jnp.dot(hidden, w2, preferred_element_type=F32) + bb2 + res2
        return _layernorm(y, g2, b2)

    def kernel(xemb_ref, refer_ref, mask_ref, w_emb_ref, b_emb_ref, pos_ref, *rest):
        out_ref = rest[-1]
        wrefs = rest[:-1]
        l0 = [r[...] for r in wrefs[:13]]
        l1 = [r[...] for r in wrefs[13:]]

        x = xemb_ref[0]          # (Lq, 3*Cin + Cm)
        refer = refer_ref[0]     # (Lr, D)

        # DataEmbedding: conv-as-im2col + temporal linear folded into ONE matmul, + pos enc.
        dec = jnp.dot(x, w_emb_ref[...], preferred_element_type=F32) + b_emb_ref[...] + pos_ref[...]

        # layer 0: Q = dec, K = V = refer, no mask
        dec = attn_ffn(dec, refer, None, l0)

        # refer_enc = cat([refer, dec]); layer 1 with mask (compare hoisted, done once)
        kv = jnp.concatenate([refer, dec], axis=0)              # (Lr + Lq, D)
        mask_bool = mask_ref[...] == 0.0
        dec = attn_ffn(dec, kv, mask_bool, l1)

        out_ref[0] = dec

    return kernel


# ------------------------------ wrapper --------------------------------------
def _split_heads(w, n_head, d_head):
    # (D, H*dh) -> (H, D, dh) so heads sit on a leading batch axis (no in-kernel transpose)
    dm = w.shape[0]
    return jnp.transpose(w.reshape(dm, n_head, d_head), (1, 0, 2))


def decoder_forward(x_dec, x_mark_dec, refer, params, mask):
    B, Lq, Cin = x_dec.shape
    Cm = x_mark_dec.shape[-1]
    Lr = refer.shape[1]
    pe = params["embed"]
    D = pe["w_conv"].shape[1]
    H = params["layer0"]["n_head"]
    dk = params["layer0"]["d_k"]
    dv = params["layer0"]["d_v"]

    # circular im2col for Conv1d(kernel=3, padding=1, padding_mode='circular'), concatenated
    # with the time-mark features so the whole embedding is a single matmul inside the kernel.
    x_prev = jnp.roll(x_dec, 1, axis=1)
    x_next = jnp.roll(x_dec, -1, axis=1)
    x_emb = jnp.concatenate([x_prev, x_dec, x_next, x_mark_dec], axis=-1)   # (B, Lq, 3*Cin+Cm)
    w_emb = jnp.concatenate([pe["w_conv"], pe["w_time"]], axis=0)           # (3*Cin+Cm, D)

    def layer_w(p):
        return [
            _split_heads(p["wq"], H, dk),
            _split_heads(p["wk"], H, dk),
            _split_heads(p["wv"], H, dv),
            p["wo"].reshape(H, dv, D),
            p["bo"], p["ln1_g"], p["ln1_b"],
            p["w1"], p["b1"], p["w2"], p["b2"],
            p["ln2_g"], p["ln2_b"],
        ]

    weights = [w_emb, pe["b_time"], pe["pos"]] + layer_w(params["layer0"]) + layer_w(params["layer1"])

    in_specs = [
        pl.BlockSpec((1, Lq, 3 * Cin + Cm), lambda b: (b, 0, 0)),
        pl.BlockSpec((1, Lr, D), lambda b: (b, 0, 0)),
        pl.BlockSpec(mask.shape, lambda b: (0, 0)),   # 2-D mask, shared across batch
    ]
    for w in weights:
        in_specs.append(pl.BlockSpec(w.shape, lambda b, n=w.ndim: (0,) * n))

    kernel = _make_decoder_kernel(H, dk, dv)
    return pl.pallas_call(
        kernel,
        out_shape=jax.ShapeDtypeStruct((B, Lq, D), F32),
        grid=(B,),
        in_specs=in_specs,
        out_specs=pl.BlockSpec((1, Lq, D), lambda b: (b, 0, 0)),
        compiler_params=pltpu.CompilerParams(dimension_semantics=("parallel",)),
    )(x_emb, refer, mask, *weights)


# ------------------------------ pure-JAX reference ---------------------------
def _ref_ln(x, g, b, eps=_LN_EPS):
    mu = jnp.mean(x, axis=-1, keepdims=True)
    var = jnp.mean((x - mu) ** 2, axis=-1, keepdims=True)
    return (x - mu) / jnp.sqrt(var + eps) * g + b


def _ref_layer(q, kv, p, mask=None):
    H, dk, dv = p["n_head"], p["d_k"], p["d_v"]
    B, Lq, D = q.shape
    Lk = kv.shape[1]
    residual = q
    qh = (q @ p["wq"]).reshape(B, Lq, H, dk).transpose(0, 2, 1, 3)
    kh = (kv @ p["wk"]).reshape(B, Lk, H, dk).transpose(0, 2, 1, 3)
    vh = (kv @ p["wv"]).reshape(B, Lk, H, dv).transpose(0, 2, 1, 3)
    sc = jnp.einsum("bhqd,bhkd->bhqk", qh / (dk ** 0.5), kh)
    if mask is not None:
        sc = jnp.where(mask[:, None] == 0, -1e9, sc)
    attn = jax.nn.softmax(sc, axis=-1)
    out = jnp.einsum("bhqk,bhkd->bhqd", attn, vh)
    out = out.transpose(0, 2, 1, 3).reshape(B, Lq, H * dv)
    x = out @ p["wo"] + p["bo"] + residual
    x = _ref_ln(x, p["ln1_g"], p["ln1_b"])
    res2 = x
    h1 = jax.nn.gelu(x @ p["w1"] + p["b1"], approximate=False)
    y = h1 @ p["w2"] + p["b2"] + res2
    return _ref_ln(y, p["ln2_g"], p["ln2_b"])


def _ref_decoder(x_dec, x_mark, refer, params, mask):
    pe = params["embed"]
    x_prev = jnp.roll(x_dec, 1, axis=1)
    x_next = jnp.roll(x_dec, -1, axis=1)
    x_cat = jnp.concatenate([x_prev, x_dec, x_next], axis=-1)
    dec = x_cat @ pe["w_conv"] + x_mark @ pe["w_time"] + pe["b_time"] + pe["pos"][None]
    dec = _ref_layer(dec, refer, params["layer0"], None)
    refer_enc = jnp.concatenate([refer, dec], axis=1)
    mask_b = jnp.broadcast_to(mask[None], (dec.shape[0],) + mask.shape)
    return _ref_layer(dec, refer_enc, params["layer1"], mask_b)


# ------------------------------ params / main --------------------------------
def _positional_embedding(L, D):
    pos = jnp.arange(L, dtype=F32)[:, None]
    idx = jnp.arange(0, D, 2, dtype=F32)
    div = jnp.exp(-idx * (math.log(10000.0) / D))
    pe = jnp.zeros((L, D), F32)
    pe = pe.at[:, 0::2].set(jnp.sin(pos * div))
    pe = pe.at[:, 1::2].set(jnp.cos(pos * div))
    return pe


def _init_layer_params(key, d_model, d_inner, n_head, d_k, d_v):
    ks = jax.random.split(key, 8)
    s = 0.1
    return {
        "n_head": n_head, "d_k": d_k, "d_v": d_v,
        "wq": s * jax.random.normal(ks[0], (d_model, n_head * d_k), F32),
        "wk": s * jax.random.normal(ks[1], (d_model, n_head * d_k), F32),
        "wv": s * jax.random.normal(ks[2], (d_model, n_head * d_v), F32),
        "wo": s * jax.random.normal(ks[3], (n_head * d_v, d_model), F32),
        "bo": s * jax.random.normal(ks[4], (1, d_model), F32),
        "ln1_g": jnp.ones((1, d_model), F32), "ln1_b": jnp.zeros((1, d_model), F32),
        "w1": s * jax.random.normal(ks[5], (d_model, d_inner), F32),
        "b1": s * jax.random.normal(ks[6], (1, d_inner), F32),
        "w2": s * jax.random.normal(ks[7], (d_inner, d_model), F32),
        "b2": jnp.zeros((1, d_model), F32),
        "ln2_g": jnp.ones((1, d_model), F32), "ln2_b": jnp.zeros((1, d_model), F32),
    }


if __name__ == "__main__":
    # config (opt): d_model=32, d_inner_hid=64, n_head=4, d_k=d_v=8, enc_in=4, embed_type=1
    B, Lq, Lr = 2, 8, 16
    enc_in, mark_dim = 4, 4
    d_model, d_inner, n_head, d_k, d_v = 32, 64, 4, 8, 8

    key = jax.random.PRNGKey(0)
    k_in, k_mark, k_ref, k_e1, k_e2, k_e3, k_l0, k_l1 = jax.random.split(key, 8)

    x_dec = jax.random.normal(k_in, (B, Lq, enc_in), F32)
    x_mark_dec = jax.random.normal(k_mark, (B, Lq, mark_dim), F32)
    refer = jax.random.normal(k_ref, (B, Lr, d_model), F32)

    params = {
        "embed": {
            "w_conv": 0.1 * jax.random.normal(k_e1, (3 * enc_in, d_model), F32),
            "w_time": 0.1 * jax.random.normal(k_e2, (mark_dim, d_model), F32),
            "b_time": 0.1 * jax.random.normal(k_e3, (1, d_model), F32),
            "pos": _positional_embedding(Lq, d_model),
        },
        "layer0": _init_layer_params(k_l0, d_model, d_inner, n_head, d_k, d_v),
        "layer1": _init_layer_params(k_l1, d_model, d_inner, n_head, d_k, d_v),
    }

    # decoder mask: dec step i attends to all refer positions + dec positions <= i (1=keep, 0=mask)
    mask = jnp.concatenate(
        [jnp.ones((Lq, Lr), F32), jnp.tril(jnp.ones((Lq, Lq), F32))], axis=1)  # (Lq, Lr+Lq)

    out = decoder_forward(x_dec, x_mark_dec, refer, params, mask)
    out = jax.block_until_ready(out)

    ref = jax.block_until_ready(_ref_decoder(x_dec, x_mark_dec, refer, params, mask))

    assert out.shape == (B, Lq, d_model)
    assert bool(jnp.all(jnp.isfinite(out)))
    max_diff = float(jnp.max(jnp.abs(out - ref)))
    # default (non-HIGHEST) MXU precision + approx reciprocal -> slightly looser tolerance
    assert bool(jnp.allclose(out, ref, rtol=5e-3, atol=5e-3)), f"max abs diff {max_diff}"
    print("KERNEL_OK")
</pallas_src>

<mosaic_0001>
module attributes {stable_mosaic.version = 11 : i64} {
  func.func @kernel(%arg0: i32, %arg1: memref<1x8x16xf32, #tpu.memory_space<vmem>>, %arg2: memref<1x16x32xf32, #tpu.memory_space<vmem>>, %arg3: memref<8x24xf32, #tpu.memory_space<vmem>>, %arg4: memref<16x32xf32, #tpu.memory_space<vmem>>, %arg5: memref<1x32xf32, #tpu.memory_space<vmem>>, %arg6: memref<8x32xf32, #tpu.memory_space<vmem>>, %arg7: memref<4x32x8xf32, #tpu.memory_space<vmem>>, %arg8: memref<4x32x8xf32, #tpu.memory_space<vmem>>, %arg9: memref<4x32x8xf32, #tpu.memory_space<vmem>>, %arg10: memref<4x8x32xf32, #tpu.memory_space<vmem>>, %arg11: memref<1x32xf32, #tpu.memory_space<vmem>>, %arg12: memref<1x32xf32, #tpu.memory_space<vmem>>, %arg13: memref<1x32xf32, #tpu.memory_space<vmem>>, %arg14: memref<32x64xf32, #tpu.memory_space<vmem>>, %arg15: memref<1x64xf32, #tpu.memory_space<vmem>>, %arg16: memref<64x32xf32, #tpu.memory_space<vmem>>, %arg17: memref<1x32xf32, #tpu.memory_space<vmem>>, %arg18: memref<1x32xf32, #tpu.memory_space<vmem>>, %arg19: memref<1x32xf32, #tpu.memory_space<vmem>>, %arg20: memref<4x32x8xf32, #tpu.memory_space<vmem>>, %arg21: memref<4x32x8xf32, #tpu.memory_space<vmem>>, %arg22: memref<4x32x8xf32, #tpu.memory_space<vmem>>, %arg23: memref<4x8x32xf32, #tpu.memory_space<vmem>>, %arg24: memref<1x32xf32, #tpu.memory_space<vmem>>, %arg25: memref<1x32xf32, #tpu.memory_space<vmem>>, %arg26: memref<1x32xf32, #tpu.memory_space<vmem>>, %arg27: memref<32x64xf32, #tpu.memory_space<vmem>>, %arg28: memref<1x64xf32, #tpu.memory_space<vmem>>, %arg29: memref<64x32xf32, #tpu.memory_space<vmem>>, %arg30: memref<1x32xf32, #tpu.memory_space<vmem>>, %arg31: memref<1x32xf32, #tpu.memory_space<vmem>>, %arg32: memref<1x32xf32, #tpu.memory_space<vmem>>, %arg33: memref<1x8x32xf32, #tpu.memory_space<vmem>>) attributes {dimension_semantics = [#tpu.dimension_semantics<parallel>], iteration_bounds = array<i64: 2>, scalar_prefetch = 0 : i64, scratch_operands = 0 : i64, tpu.core_type = #tpu.core_type<tc>, window_params = [{transform_indices = @transform_0, window_bounds = array<i64: 1, 8, 16>}, {transform_indices = @transform_1, window_bounds = array<i64: 1, 16, 32>}, {pipeline_mode = #tpu.pipeline_mode<synchronous>, transform_indices = @transform_2, window_bounds = array<i64: 8, 24>}, {pipeline_mode = #tpu.pipeline_mode<synchronous>, transform_indices = @transform_3, window_bounds = array<i64: 16, 32>}, {pipeline_mode = #tpu.pipeline_mode<synchronous>, transform_indices = @transform_4, window_bounds = array<i64: 1, 32>}, {pipeline_mode = #tpu.pipeline_mode<synchronous>, transform_indices = @transform_5, window_bounds = array<i64: 8, 32>}, {pipeline_mode = #tpu.pipeline_mode<synchronous>, transform_indices = @transform_6, window_bounds = array<i64: 4, 32, 8>}, {pipeline_mode = #tpu.pipeline_mode<synchronous>, transform_indices = @transform_7, window_bounds = array<i64: 4, 32, 8>}, {pipeline_mode = #tpu.pipeline_mode<synchronous>, transform_indices = @transform_8, window_bounds = array<i64: 4, 32, 8>}, {pipeline_mode = #tpu.pipeline_mode<synchronous>, transform_indices = @transform_9, window_bounds = array<i64: 4, 8, 32>}, {pipeline_mode = #tpu.pipeline_mode<synchronous>, transform_indices = @transform_10, window_bounds = array<i64: 1, 32>}, {pipeline_mode = #tpu.pipeline_mode<synchronous>, transform_indices = @transform_11, window_bounds = array<i64: 1, 32>}, {pipeline_mode = #tpu.pipeline_mode<synchronous>, transform_indices = @transform_12, window_bounds = array<i64: 1, 32>}, {pipeline_mode = #tpu.pipeline_mode<synchronous>, transform_indices = @transform_13, window_bounds = array<i64: 32, 64>}, {pipeline_mode = #tpu.pipeline_mode<synchronous>, transform_indices = @transform_14, window_bounds = array<i64: 1, 64>}, {pipeline_mode = #tpu.pipeline_mode<synchronous>, transform_indices = @transform_15, window_bounds = array<i64: 64, 32>}, {pipeline_mode = #tpu.pipeline_mode<synchronous>, transform_indices = @transform_16, window_bounds = array<i64: 1, 32>}, {pipeline_mode = #tpu.pipeline_mode<synchronous>, transform_indices = @transform_17, window_bounds = array<i64: 1, 32>}, {pipeline_mode = #tpu.pipeline_mode<synchronous>, transform_indices = @transform_18, window_bounds = array<i64: 1, 32>}, {pipeline_mode = #tpu.pipeline_mode<synchronous>, transform_indices = @transform_19, window_bounds = array<i64: 4, 32, 8>}, {pipeline_mode = #tpu.pipeline_mode<synchronous>, transform_indices = @transform_20, window_bounds = array<i64: 4, 32, 8>}, {pipeline_mode = #tpu.pipeline_mode<synchronous>, transform_indices = @transform_21, window_bounds = array<i64: 4, 32, 8>}, {pipeline_mode = #tpu.pipeline_mode<synchronous>, transform_indices = @transform_22, window_bounds = array<i64: 4, 8, 32>}, {pipeline_mode = #tpu.pipeline_mode<synchronous>, transform_indices = @transform_23, window_bounds = array<i64: 1, 32>}, {pipeline_mode = #tpu.pipeline_mode<synchronous>, transform_indices = @transform_24, window_bounds = array<i64: 1, 32>}, {pipeline_mode = #tpu.pipeline_mode<synchronous>, transform_indices = @transform_25, window_bounds = array<i64: 1, 32>}, {pipeline_mode = #tpu.pipeline_mode<synchronous>, transform_indices = @transform_26, window_bounds = array<i64: 32, 64>}, {pipeline_mode = #tpu.pipeline_mode<synchronous>, transform_indices = @transform_27, window_bounds = array<i64: 1, 64>}, {pipeline_mode = #tpu.pipeline_mode<synchronous>, transform_indices = @transform_28, window_bounds = array<i64: 64, 32>}, {pipeline_mode = #tpu.pipeline_mode<synchronous>, transform_indices = @transform_29, window_bounds = array<i64: 1, 32>}, {pipeline_mode = #tpu.pipeline_mode<synchronous>, transform_indices = @transform_30, window_bounds = array<i64: 1, 32>}, {pipeline_mode = #tpu.pipeline_mode<synchronous>, transform_indices = @transform_31, window_bounds = array<i64: 1, 32>}, {transform_indices = @transform_32, window_bounds = array<i64: 1, 8, 32>}]} {
    %c0 = arith.constant 0 : index
    %c0_0 = arith.constant 0 : index
    %c0_1 = arith.constant 0 : index
    %0 = vector.load %arg7[%c0, %c0_0, %c0_1] : memref<4x32x8xf32, #tpu.memory_space<vmem>>, vector<4x32x8xf32>
    %c0_2 = arith.constant 0 : index
    %c0_3 = arith.constant 0 : index
    %c0_4 = arith.constant 0 : index
    %1 = vector.load %arg8[%c0_2, %c0_3, %c0_4] : memref<4x32x8xf32, #tpu.memory_space<vmem>>, vector<4x32x8xf32>
    %c0_5 = arith.constant 0 : index
    %c0_6 = arith.constant 0 : index
    %c0_7 = arith.constant 0 : index
    %2 = vector.load %arg9[%c0_5, %c0_6, %c0_7] : memref<4x32x8xf32, #tpu.memory_space<vmem>>, vector<4x32x8xf32>
    %c0_8 = arith.constant 0 : index
    %c0_9 = arith.constant 0 : index
    %c0_10 = arith.constant 0 : index
    %3 = vector.load %arg10[%c0_8, %c0_9, %c0_10] : memref<4x8x32xf32, #tpu.memory_space<vmem>>, vector<4x8x32xf32>
    %c0_11 = arith.constant 0 : index
    %c0_12 = arith.constant 0 : index
    %4 = vector.load %arg11[%c0_11, %c0_12] : memref<1x32xf32, #tpu.memory_space<vmem>>, vector<1x32xf32>
    %c0_13 = arith.constant 0 : index
    %c0_14 = arith.constant 0 : index
    %5 = vector.load %arg12[%c0_13, %c0_14] : memref<1x32xf32, #tpu.memory_space<vmem>>, vector<1x32xf32>
    %c0_15 = arith.constant 0 : index
    %c0_16 = arith.constant 0 : index
    %6 = vector.load %arg13[%c0_15, %c0_16] : memref<1x32xf32, #tpu.memory_space<vmem>>, vector<1x32xf32>
    %c0_17 = arith.constant 0 : index
    %c0_18 = arith.constant 0 : index
    %7 = vector.load %arg14[%c0_17, %c0_18] : memref<32x64xf32, #tpu.memory_space<vmem>>, vector<32x64xf32>
    %c0_19 = arith.constant 0 : index
    %c0_20 = arith.constant 0 : index
    %8 = vector.load %arg15[%c0_19, %c0_20] : memref<1x64xf32, #tpu.memory_space<vmem>>, vector<1x64xf32>
    %c0_21 = arith.constant 0 : index
    %c0_22 = arith.constant 0 : index
    %9 = vector.load %arg16[%c0_21, %c0_22] : memref<64x32xf32, #tpu.memory_space<vmem>>, vector<64x32xf32>
    %c0_23 = arith.constant 0 : index
    %c0_24 = arith.constant 0 : index
    %10 = vector.load %arg17[%c0_23, %c0_24] : memref<1x32xf32, #tpu.memory_space<vmem>>, vector<1x32xf32>
    %c0_25 = arith.constant 0 : index
    %c0_26 = arith.constant 0 : index
    %11 = vector.load %arg18[%c0_25, %c0_26] : memref<1x32xf32, #tpu.memory_space<vmem>>, vector<1x32xf32>
    %c0_27 = arith.constant 0 : index
    %c0_28 = arith.constant 0 : index
    %12 = vector.load %arg19[%c0_27, %c0_28] : memref<1x32xf32, #tpu.memory_space<vmem>>, vector<1x32xf32>
    %c0_29 = arith.constant 0 : index
    %c0_30 = arith.constant 0 : index
    %c0_31 = arith.constant 0 : index
    %13 = vector.load %arg20[%c0_29, %c0_30, %c0_31] : memref<4x32x8xf32, #tpu.memory_space<vmem>>, vector<4x32x8xf32>
    %c0_32 = arith.constant 0 : index
    %c0_33 = arith.constant 0 : index
    %c0_34 = arith.constant 0 : index
    %14 = vector.load %arg21[%c0_32, %c0_33, %c0_34] : memref<4x32x8xf32, #tpu.memory_space<vmem>>, vector<4x32x8xf32>
    %c0_35 = arith.constant 0 : index
    %c0_36 = arith.constant 0 : index
    %c0_37 = arith.constant 0 : index
    %15 = vector.load %arg22[%c0_35, %c0_36, %c0_37] : memref<4x32x8xf32, #tpu.memory_space<vmem>>, vector<4x32x8xf32>
    %c0_38 = arith.constant 0 : index
    %c0_39 = arith.constant 0 : index
    %c0_40 = arith.constant 0 : index
    %16 = vector.load %arg23[%c0_38, %c0_39, %c0_40] : memref<4x8x32xf32, #tpu.memory_space<vmem>>, vector<4x8x32xf32>
    %c0_41 = arith.constant 0 : index
    %c0_42 = arith.constant 0 : index
    %17 = vector.load %arg24[%c0_41, %c0_42] : memref<1x32xf32, #tpu.memory_space<vmem>>, vector<1x32xf32>
    %c0_43 = arith.constant 0 : index
    %c0_44 = arith.constant 0 : index
    %18 = vector.load %arg25[%c0_43, %c0_44] : memref<1x32xf32, #tpu.memory_space<vmem>>, vector<1x32xf32>
    %c0_45 = arith.constant 0 : index
    %c0_46 = arith.constant 0 : index
    %19 = vector.load %arg26[%c0_45, %c0_46] : memref<1x32xf32, #tpu.memory_space<vmem>>, vector<1x32xf32>
    %c0_47 = arith.constant 0 : index
    %c0_48 = arith.constant 0 : index
    %20 = vector.load %arg27[%c0_47, %c0_48] : memref<32x64xf32, #tpu.memory_space<vmem>>, vector<32x64xf32>
    %c0_49 = arith.constant 0 : index
    %c0_50 = arith.constant 0 : index
    %21 = vector.load %arg28[%c0_49, %c0_50] : memref<1x64xf32, #tpu.memory_space<vmem>>, vector<1x64xf32>
    %c0_51 = arith.constant 0 : index
    %c0_52 = arith.constant 0 : index
    %22 = vector.load %arg29[%c0_51, %c0_52] : memref<64x32xf32, #tpu.memory_space<vmem>>, vector<64x32xf32>
    %c0_53 = arith.constant 0 : index
    %c0_54 = arith.constant 0 : index
    %23 = vector.load %arg30[%c0_53, %c0_54] : memref<1x32xf32, #tpu.memory_space<vmem>>, vector<1x32xf32>
    %c0_55 = arith.constant 0 : index
    %c0_56 = arith.constant 0 : index
    %24 = vector.load %arg31[%c0_55, %c0_56] : memref<1x32xf32, #tpu.memory_space<vmem>>, vector<1x32xf32>
    %c0_57 = arith.constant 0 : index
    %c0_58 = arith.constant 0 : index
    %25 = vector.load %arg32[%c0_57, %c0_58] : memref<1x32xf32, #tpu.memory_space<vmem>>, vector<1x32xf32>
    %c0_59 = arith.constant 0 : index
    %c0_60 = arith.constant 0 : index
    %c0_61 = arith.constant 0 : index
    %26 = vector.load %arg1[%c0_59, %c0_60, %c0_61] : memref<1x8x16xf32, #tpu.memory_space<vmem>>, vector<1x8x16xf32>
    %27 = vector.shape_cast %26 : vector<1x8x16xf32> to vector<8x16xf32>
    %c0_62 = arith.constant 0 : index
    %c0_63 = arith.constant 0 : index
    %c0_64 = arith.constant 0 : index
    %28 = vector.load %arg2[%c0_62, %c0_63, %c0_64] : memref<1x16x32xf32, #tpu.memory_space<vmem>>, vector<1x16x32xf32>
    %29 = vector.shape_cast %28 : vector<1x16x32xf32> to vector<16x32xf32>
    %c0_65 = arith.constant 0 : index
    %c0_66 = arith.constant 0 : index
    %30 = vector.load %arg4[%c0_65, %c0_66] : memref<16x32xf32, #tpu.memory_space<vmem>>, vector<16x32xf32>
    %cst = arith.constant dense<0.000000e+00> : vector<8x32xf32>
    %31 = tpu.matmul %27, %30, %cst {dimension_numbers = #tpu.dot_dimension_numbers<[1], [0], [0], [1], [0, 0, 1, 1], [], []>} : vector<8x16xf32>, vector<16x32xf32>, vector<8x32xf32> -> vector<8x32xf32>
    %c0_67 = arith.constant 0 : index
    %c0_68 = arith.constant 0 : index
    %32 = vector.load %arg5[%c0_67, %c0_68] : memref<1x32xf32, #tpu.memory_space<vmem>>, vector<1x32xf32>
    %33 = vector.broadcast %32 : vector<1x32xf32> to vector<8x32xf32>
    %34 = arith.addf %31, %33 : vector<8x32xf32>
    %c0_69 = arith.constant 0 : index
    %c0_70 = arith.constant 0 : index
    %35 = vector.load %arg6[%c0_69, %c0_70] : memref<8x32xf32, #tpu.memory_space<vmem>>, vector<8x32xf32>
    %36 = arith.addf %34, %35 : vector<8x32xf32>
    %37 = vector.shape_cast %36 : vector<8x32xf32> to vector<1x8x32xf32>
    %38 = vector.shape_cast %37 : vector<1x8x32xf32> to vector<1x8x32xf32>
    %39 = vector.broadcast %38 : vector<1x8x32xf32> to vector<4x8x32xf32>
    %40 = vector.shape_cast %29 : vector<16x32xf32> to vector<1x16x32xf32>
    %41 = vector.shape_cast %40 : vector<1x16x32xf32> to vector<1x16x32xf32>
    %42 = vector.broadcast %41 : vector<1x16x32xf32> to vector<4x16x32xf32>
    "tpu.trace_start"() <{level = 10 : i32, message = "hqd,hde->hqe"}> : () -> ()
    %cst_71 = arith.constant dense<0.000000e+00> : vector<4x8x8xf32>
    %43 = tpu.matmul %39, %0, %cst_71 {dimension_numbers = #tpu.dot_dimension_numbers<[2], [1], [1], [2], [0, 0, 0, 1, 1, 2], [0], [0]>} : vector<4x8x32xf32>, vector<4x32x8xf32>, vector<4x8x8xf32> -> vector<4x8x8xf32>
    "tpu.trace_stop"() : () -> ()
    "tpu.trace_start"() <{level = 10 : i32, message = "hkd,hde->hke"}> : () -> ()
    %cst_72 = arith.constant dense<0.000000e+00> : vector<4x16x8xf32>
    %44 = tpu.matmul %42, %1, %cst_72 {dimension_numbers = #tpu.dot_dimension_numbers<[2], [1], [1], [2], [0, 0, 0, 1, 1, 2], [0], [0]>} : vector<4x16x32xf32>, vector<4x32x8xf32>, vector<4x16x8xf32> -> vector<4x16x8xf32>
    %cst_73 = arith.constant dense<0.000000e+00> : vector<4x16x8xf32>
    %45 = tpu.matmul %42, %2, %cst_73 {dimension_numbers = #tpu.dot_dimension_numbers<[2], [1], [1], [2], [0, 0, 0, 1, 1, 2], [0], [0]>} : vector<4x16x32xf32>, vector<4x32x8xf32>, vector<4x16x8xf32> -> vector<4x16x8xf32>
    "tpu.trace_stop"() : () -> ()
    "tpu.trace_start"() <{level = 10 : i32, message = "hqe,hke->hqk"}> : () -> ()
    %cst_74 = arith.constant dense<0.000000e+00> : vector<4x8x16xf32>
    %46 = tpu.matmul %43, %44, %cst_74 {dimension_numbers = #tpu.dot_dimension_numbers<[2], [2], [1], [1], [0, 0, 0, 1, 1, 1], [0], [0]>} : vector<4x8x8xf32>, vector<4x16x8xf32>, vector<4x8x16xf32> -> vector<4x8x16xf32>
    "tpu.trace_stop"() : () -> ()
    %cst_75 = arith.constant 0.353553385 : f32
    %47 = vector.broadcast %cst_75 : f32 to vector<4x8x16xf32>
    %48 = arith.mulf %46, %47 : vector<4x8x16xf32>
    %cst_76 = arith.constant dense<0xFF800000> : vector<4x8xf32>
    %49 = vector.multi_reduction <maximumf>, %48, %cst_76 [2] : vector<4x8x16xf32> to vector<4x8xf32>
    %50 = vector.shape_cast %49 : vector<4x8xf32> to vector<4x8x1xf32>
    %51 = vector.broadcast %50 : vector<4x8x1xf32> to vector<4x8x16xf32>
    %52 = arith.subf %48, %51 : vector<4x8x16xf32>
    %53 = math.exp %52 : vector<4x8x16xf32>
    %cst_77 = arith.constant dense<0.000000e+00> : vector<4x8xf32>
    %54 = vector.multi_reduction <add>, %53, %cst_77 [2] : vector<4x8x16xf32> to vector<4x8xf32>
    %55 = vector.shape_cast %54 : vector<4x8xf32> to vector<4x8x1xf32>
    %56 = tpu.reciprocal %55 {approx = true} : vector<4x8x1xf32> -> vector<4x8x1xf32>
    %57 = vector.broadcast %56 : vector<4x8x1xf32> to vector<4x8x16xf32>
    %58 = arith.mulf %53, %57 : vector<4x8x16xf32>
    "tpu.trace_start"() <{level = 10 : i32, message = "hqk,hke->hqe"}> : () -> ()
    %cst_78 = arith.constant dense<0.000000e+00> : vector<4x8x8xf32>
    %59 = tpu.matmul %58, %45, %cst_78 {dimension_numbers = #tpu.dot_dimension_numbers<[2], [1], [1], [2], [0, 0, 0, 1, 1, 2], [0], [0]>} : vector<4x8x16xf32>, vector<4x16x8xf32>, vector<4x8x8xf32> -> vector<4x8x8xf32>
    "tpu.trace_stop"() : () -> ()
    "tpu.trace_start"() <{level = 10 : i32, message = "hqe,hed->hqd"}> : () -> ()
    %cst_79 = arith.constant dense<0.000000e+00> : vector<4x8x32xf32>
    %60 = tpu.matmul %59, %3, %cst_79 {dimension_numbers = #tpu.dot_dimension_numbers<[2], [1], [1], [2], [0, 0, 0, 1, 1, 2], [0], [0]>} : vector<4x8x8xf32>, vector<4x8x32xf32>, vector<4x8x32xf32> -> vector<4x8x32xf32>
    "tpu.trace_stop"() : () -> ()
    %cst_80 = arith.constant dense<0.000000e+00> : vector<8x32xf32>
    %61 = vector.multi_reduction <add>, %60, %cst_80 [0] : vector<4x8x32xf32> to vector<8x32xf32>
    %62 = vector.broadcast %4 : vector<1x32xf32> to vector<8x32xf32>
    %63 = arith.addf %61, %62 : vector<8x32xf32>
    %64 = arith.addf %63, %36 : vector<8x32xf32>
    %cst_81 = arith.constant dense<0.000000e+00> : vector<8xf32>
    %65 = vector.multi_reduction <add>, %64, %cst_81 [1] : vector<8x32xf32> to vector<8xf32>
    %66 = vector.shape_cast %65 : vector<8xf32> to vector<8x1xf32>
    %cst_82 = arith.constant 3.200000e+01 : f32
    %67 = vector.broadcast %cst_82 : f32 to vector<8x1xf32>
    %68 = arith.divf %66, %67 : vector<8x1xf32>
    %69 = vector.broadcast %68 : vector<8x1xf32> to vector<8x32xf32>
    %70 = arith.subf %64, %69 : vector<8x32xf32>
    %71 = arith.mulf %70, %70 : vector<8x32xf32>
    %cst_83 = arith.constant dense<0.000000e+00> : vector<8xf32>
    %72 = vector.multi_reduction <add>, %71, %cst_83 [1] : vector<8x32xf32> to vector<8xf32>
    %73 = vector.shape_cast %72 : vector<8xf32> to vector<8x1xf32>
    %cst_84 = arith.constant 3.200000e+01 : f32
    %74 = vector.broadcast %cst_84 : f32 to vector<8x1xf32>
    %75 = arith.divf %73, %74 : vector<8x1xf32>
    %76 = vector.broadcast %68 : vector<8x1xf32> to vector<8x32xf32>
    %77 = arith.subf %64, %76 : vector<8x32xf32>
    %cst_85 = arith.constant 9.99999997E-7 : f32
    %78 = vector.broadcast %cst_85 : f32 to vector<8x1xf32>
    %79 = arith.addf %75, %78 : vector<8x1xf32>
    %80 = math.rsqrt %79 : vector<8x1xf32>
    %81 = vector.broadcast %80 : vector<8x1xf32> to vector<8x32xf32>
    %82 = arith.mulf %77, %81 : vector<8x32xf32>
    %83 = vector.broadcast %5 : vector<1x32xf32> to vector<8x32xf32>
    %84 = arith.mulf %82, %83 : vector<8x32xf32>
    %85 = vector.broadcast %6 : vector<1x32xf32> to vector<8x32xf32>
    %86 = arith.addf %84, %85 : vector<8x32xf32>
    %cst_86 = arith.constant dense<0.000000e+00> : vector<8x64xf32>
    %87 = tpu.matmul %86, %7, %cst_86 {dimension_numbers = #tpu.dot_dimension_numbers<[1], [0], [0], [1], [0, 0, 1, 1], [], []>} : vector<8x32xf32>, vector<32x64xf32>, vector<8x64xf32> -> vector<8x64xf32>
    %88 = vector.broadcast %8 : vector<1x64xf32> to vector<8x64xf32>
    %89 = arith.addf %87, %88 : vector<8x64xf32>
    %cst_87 = arith.constant 5.000000e-01 : f32
    %90 = vector.broadcast %cst_87 : f32 to vector<8x64xf32>
    %91 = arith.mulf %90, %89 : vector<8x64xf32>
    %cst_88 = arith.constant 0.707106769 : f32
    %92 = vector.broadcast %cst_88 : f32 to vector<8x64xf32>
    %93 = arith.mulf %89, %92 : vector<8x64xf32>
    %94 = math.erf %93 : vector<8x64xf32>
    %cst_89 = arith.constant 1.000000e+00 : f32
    %95 = vector.broadcast %cst_89 : f32 to vector<8x64xf32>
    %96 = arith.addf %95, %94 : vector<8x64xf32>
    %97 = arith.mulf %91, %96 : vector<8x64xf32>
    %cst_90 = arith.constant dense<0.000000e+00> : vector<8x32xf32>
    %98 = tpu.matmul %97, %9, %cst_90 {dimension_numbers = #tpu.dot_dimension_numbers<[1], [0], [0], [1], [0, 0, 1, 1], [], []>} : vector<8x64xf32>, vector<64x32xf32>, vector<8x32xf32> -> vector<8x32xf32>
    %99 = vector.broadcast %10 : vector<1x32xf32> to vector<8x32xf32>
    %100 = arith.addf %98, %99 : vector<8x32xf32>
    %101 = arith.addf %100, %86 : vector<8x32xf32>
    %cst_91 = arith.constant dense<0.000000e+00> : vector<8xf32>
    %102 = vector.multi_reduction <add>, %101, %cst_91 [1] : vector<8x32xf32> to vector<8xf32>
    %103 = vector.shape_cast %102 : vector<8xf32> to vector<8x1xf32>
    %cst_92 = arith.constant 3.200000e+01 : f32
    %104 = vector.broadcast %cst_92 : f32 to vector<8x1xf32>
    %105 = arith.divf %103, %104 : vector<8x1xf32>
    %106 = vector.broadcast %105 : vector<8x1xf32> to vector<8x32xf32>
    %107 = arith.subf %101, %106 : vector<8x32xf32>
    %108 = arith.mulf %107, %107 : vector<8x32xf32>
    %cst_93 = arith.constant dense<0.000000e+00> : vector<8xf32>
    %109 = vector.multi_reduction <add>, %108, %cst_93 [1] : vector<8x32xf32> to vector<8xf32>
    %110 = vector.shape_cast %109 : vector<8xf32> to vector<8x1xf32>
    %cst_94 = arith.constant 3.200000e+01 : f32
    %111 = vector.broadcast %cst_94 : f32 to vector<8x1xf32>
    %112 = arith.divf %110, %111 : vector<8x1xf32>
    %113 = vector.broadcast %105 : vector<8x1xf32> to vector<8x32xf32>
    %114 = arith.subf %101, %113 : vector<8x32xf32>
    %cst_95 = arith.constant 9.99999997E-7 : f32
    %115 = vector.broadcast %cst_95 : f32 to vector<8x1xf32>
    %116 = arith.addf %112, %115 : vector<8x1xf32>
    %117 = math.rsqrt %116 : vector<8x1xf32>
    %118 = vector.broadcast %117 : vector<8x1xf32> to vector<8x32xf32>
    %119 = arith.mulf %114, %118 : vector<8x32xf32>
    %120 = vector.broadcast %11 : vector<1x32xf32> to vector<8x32xf32>
    %121 = arith.mulf %119, %120 : vector<8x32xf32>
    %122 = vector.broadcast %12 : vector<1x32xf32> to vector<8x32xf32>
    %123 = arith.addf %121, %122 : vector<8x32xf32>
    %124 = tpu.concatenate %29, %123 in 0 : vector<16x32xf32>, vector<8x32xf32> -> vector<24x32xf32>
    %c0_96 = arith.constant 0 : index
    %c0_97 = arith.constant 0 : index
    %125 = vector.load %arg3[%c0_96, %c0_97] : memref<8x24xf32, #tpu.memory_space<vmem>>, vector<8x24xf32>
    %cst_98 = arith.constant 0.000000e+00 : f32
    %126 = vector.broadcast %cst_98 : f32 to vector<8x24xf32>
    %127 = arith.cmpf oeq, %125, %126 : vector<8x24xf32>
    %128 = vector.shape_cast %123 : vector<8x32xf32> to vector<1x8x32xf32>
    %129 = vector.shape_cast %128 : vector<1x8x32xf32> to vector<1x8x32xf32>
    %130 = vector.broadcast %129 : vector<1x8x32xf32> to vector<4x8x32xf32>
    %131 = vector.shape_cast %124 : vector<24x32xf32> to vector<1x24x32xf32>
    %132 = vector.shape_cast %131 : vector<1x24x32xf32> to vector<1x24x32xf32>
    %133 = vector.broadcast %132 : vector<1x24x32xf32> to vector<4x24x32xf32>
    "tpu.trace_start"() <{level = 10 : i32, message = "hqd,hde->hqe"}> : () -> ()
    %cst_99 = arith.constant dense<0.000000e+00> : vector<4x8x8xf32>
    %134 = tpu.matmul %130, %13, %cst_99 {dimension_numbers = #tpu.dot_dimension_numbers<[2], [1], [1], [2], [0, 0, 0, 1, 1, 2], [0], [0]>} : vector<4x8x32xf32>, vector<4x32x8xf32>, vector<4x8x8xf32> -> vector<4x8x8xf32>
    "tpu.trace_stop"() : () -> ()
    "tpu.trace_start"() <{level = 10 : i32, message = "hkd,hde->hke"}> : () -> ()
    %cst_100 = arith.constant dense<0.000000e+00> : vector<4x24x8xf32>
    %135 = tpu.matmul %133, %14, %cst_100 {dimension_numbers = #tpu.dot_dimension_numbers<[2], [1], [1], [2], [0, 0, 0, 1, 1, 2], [0], [0]>} : vector<4x24x32xf32>, vector<4x32x8xf32>, vector<4x24x8xf32> -> vector<4x24x8xf32>
    %cst_101 = arith.constant dense<0.000000e+00> : vector<4x24x8xf32>
    %136 = tpu.matmul %133, %15, %cst_101 {dimension_numbers = #tpu.dot_dimension_numbers<[2], [1], [1], [2], [0, 0, 0, 1, 1, 2], [0], [0]>} : vector<4x24x32xf32>, vector<4x32x8xf32>, vector<4x24x8xf32> -> vector<4x24x8xf32>
    "tpu.trace_stop"() : () -> ()
    "tpu.trace_start"() <{level = 10 : i32, message = "hqe,hke->hqk"}> : () -> ()
    %cst_102 = arith.constant dense<0.000000e+00> : vector<4x8x24xf32>
    %137 = tpu.matmul %134, %135, %cst_102 {dimension_numbers = #tpu.dot_dimension_numbers<[2], [2], [1], [1], [0, 0, 0, 1, 1, 1], [0], [0]>} : vector<4x8x8xf32>, vector<4x24x8xf32>, vector<4x8x24xf32> -> vector<4x8x24xf32>
    "tpu.trace_stop"() : () -> ()
    %cst_103 = arith.constant 0.353553385 : f32
    %138 = vector.broadcast %cst_103 : f32 to vector<4x8x24xf32>
    %139 = arith.mulf %137, %138 : vector<4x8x24xf32>
    %140 = vector.shape_cast %127 : vector<8x24xi1> to vector<1x8x24xi1>
    %cst_104 = arith.constant -1.000000e+09 : f32
    %141 = vector.shape_cast %140 : vector<1x8x24xi1> to vector<1x8x24xi1>
    %142 = vector.broadcast %141 : vector<1x8x24xi1> to vector<4x8x24xi1>
    %143 = vector.broadcast %cst_104 : f32 to vector<4x8x24xf32>
    %144 = arith.select %142, %143, %139 : vector<4x8x24xi1>, vector<4x8x24xf32>
    %cst_105 = arith.constant dense<0xFF800000> : vector<4x8xf32>
    %145 = vector.multi_reduction <maximumf>, %144, %cst_105 [2] : vector<4x8x24xf32> to vector<4x8xf32>
    %146 = vector.shape_cast %145 : vector<4x8xf32> to vector<4x8x1xf32>
    %147 = vector.broadcast %146 : vector<4x8x1xf32> to vector<4x8x24xf32>
    %148 = arith.subf %144, %147 : vector<4x8x24xf32>
    %149 = math.exp %148 : vector<4x8x24xf32>
    %cst_106 = arith.constant dense<0.000000e+00> : vector<4x8xf32>
    %150 = vector.multi_reduction <add>, %149, %cst_106 [2] : vector<4x8x24xf32> to vector<4x8xf32>
    %151 = vector.shape_cast %150 : vector<4x8xf32> to vector<4x8x1xf32>
    %152 = tpu.reciprocal %151 {approx = true} : vector<4x8x1xf32> -> vector<4x8x1xf32>
    %153 = vector.broadcast %152 : vector<4x8x1xf32> to vector<4x8x24xf32>
    %154 = arith.mulf %149, %153 : vector<4x8x24xf32>
    "tpu.trace_start"() <{level = 10 : i32, message = "hqk,hke->hqe"}> : () -> ()
    %cst_107 = arith.constant dense<0.000000e+00> : vector<4x8x8xf32>
    %155 = tpu.matmul %154, %136, %cst_107 {dimension_numbers = #tpu.dot_dimension_numbers<[2], [1], [1], [2], [0, 0, 0, 1, 1, 2], [0], [0]>} : vector<4x8x24xf32>, vector<4x24x8xf32>, vector<4x8x8xf32> -> vector<4x8x8xf32>
    "tpu.trace_stop"() : () -> ()
    "tpu.trace_start"() <{level = 10 : i32, message = "hqe,hed->hqd"}> : () -> ()
    %cst_108 = arith.constant dense<0.000000e+00> : vector<4x8x32xf32>
    %156 = tpu.matmul %155, %16, %cst_108 {dimension_numbers = #tpu.dot_dimension_numbers<[2], [1], [1], [2], [0, 0, 0, 1, 1, 2], [0], [0]>} : vector<4x8x8xf32>, vector<4x8x32xf32>, vector<4x8x32xf32> -> vector<4x8x32xf32>
    "tpu.trace_stop"() : () -> ()
    %cst_109 = arith.constant dense<0.000000e+00> : vector<8x32xf32>
    %157 = vector.multi_reduction <add>, %156, %cst_109 [0] : vector<4x8x32xf32> to vector<8x32xf32>
    %158 = vector.broadcast %17 : vector<1x32xf32> to vector<8x32xf32>
    %159 = arith.addf %157, %158 : vector<8x32xf32>
    %160 = arith.addf %159, %123 : vector<8x32xf32>
    %cst_110 = arith.constant dense<0.000000e+00> : vector<8xf32>
    %161 = vector.multi_reduction <add>, %160, %cst_110 [1] : vector<8x32xf32> to vector<8xf32>
    %162 = vector.shape_cast %161 : vector<8xf32> to vector<8x1xf32>
    %cst_111 = arith.constant 3.200000e+01 : f32
    %163 = vector.broadcast %cst_111 : f32 to vector<8x1xf32>
    %164 = arith.divf %162, %163 : vector<8x1xf32>
    %165 = vector.broadcast %164 : vector<8x1xf32> to vector<8x32xf32>
    %166 = arith.subf %160, %165 : vector<8x32xf32>
    %167 = arith.mulf %166, %166 : vector<8x32xf32>
    %cst_112 = arith.constant dense<0.000000e+00> : vector<8xf32>
    %168 = vector.multi_reduction <add>, %167, %cst_112 [1] : vector<8x32xf32> to vector<8xf32>
    %169 = vector.shape_cast %168 : vector<8xf32> to vector<8x1xf32>
    %cst_113 = arith.constant 3.200000e+01 : f32
    %170 = vector.broadcast %cst_113 : f32 to vector<8x1xf32>
    %171 = arith.divf %169, %170 : vector<8x1xf32>
    %172 = vector.broadcast %164 : vector<8x1xf32> to vector<8x32xf32>
    %173 = arith.subf %160, %172 : vector<8x32xf32>
    %cst_114 = arith.constant 9.99999997E-7 : f32
    %174 = vector.broadcast %cst_114 : f32 to vector<8x1xf32>
    %175 = arith.addf %171, %174 : vector<8x1xf32>
    %176 = math.rsqrt %175 : vector<8x1xf32>
    %177 = vector.broadcast %176 : vector<8x1xf32> to vector<8x32xf32>
    %178 = arith.mulf %173, %177 : vector<8x32xf32>
    %179 = vector.broadcast %18 : vector<1x32xf32> to vector<8x32xf32>
    %180 = arith.mulf %178, %179 : vector<8x32xf32>
    %181 = vector.broadcast %19 : vector<1x32xf32> to vector<8x32xf32>
    %182 = arith.addf %180, %181 : vector<8x32xf32>
    %cst_115 = arith.constant dense<0.000000e+00> : vector<8x64xf32>
    %183 = tpu.matmul %182, %20, %cst_115 {dimension_numbers = #tpu.dot_dimension_numbers<[1], [0], [0], [1], [0, 0, 1, 1], [], []>} : vector<8x32xf32>, vector<32x64xf32>, vector<8x64xf32> -> vector<8x64xf32>
    %184 = vector.broadcast %21 : vector<1x64xf32> to vector<8x64xf32>
    %185 = arith.addf %183, %184 : vector<8x64xf32>
    %cst_116 = arith.constant 5.000000e-01 : f32
    %186 = vector.broadcast %cst_116 : f32 to vector<8x64xf32>
    %187 = arith.mulf %186, %185 : vector<8x64xf32>
    %cst_117 = arith.constant 0.707106769 : f32
    %188 = vector.broadcast %cst_117 : f32 to vector<8x64xf32>
    %189 = arith.mulf %185, %188 : vector<8x64xf32>
    %190 = math.erf %189 : vector<8x64xf32>
    %cst_118 = arith.constant 1.000000e+00 : f32
    %191 = vector.broadcast %cst_118 : f32 to vector<8x64xf32>
    %192 = arith.addf %191, %190 : vector<8x64xf32>
    %193 = arith.mulf %187, %192 : vector<8x64xf32>
    %cst_119 = arith.constant dense<0.000000e+00> : vector<8x32xf32>
    %194 = tpu.matmul %193, %22, %cst_119 {dimension_numbers = #tpu.dot_dimension_numbers<[1], [0], [0], [1], [0, 0, 1, 1], [], []>} : vector<8x64xf32>, vector<64x32xf32>, vector<8x32xf32> -> vector<8x32xf32>
    %195 = vector.broadcast %23 : vector<1x32xf32> to vector<8x32xf32>
    %196 = arith.addf %194, %195 : vector<8x32xf32>
    %197 = arith.addf %196, %182 : vector<8x32xf32>
    %cst_120 = arith.constant dense<0.000000e+00> : vector<8xf32>
    %198 = vector.multi_reduction <add>, %197, %cst_120 [1] : vector<8x32xf32> to vector<8xf32>
    %199 = vector.shape_cast %198 : vector<8xf32> to vector<8x1xf32>
    %cst_121 = arith.constant 3.200000e+01 : f32
    %200 = vector.broadcast %cst_121 : f32 to vector<8x1xf32>
    %201 = arith.divf %199, %200 : vector<8x1xf32>
    %202 = vector.broadcast %201 : vector<8x1xf32> to vector<8x32xf32>
    %203 = arith.subf %197, %202 : vector<8x32xf32>
    %204 = arith.mulf %203, %203 : vector<8x32xf32>
    %cst_122 = arith.constant dense<0.000000e+00> : vector<8xf32>
    %205 = vector.multi_reduction <add>, %204, %cst_122 [1] : vector<8x32xf32> to vector<8xf32>
    %206 = vector.shape_cast %205 : vector<8xf32> to vector<8x1xf32>
    %cst_123 = arith.constant 3.200000e+01 : f32
    %207 = vector.broadcast %cst_123 : f32 to vector<8x1xf32>
    %208 = arith.divf %206, %207 : vector<8x1xf32>
    %209 = vector.broadcast %201 : vector<8x1xf32> to vector<8x32xf32>
    %210 = arith.subf %197, %209 : vector<8x32xf32>
    %cst_124 = arith.constant 9.99999997E-7 : f32
    %211 = vector.broadcast %cst_124 : f32 to vector<8x1xf32>
    %212 = arith.addf %208, %211 : vector<8x1xf32>
    %213 = math.rsqrt %212 : vector<8x1xf32>
    %214 = vector.broadcast %213 : vector<8x1xf32> to vector<8x32xf32>
    %215 = arith.mulf %210, %214 : vector<8x32xf32>
    %216 = vector.broadcast %24 : vector<1x32xf32> to vector<8x32xf32>
    %217 = arith.mulf %215, %216 : vector<8x32xf32>
    %218 = vector.broadcast %25 : vector<1x32xf32> to vector<8x32xf32>
    %219 = arith.addf %217, %218 : vector<8x32xf32>
    %c0_125 = arith.constant 0 : index
    %c0_126 = arith.constant 0 : index
    %c0_127 = arith.constant 0 : index
    %220 = vector.load %arg33[%c0_125, %c0_126, %c0_127] : memref<1x8x32xf32, #tpu.memory_space<vmem>>, vector<1x8x32xf32>
    %221 = vector.shape_cast %220 : vector<1x8x32xf32> to vector<8x32xf32>
    %222 = vector.shape_cast %219 : vector<8x32xf32> to vector<1x8x32xf32>
    tpu.vector_store %arg33[%c0_125, %c0_126, %c0_127], %222 {strides = array<i32>} : memref<1x8x32xf32, #tpu.memory_space<vmem>>, vector<1x8x32xf32>,
    return
  }
  func.func @transform_0(%arg0: i32) -> (i32, i32, i32) {
    %c0_i32 = arith.constant 0 : i32
    %c0_i32_0 = arith.constant 0 : i32
    %c0_i32_1 = arith.constant 0 : i32
    return %arg0, %c0_i32, %c0_i32_0 : i32, i32, i32
  }
  func.func @transform_1(%arg0: i32) -> (i32, i32, i32) {
    %c0_i32 = arith.constant 0 : i32
    %c0_i32_0 = arith.constant 0 : i32
    %c0_i32_1 = arith.constant 0 : i32
    return %arg0, %c0_i32, %c0_i32_0 : i32, i32, i32
  }
  func.func @transform_2(%arg0: i32) -> (i32, i32) {
    %c0_i32 = arith.constant 0 : i32
    %c0_i32_0 = arith.constant 0 : i32
    %c0_i32_1 = arith.constant 0 : i32
    return %c0_i32, %c0_i32_0 : i32, i32
  }
  func.func @transform_3(%arg0: i32) -> (i32, i32) {
    %c0_i32 = arith.constant 0 : i32
    %c0_i32_0 = arith.constant 0 : i32
    %c0_i32_1 = arith.constant 0 : i32
    return %c0_i32, %c0_i32_0 : i32, i32
  }
  func.func @transform_4(%arg0: i32) -> (i32, i32) {
    %c0_i32 = arith.constant 0 : i32
    %c0_i32_0 = arith.constant 0 : i32
    %c0_i32_1 = arith.constant 0 : i32
    return %c0_i32, %c0_i32_0 : i32, i32
  }
  func.func @transform_5(%arg0: i32) -> (i32, i32) {
    %c0_i32 = arith.constant 0 : i32
    %c0_i32_0 = arith.constant 0 : i32
    %c0_i32_1 = arith.constant 0 : i32
    return %c0_i32, %c0_i32_0 : i32, i32
  }
  func.func @transform_6(%arg0: i32) -> (i32, i32, i32) {
    %c0_i32 = arith.constant 0 : i32
    %c0_i32_0 = arith.constant 0 : i32
    %c0_i32_1 = arith.constant 0 : i32
    %c0_i32_2 = arith.constant 0 : i32
    return %c0_i32, %c0_i32_0, %c0_i32_1 : i32, i32, i32
  }
  func.func @transform_7(%arg0: i32) -> (i32, i32, i32) {
    %c0_i32 = arith.constant 0 : i32
    %c0_i32_0 = arith.constant 0 : i32
    %c0_i32_1 = arith.constant 0 : i32
    %c0_i32_2 = arith.constant 0 : i32
    return %c0_i32, %c0_i32_0, %c0_i32_1 : i32, i32, i32
  }
  func.func @transform_8(%arg0: i32) -> (i32, i32, i32) {
    %c0_i32 = arith.constant 0 : i32
    %c0_i32_0 = arith.constant 0 : i32
    %c0_i32_1 = arith.constant 0 : i32
    %c0_i32_2 = arith.constant 0 : i32
    return %c0_i32, %c0_i32_0, %c0_i32_1 : i32, i32, i32
  }
  func.func @transform_9(%arg0: i32) -> (i32, i32, i32) {
    %c0_i32 = arith.constant 0 : i32
    %c0_i32_0 = arith.constant 0 : i32
    %c0_i32_1 = arith.constant 0 : i32
    %c0_i32_2 = arith.constant 0 : i32
    return %c0_i32, %c0_i32_0, %c0_i32_1 : i32, i32, i32
  }
  func.func @transform_10(%arg0: i32) -> (i32, i32) {
    %c0_i32 = arith.constant 0 : i32
    %c0_i32_0 = arith.constant 0 : i32
    %c0_i32_1 = arith.constant 0 : i32
    return %c0_i32, %c0_i32_0 : i32, i32
  }
  func.func @transform_11(%arg0: i32) -> (i32, i32) {
    %c0_i32 = arith.constant 0 : i32
    %c0_i32_0 = arith.constant 0 : i32
    %c0_i32_1 = arith.constant 0 : i32
    return %c0_i32, %c0_i32_0 : i32, i32
  }
  func.func @transform_12(%arg0: i32) -> (i32, i32) {
    %c0_i32 = arith.constant 0 : i32
    %c0_i32_0 = arith.constant 0 : i32
    %c0_i32_1 = arith.constant 0 : i32
    return %c0_i32, %c0_i32_0 : i32, i32
  }
  func.func @transform_13(%arg0: i32) -> (i32, i32) {
    %c0_i32 = arith.constant 0 : i32
    %c0_i32_0 = arith.constant 0 : i32
    %c0_i32_1 = arith.constant 0 : i32
    return %c0_i32, %c0_i32_0 : i32, i32
  }
  func.func @transform_14(%arg0: i32) -> (i32, i32) {
    %c0_i32 = arith.constant 0 : i32
    %c0_i32_0 = arith.constant 0 : i32
    %c0_i32_1 = arith.constant 0 : i32
    return %c0_i32, %c0_i32_0 : i32, i32
  }
  func.func @transform_15(%arg0: i32) -> (i32, i32) {
    %c0_i32 = arith.constant 0 : i32
    %c0_i32_0 = arith.constant 0 : i32
    %c0_i32_1 = arith.constant 0 : i32
    return %c0_i32, %c0_i32_0 : i32, i32
  }
  func.func @transform_16(%arg0: i32) -> (i32, i32) {
    %c0_i32 = arith.constant 0 : i32
    %c0_i32_0 = arith.constant 0 : i32
    %c0_i32_1 = arith.constant 0 : i32
    return %c0_i32, %c0_i32_0 : i32, i32
  }
  func.func @transform_17(%arg0: i32) -> (i32, i32) {
    %c0_i32 = arith.constant 0 : i32
    %c0_i32_0 = arith.constant 0 : i32
    %c0_i32_1 = arith.constant 0 : i32
    return %c0_i32, %c0_i32_0 : i32, i32
  }
  func.func @transform_18(%arg0: i32) -> (i32, i32) {
    %c0_i32 = arith.constant 0 : i32
    %c0_i32_0 = arith.constant 0 : i32
    %c0_i32_1 = arith.constant 0 : i32
    return %c0_i32, %c0_i32_0 : i32, i32
  }
  func.func @transform_19(%arg0: i32) -> (i32, i32, i32) {
    %c0_i32 = arith.constant 0 : i32
    %c0_i32_0 = arith.constant 0 : i32
    %c0_i32_1 = arith.constant 0 : i32
    %c0_i32_2 = arith.constant 0 : i32
    return %c0_i32, %c0_i32_0, %c0_i32_1 : i32, i32, i32
  }
  func.func @transform_20(%arg0: i32) -> (i32, i32, i32) {
    %c0_i32 = arith.constant 0 : i32
    %c0_i32_0 = arith.constant 0 : i32
    %c0_i32_1 = arith.constant 0 : i32
    %c0_i32_2 = arith.constant 0 : i32
    return %c0_i32, %c0_i32_0, %c0_i32_1 : i32, i32, i32
  }
  func.func @transform_21(%arg0: i32) -> (i32, i32, i32) {
    %c0_i32 = arith.constant 0 : i32
    %c0_i32_0 = arith.constant 0 : i32
    %c0_i32_1 = arith.constant 0 : i32
    %c0_i32_2 = arith.constant 0 : i32
    return %c0_i32, %c0_i32_0, %c0_i32_1 : i32, i32, i32
  }
  func.func @transform_22(%arg0: i32) -> (i32, i32, i32) {
    %c0_i32 = arith.constant 0 : i32
    %c0_i32_0 = arith.constant 0 : i32
    %c0_i32_1 = arith.constant 0 : i32
    %c0_i32_2 = arith.constant 0 : i32
    return %c0_i32, %c0_i32_0, %c0_i32_1 : i32, i32, i32
  }
  func.func @transform_23(%arg0: i32) -> (i32, i32) {
    %c0_i32 = arith.constant 0 : i32
    %c0_i32_0 = arith.constant 0 : i32
    %c0_i32_1 = arith.constant 0 : i32
    return %c0_i32, %c0_i32_0 : i32, i32
  }
  func.func @transform_24(%arg0: i32) -> (i32, i32) {
    %c0_i32 = arith.constant 0 : i32
    %c0_i32_0 = arith.constant 0 : i32
    %c0_i32_1 = arith.constant 0 : i32
    return %c0_i32, %c0_i32_0 : i32, i32
  }
  func.func @transform_25(%arg0: i32) -> (i32, i32) {
    %c0_i32 = arith.constant 0 : i32
    %c0_i32_0 = arith.constant 0 : i32
    %c0_i32_1 = arith.constant 0 : i32
    return %c0_i32, %c0_i32_0 : i32, i32
  }
  func.func @transform_26(%arg0: i32) -> (i32, i32) {
    %c0_i32 = arith.constant 0 : i32
    %c0_i32_0 = arith.constant 0 : i32
    %c0_i32_1 = arith.constant 0 : i32
    return %c0_i32, %c0_i32_0 : i32, i32
  }
  func.func @transform_27(%arg0: i32) -> (i32, i32) {
    %c0_i32 = arith.constant 0 : i32
    %c0_i32_0 = arith.constant 0 : i32
    %c0_i32_1 = arith.constant 0 : i32
    return %c0_i32, %c0_i32_0 : i32, i32
  }
  func.func @transform_28(%arg0: i32) -> (i32, i32) {
    %c0_i32 = arith.constant 0 : i32
    %c0_i32_0 = arith.constant 0 : i32
    %c0_i32_1 = arith.constant 0 : i32
    return %c0_i32, %c0_i32_0 : i32, i32
  }
  func.func @transform_29(%arg0: i32) -> (i32, i32) {
    %c0_i32 = arith.constant 0 : i32
    %c0_i32_0 = arith.constant 0 : i32
    %c0_i32_1 = arith.constant 0 : i32
    return %c0_i32, %c0_i32_0 : i32, i32
  }
  func.func @transform_30(%arg0: i32) -> (i32, i32) {
    %c0_i32 = arith.constant 0 : i32
    %c0_i32_0 = arith.constant 0 : i32
    %c0_i32_1 = arith.constant 0 : i32
    return %c0_i32, %c0_i32_0 : i32, i32
  }
  func.func @transform_31(%arg0: i32) -> (i32, i32) {
    %c0_i32 = arith.constant 0 : i32
    %c0_i32_0 = arith.constant 0 : i32
    %c0_i32_1 = arith.constant 0 : i32
    return %c0_i32, %c0_i32_0 : i32, i32
  }
  func.func @transform_32(%arg0: i32) -> (i32, i32, i32) {
    %c0_i32 = arith.constant 0 : i32
    %c0_i32_0 = arith.constant 0 : i32
    %c0_i32_1 = arith.constant 0 : i32
    return %arg0, %c0_i32, %c0_i32_0 : i32, i32, i32
  }
}

</mosaic_0001>

<llo_original>
// kernel: tpu_custom_call.1
$region0: #{tpu_custom_call.1}
  #allocation0 [shape = 'u32[]', space=smem, size = 0x4, offset = 0x4, fixed_abs, tag = 'smem constant byte address 0x4 - core index']
  #allocation1 [shape = 'u32[144,128]{1,0:T(1,128)}', space=vmem, size = 0x12000, scoped, tag = 'internal scratch']
  %s0 = inlined_call_operand.smem [shape: u32[33], index: -1, kind: input, shape index: {}]
  %s1 = sld [smem:[%s0]]
  %s2 = scalar_lea.smem %s0, 1
  %s3 = sld [smem:[%s2]]
  %s4 = scalar_lea.smem %s0, 2
  %s5 = sld [smem:[%s4]]
  %s6 = scalar_lea.smem %s0, 3
  %s7 = sld [smem:[%s6]]
  %s8 = scalar_lea.smem %s0, 4
  %s9 = sld [smem:[%s8]]
  %s10 = scalar_lea.smem %s0, 5
  %s11 = sld [smem:[%s10]]
  %s12 = scalar_lea.smem %s0, 6
  %s13 = sld [smem:[%s12]]
  %s14 = scalar_lea.smem %s0, 7
  %s15 = sld [smem:[%s14]]
  %s16 = scalar_lea.smem %s0, 8
  %s17 = sld [smem:[%s16]]
  %s18 = scalar_lea.smem %s0, 9
  %s19 = sld [smem:[%s18]]
  %s20 = scalar_lea.smem %s0, 10
  %s21 = sld [smem:[%s20]]
  %s22 = scalar_lea.smem %s0, 11
  %s23 = sld [smem:[%s22]]
  %s24 = scalar_lea.smem %s0, 12
  %s25 = sld [smem:[%s24]]
  %s26 = scalar_lea.smem %s0, 13
  %s27 = sld [smem:[%s26]]
  %s28 = scalar_lea.smem %s0, 14
  %s29 = sld [smem:[%s28]]
  %s30 = scalar_lea.smem %s0, 15
  %s31 = sld [smem:[%s30]]
  %s32 = scalar_lea.smem %s0, 16
  %s33 = sld [smem:[%s32]]
  %s34 = scalar_lea.smem %s0, 17
  %s35 = sld [smem:[%s34]]
  %s36 = scalar_lea.smem %s0, 18
  %s37 = sld [smem:[%s36]]
  %s38 = scalar_lea.smem %s0, 19
  %s39 = sld [smem:[%s38]]
  %s40 = scalar_lea.smem %s0, 20
  %s41 = sld [smem:[%s40]]
  %s42 = scalar_lea.smem %s0, 21
  %s43 = sld [smem:[%s42]]
  %s44 = scalar_lea.smem %s0, 22
  %s45 = sld [smem:[%s44]]
  %s46 = scalar_lea.smem %s0, 23
  %s47 = sld [smem:[%s46]]
  %s48 = scalar_lea.smem %s0, 24
  %s49 = sld [smem:[%s48]]
  %s50 = scalar_lea.smem %s0, 25
  %s51 = sld [smem:[%s50]]
  %s52 = scalar_lea.smem %s0, 26
  %s53 = sld [smem:[%s52]]
  %s54 = scalar_lea.smem %s0, 27
  %s55 = sld [smem:[%s54]]
  %s56 = scalar_lea.smem %s0, 28
  %s57 = sld [smem:[%s56]]
  %s58 = scalar_lea.smem %s0, 29
  %s59 = sld [smem:[%s58]]
  %s60 = scalar_lea.smem %s0, 30
  %s61 = sld [smem:[%s60]]
  %s62 = scalar_lea.smem %s0, 31
  %s63 = sld [smem:[%s62]]
  %s64 = scalar_lea.smem %s0, 32
  %s65 = sld [smem:[%s64]]
  %s66 = sld [smem:[#allocation0]]
  $region161: #{tpu_custom_call.1} parent=0
    _
  %s68 = ssub.s32 1, %s66
  %s69 = scalar_select 0, %s68, %s66
  $region1: #{tpu_custom_call.1} parent=0
    #allocation2 [shape = 'u8[8192]{0}', space=vmem, size = 0x2000, scoped, tag = 'output window, operand 0']
    #allocation3 [shape = 's32[2]{0}', space=sflag, size = 0x8, scoped, tag = 'scoped memory for tpu_custom_call.1']
    %70 = vsyncpa [#allocation3], 0
    %s71 = scalar_lea.sflag [#allocation3], 1
    %72 = vsyncpa %s71, 0
    loop: start=0, step=1, limit=4
    $region2: #{tpu_custom_call.1} parent=1 // loop_pre_header
      _
    $region3: #{tpu_custom_call.1} parent=1 // loop_header
      %s74 = sphi 0, %s78
      %p75 = scmp.ge.s32.totalorder %s74, 4
      %s84 = sphi 0, %s86
      %s87 = sphi 0, %s84
      %s88 = sphi 0, %s87
      %s104 = sphi 0, %s88
      %s110 = sphi 0, %s112
      %s113 = sphi 0, %s110
      %s114 = sphi 0, %s113
      %s130 = sphi 0, %s114
      %s134 = sphi 0, %s134
      %s136 = sphi 0, %s134
      %s137 = sphi 0, %s136
      %s151 = sphi 0, %s137
      %s155 = sphi 0, %s155
      %s157 = sphi 0, %s155
      %s158 = sphi 0, %s157
      %s172 = sphi 0, %s158
      %s176 = sphi 0, %s176
      %s178 = sphi 0, %s176
      %s179 = sphi 0, %s178
      %s193 = sphi 0, %s179
      %s197 = sphi 0, %s197
      %s199 = sphi 0, %s197
      %s200 = sphi 0, %s199
      %s214 = sphi 0, %s200
      %s218 = sphi 0, %s218
      %s220 = sphi 0, %s218
      %s221 = sphi 0, %s220
      %s235 = sphi 0, %s221
      %s239 = sphi 0, %s239
      %s241 = sphi 0, %s239
      %s242 = sphi 0, %s241
      %s256 = sphi 0, %s242
      %s260 = sphi 0, %s260
      %s262 = sphi 0, %s260
      %s263 = sphi 0, %s262
      %s277 = sphi 0, %s263
      %s281 = sphi 0, %s281
      %s283 = sphi 0, %s281
      %s284 = sphi 0, %s283
      %s298 = sphi 0, %s284
      %s302 = sphi 0, %s302
      %s304 = sphi 0, %s302
      %s305 = sphi 0, %s304
      %s319 = sphi 0, %s305
      %s323 = sphi 0, %s323
      %s325 = sphi 0, %s323
      %s326 = sphi 0, %s325
      %s340 = sphi 0, %s326
      %s344 = sphi 0, %s344
      %s346 = sphi 0, %s344
      %s347 = sphi 0, %s346
      %s361 = sphi 0, %s347
      %s365 = sphi 0, %s365
      %s367 = sphi 0, %s365
      %s368 = sphi 0, %s367
      %s382 = sphi 0, %s368
      %s386 = sphi 0, %s386
      %s388 = sphi 0, %s386
      %s389 = sphi 0, %s388
      %s403 = sphi 0, %s389
      %s407 = sphi 0, %s407
      %s409 = sphi 0, %s407
      %s410 = sphi 0, %s409
      %s424 = sphi 0, %s410
      %s428 = sphi 0, %s428
      %s430 = sphi 0, %s428
      %s431 = sphi 0, %s430
      %s445 = sphi 0, %s431
      %s449 = sphi 0, %s449
      %s451 = sphi 0, %s449
      %s452 = sphi 0, %s451
      %s466 = sphi 0, %s452
      %s470 = sphi 0, %s470
      %s472 = sphi 0, %s470
      %s473 = sphi 0, %s472
      %s487 = sphi 0, %s473
      %s491 = sphi 0, %s491
      %s493 = sphi 0, %s491
      %s494 = sphi 0, %s493
      %s508 = sphi 0, %s494
      %s512 = sphi 0, %s512
      %s514 = sphi 0, %s512
      %s515 = sphi 0, %s514
      %s529 = sphi 0, %s515
      %s533 = sphi 0, %s533
      %s535 = sphi 0, %s533
      %s536 = sphi 0, %s535
      %s550 = sphi 0, %s536
      %s554 = sphi 0, %s554
      %s556 = sphi 0, %s554
      %s557 = sphi 0, %s556
      %s571 = sphi 0, %s557
      %s575 = sphi 0, %s575
      %s577 = sphi 0, %s575
      %s578 = sphi 0, %s577
      %s592 = sphi 0, %s578
      %s596 = sphi 0, %s596
      %s598 = sphi 0, %s596
      %s599 = sphi 0, %s598
      %s613 = sphi 0, %s599
      %s617 = sphi 0, %s617
      %s619 = sphi 0, %s617
      %s620 = sphi 0, %s619
      %s634 = sphi 0, %s620
      %s638 = sphi 0, %s638
      %s640 = sphi 0, %s638
      %s641 = sphi 0, %s640
      %s655 = sphi 0, %s641
      %s659 = sphi 0, %s659
      %s661 = sphi 0, %s659
      %s662 = sphi 0, %s661
      %s676 = sphi 0, %s662
      %s680 = sphi 0, %s680
      %s682 = sphi 0, %s680
      %s683 = sphi 0, %s682
      %s697 = sphi 0, %s683
      %s701 = sphi 0, %s701
      %s703 = sphi 0, %s701
      %s704 = sphi 0, %s703
      %s718 = sphi 0, %s704
      %s722 = sphi 0, %s722
      %s724 = sphi 0, %s722
      %s725 = sphi 0, %s724
      %s739 = sphi 0, %s725
      %s743 = sphi 0, %s743
      %s745 = sphi 0, %s743
      %s746 = sphi 0, %s745
      %s760 = sphi 0, %s746
      %s766 = sphi 0, %s768
      %s769 = sphi 0, %s766
      %s770 = sphi 0, %s769
      %s786 = sphi 0, %s770
    $region4: #{tpu_custom_call.1} parent=1 // loop_header_branch
      %77 = sbr.rel (%p75) target = $region8
    $region5: #{tpu_custom_call.1} parent=1 // loop_body
      %s79 = ssub.s32 %s74, 1
      %s80 = ssub.s32 %s74, 2
      %s81 = sadd.s32 %s74, 1
      %s82 = ssub.s32 %s74, %s81
      %p83 = scmp.eq.s32.totalorder %s82, 0
      %s85 = sadd.s32 %s84, 1
      %s86 = scalar_select %p83, %s84, %s85
      %p89 = pneg %p83
      %p90 = scmp.eq.s32.totalorder %s74, 1
      %p91 = por %p89, %p90
      %p92 = scmp.ne.s32.totalorder %s84, %s87
      %p93 = scmp.eq.s32.totalorder %s74, 0
      %p94 = por %p92, %p93
      %p95 = scmp.ne.s32.totalorder %s84, %s87
      %p96 = scmp.eq.s32.totalorder %s79, 1
      %p97 = por %p95, %p96
      %p98 = scmp.ne.s32.totalorder %s87, %s88
      %p99 = scmp.eq.s32.totalorder %s79, 0
      %p100 = por %p98, %p99
      %p101 = scmp.ne.s32.totalorder %s87, %s88
      %p102 = scmp.eq.s32.totalorder %s80, 1
      %p103 = por %p101, %p102
      %p105 = scmp.ne.s32.totalorder %s88, %s104
      %p106 = scmp.eq.s32.totalorder %s80, 0
      %p107 = por %p105, %p106
      %s108 = ssub.s32 %s74, %s81
      %p109 = scmp.eq.s32.totalorder %s108, 0
      %s111 = sadd.s32 %s110, 1
      %s112 = scalar_select %p109, %s110, %s111
      %p115 = pneg %p109
      %p116 = scmp.eq.s32.totalorder %s74, 1
      %p117 = por %p115, %p116
      %p118 = scmp.ne.s32.totalorder %s110, %s113
      %p119 = scmp.eq.s32.totalorder %s74, 0
      %p120 = por %p118, %p119
      %p121 = scmp.ne.s32.totalorder %s110, %s113
      %p122 = scmp.eq.s32.totalorder %s79, 1
      %p123 = por %p121, %p122
      %p124 = scmp.ne.s32.totalorder %s113, %s114
      %p125 = scmp.eq.s32.totalorder %s79, 0
      %p126 = por %p124, %p125
      %p127 = scmp.ne.s32.totalorder %s113, %s114
      %p128 = scmp.eq.s32.totalorder %s80, 1
      %p129 = por %p127, %p128
      %p131 = scmp.ne.s32.totalorder %s114, %s130
      %p132 = scmp.eq.s32.totalorder %s80, 0
      %p133 = por %p131, %p132
      %s135 = sadd.s32 %s134, 1
      %p138 = scmp.eq.s32.totalorder %s74, 1
      %p139 = scmp.ne.s32.totalorder %s134, %s136
      %p140 = scmp.eq.s32.totalorder %s74, 0
      %p141 = por %p139, %p140
      %p142 = scmp.ne.s32.totalorder %s134, %s136
      %p143 = scmp.eq.s32.totalorder %s79, 1
      %p144 = por %p142, %p143
      %p145 = scmp.ne.s32.totalorder %s136, %s137
      %p146 = scmp.eq.s32.totalorder %s79, 0
      %p147 = por %p145, %p146
      %p148 = scmp.ne.s32.totalorder %s136, %s137
      %p149 = scmp.eq.s32.totalorder %s80, 1
      %p150 = por %p148, %p149
      %p152 = scmp.ne.s32.totalorder %s137, %s151
      %p153 = scmp.eq.s32.totalorder %s80, 0
      %p154 = por %p152, %p153
      %s156 = sadd.s32 %s155, 1
      %p159 = scmp.eq.s32.totalorder %s74, 1
      %p160 = scmp.ne.s32.totalorder %s155, %s157
      %p161 = scmp.eq.s32.totalorder %s74, 0
      %p162 = por %p160, %p161
      %p163 = scmp.ne.s32.totalorder %s155, %s157
      %p164 = scmp.eq.s32.totalorder %s79, 1
      %p165 = por %p163, %p164
      %p166 = scmp.ne.s32.totalorder %s157, %s158
      %p167 = scmp.eq.s32.totalorder %s79, 0
      %p168 = por %p166, %p167
      %p169 = scmp.ne.s32.totalorder %s157, %s158
      %p170 = scmp.eq.s32.totalorder %s80, 1
      %p171 = por %p169, %p170
      %p173 = scmp.ne.s32.totalorder %s158, %s172
      %p174 = scmp.eq.s32.totalorder %s80, 0
      %p175 = por %p173, %p174
      %s177 = sadd.s32 %s176, 1
      %p180 = scmp.eq.s32.totalorder %s74, 1
      %p181 = scmp.ne.s32.totalorder %s176, %s178
      %p182 = scmp.eq.s32.totalorder %s74, 0
      %p183 = por %p181, %p182
      %p184 = scmp.ne.s32.totalorder %s176, %s178
      %p185 = scmp.eq.s32.totalorder %s79, 1
      %p186 = por %p184, %p185
      %p187 = scmp.ne.s32.totalorder %s178, %s179
      %p188 = scmp.eq.s32.totalorder %s79, 0
      %p189 = por %p187, %p188
      %p190 = scmp.ne.s32.totalorder %s178, %s179
      %p191 = scmp.eq.s32.totalorder %s80, 1
      %p192 = por %p190, %p191
      %p194 = scmp.ne.s32.totalorder %s179, %s193
      %p195 = scmp.eq.s32.totalorder %s80, 0
      %p196 = por %p194, %p195
      %s198 = sadd.s32 %s197, 1
      %p201 = scmp.eq.s32.totalorder %s74, 1
      %p202 = scmp.ne.s32.totalorder %s197, %s199
      %p203 = scmp.eq.s32.totalorder %s74, 0
      %p204 = por %p202, %p203
      %p205 = scmp.ne.s32.totalorder %s197, %s199
      %p206 = scmp.eq.s32.totalorder %s79, 1
      %p207 = por %p205, %p206
      %p208 = scmp.ne.s32.totalorder %s199, %s200
      %p209 = scmp.eq.s32.totalorder %s79, 0
      %p210 = por %p208, %p209
      %p211 = scmp.ne.s32.totalorder %s199, %s200
      %p212 = scmp.eq.s32.totalorder %s80, 1
      %p213 = por %p211, %p212
      %p215 = scmp.ne.s32.totalorder %s200, %s214
      %p216 = scmp.eq.s32.totalorder %s80, 0
      %p217 = por %p215, %p216
      %s219 = sadd.s32 %s218, 1
      %p222 = scmp.eq.s32.totalorder %s74, 1
      %p223 = scmp.ne.s32.totalorder %s218, %s220
      %p224 = scmp.eq.s32.totalorder %s74, 0
      %p225 = por %p223, %p224
      %p226 = scmp.ne.s32.totalorder %s218, %s220
      %p227 = scmp.eq.s32.totalorder %s79, 1
      %p228 = por %p226, %p227
      %p229 = scmp.ne.s32.totalorder %s220, %s221
      %p230 = scmp.eq.s32.totalorder %s79, 0
      %p231 = por %p229, %p230
      %p232 = scmp.ne.s32.totalorder %s220, %s221
      %p233 = scmp.eq.s32.totalorder %s80, 1
      %p234 = por %p232, %p233
      %p236 = scmp.ne.s32.totalorder %s221, %s235
      %p237 = scmp.eq.s32.totalorder %s80, 0
      %p238 = por %p236, %p237
      %s240 = sadd.s32 %s239, 1
      %p243 = scmp.eq.s32.totalorder %s74, 1
      %p244 = scmp.ne.s32.totalorder %s239, %s241
      %p245 = scmp.eq.s32.totalorder %s74, 0
      %p246 = por %p244, %p245
      %p247 = scmp.ne.s32.totalorder %s239, %s241
      %p248 = scmp.eq.s32.totalorder %s79, 1
      %p249 = por %p247, %p248
      %p250 = scmp.ne.s32.totalorder %s241, %s242
      %p251 = scmp.eq.s32.totalorder %s79, 0
      %p252 = por %p250, %p251
      %p253 = scmp.ne.s32.totalorder %s241, %s242
      %p254 = scmp.eq.s32.totalorder %s80, 1
      %p255 = por %p253, %p254
      %p257 = scmp.ne.s32.totalorder %s242, %s256
      %p258 = scmp.eq.s32.totalorder %s80, 0
      %p259 = por %p257, %p258
      %s261 = sadd.s32 %s260, 1
      %p264 = scmp.eq.s32.totalorder %s74, 1
      %p265 = scmp.ne.s32.totalorder %s260, %s262
      %p266 = scmp.eq.s32.totalorder %s74, 0
      %p267 = por %p265, %p266
      %p268 = scmp.ne.s32.totalorder %s260, %s262
      %p269 = scmp.eq.s32.totalorder %s79, 1
      %p270 = por %p268, %p269
      %p271 = scmp.ne.s32.totalorder %s262, %s263
      %p272 = scmp.eq.s32.totalorder %s79, 0
      %p273 = por %p271, %p272
      %p274 = scmp.ne.s32.totalorder %s262, %s263
      %p275 = scmp.eq.s32.totalorder %s80, 1
      %p276 = por %p274, %p275
      %p278 = scmp.ne.s32.totalorder %s263, %s277
      %p279 = scmp.eq.s32.totalorder %s80, 0
      %p280 = por %p278, %p279
      %s282 = sadd.s32 %s281, 1
      %p285 = scmp.eq.s32.totalorder %s74, 1
      %p286 = scmp.ne.s32.totalorder %s281, %s283
      %p287 = scmp.eq.s32.totalorder %s74, 0
      %p288 = por %p286, %p287
      %p289 = scmp.ne.s32.totalorder %s281, %s283
      %p290 = scmp.eq.s32.totalorder %s79, 1
      %p291 = por %p289, %p290
      %p292 = scmp.ne.s32.totalorder %s283, %s284
      %p293 = scmp.eq.s32.totalorder %s79, 0
      %p294 = por %p292, %p293
      %p295 = scmp.ne.s32.totalorder %s283, %s284
      %p296 = scmp.eq.s32.totalorder %s80, 1
      %p297 = por %p295, %p296
      %p299 = scmp.ne.s32.totalorder %s284, %s298
      %p300 = scmp.eq.s32.totalorder %s80, 0
      %p301 = por %p299, %p300
      %s303 = sadd.s32 %s302, 1
      %p306 = scmp.eq.s32.totalorder %s74, 1
      %p307 = scmp.ne.s32.totalorder %s302, %s304
      %p308 = scmp.eq.s32.totalorder %s74, 0
      %p309 = por %p307, %p308
      %p310 = scmp.ne.s32.totalorder %s302, %s304
      %p311 = scmp.eq.s32.totalorder %s79, 1
      %p312 = por %p310, %p311
      %p313 = scmp.ne.s32.totalorder %s304, %s305
      %p314 = scmp.eq.s32.totalorder %s79, 0
      %p315 = por %p313, %p314
      %p316 = scmp.ne.s32.totalorder %s304, %s305
      %p317 = scmp.eq.s32.totalorder %s80, 1
      %p318 = por %p316, %p317
      %p320 = scmp.ne.s32.totalorder %s305, %s319
      %p321 = scmp.eq.s32.totalorder %s80, 0
      %p322 = por %p320, %p321
      %s324 = sadd.s32 %s323, 1
      %p327 = scmp.eq.s32.totalorder %s74, 1
      %p328 = scmp.ne.s32.totalorder %s323, %s325
      %p329 = scmp.eq.s32.totalorder %s74, 0
      %p330 = por %p328, %p329
      %p331 = scmp.ne.s32.totalorder %s323, %s325
      %p332 = scmp.eq.s32.totalorder %s79, 1
      %p333 = por %p331, %p332
      %p334 = scmp.ne.s32.totalorder %s325, %s326
      %p335 = scmp.eq.s32.totalorder %s79, 0
      %p336 = por %p334, %p335
      %p337 = scmp.ne.s32.totalorder %s325, %s326
      %p338 = scmp.eq.s32.totalorder %s80, 1
      %p339 = por %p337, %p338
      %p341 = scmp.ne.s32.totalorder %s326, %s340
      %p342 = scmp.eq.s32.totalorder %s80, 0
      %p343 = por %p341, %p342
      %s345 = sadd.s32 %s344, 1
      %p348 = scmp.eq.s32.totalorder %s74, 1
      %p349 = scmp.ne.s32.totalorder %s344, %s346
      %p350 = scmp.eq.s32.totalorder %s74, 0
      %p351 = por %p349, %p350
      %p352 = scmp.ne.s32.totalorder %s344, %s346
      %p353 = scmp.eq.s32.totalorder %s79, 1
      %p354 = por %p352, %p353
      %p355 = scmp.ne.s32.totalorder %s346, %s347
      %p356 = scmp.eq.s32.totalorder %s79, 0
      %p357 = por %p355, %p356
      %p358 = scmp.ne.s32.totalorder %s346, %s347
      %p359 = scmp.eq.s32.totalorder %s80, 1
      %p360 = por %p358, %p359
      %p362 = scmp.ne.s32.totalorder %s347, %s361
      %p363 = scmp.eq.s32.totalorder %s80, 0
      %p364 = por %p362, %p363
      %s366 = sadd.s32 %s365, 1
      %p369 = scmp.eq.s32.totalorder %s74, 1
      %p370 = scmp.ne.s32.totalorder %s365, %s367
      %p371 = scmp.eq.s32.totalorder %s74, 0
      %p372 = por %p370, %p371
      %p373 = scmp.ne.s32.totalorder %s365, %s367
      %p374 = scmp.eq.s32.totalorder %s79, 1
      %p375 = por %p373, %p374
      %p376 = scmp.ne.s32.totalorder %s367, %s368
      %p377 = scmp.eq.s32.totalorder %s79, 0
      %p378 = por %p376, %p377
      %p379 = scmp.ne.s32.totalorder %s367, %s368
      %p380 = scmp.eq.s32.totalorder %s80, 1
      %p381 = por %p379, %p380
      %p383 = scmp.ne.s32.totalorder %s368, %s382
      %p384 = scmp.eq.s32.totalorder %s80, 0
      %p385 = por %p383, %p384
      %s387 = sadd.s32 %s386, 1
      %p390 = scmp.eq.s32.totalorder %s74, 1
      %p391 = scmp.ne.s32.totalorder %s386, %s388
      %p392 = scmp.eq.s32.totalorder %s74, 0
      %p393 = por %p391, %p392
      %p394 = scmp.ne.s32.totalorder %s386, %s388
      %p395 = scmp.eq.s32.totalorder %s79, 1
      %p396 = por %p394, %p395
      %p397 = scmp.ne.s32.totalorder %s388, %s389
      %p398 = scmp.eq.s32.totalorder %s79, 0
      %p399 = por %p397, %p398
      %p400 = scmp.ne.s32.totalorder %s388, %s389
      %p401 = scmp.eq.s32.totalorder %s80, 1
      %p402 = por %p400, %p401
      %p404 = scmp.ne.s32.totalorder %s389, %s403
      %p405 = scmp.eq.s32.totalorder %s80, 0
      %p406 = por %p404, %p405
      %s408 = sadd.s32 %s407, 1
      %p411 = scmp.eq.s32.totalorder %s74, 1
      %p412 = scmp.ne.s32.totalorder %s407, %s409
      %p413 = scmp.eq.s32.totalorder %s74, 0
      %p414 = por %p412, %p413
      %p415 = scmp.ne.s32.totalorder %s407, %s409
      %p416 = scmp.eq.s32.totalorder %s79, 1
      %p417 = por %p415, %p416
      %p418 = scmp.ne.s32.totalorder %s409, %s410
      %p419 = scmp.eq.s32.totalorder %s79, 0
      %p420 = por %p418, %p419
      %p421 = scmp.ne.s32.totalorder %s409, %s410
      %p422 = scmp.eq.s32.totalorder %s80, 1
      %p423 = por %p421, %p422
      %p425 = scmp.ne.s32.totalorder %s410, %s424
      %p426 = scmp.eq.s32.totalorder %s80, 0
      %p427 = por %p425, %p426
      %s429 = sadd.s32 %s428, 1
      %p432 = scmp.eq.s32.totalorder %s74, 1
      %p433 = scmp.ne.s32.totalorder %s428, %s430
      %p434 = scmp.eq.s32.totalorder %s74, 0
      %p435 = por %p433, %p434
      %p436 = scmp.ne.s32.totalorder %s428, %s430
      %p437 = scmp.eq.s32.totalorder %s79, 1
      %p438 = por %p436, %p437
      %p439 = scmp.ne.s32.totalorder %s430, %s431
      %p440 = scmp.eq.s32.totalorder %s79, 0
      %p441 = por %p439, %p440
      %p442 = scmp.ne.s32.totalorder %s430, %s431
      %p443 = scmp.eq.s32.totalorder %s80, 1
      %p444 = por %p442, %p443
      %p446 = scmp.ne.s32.totalorder %s431, %s445
      %p447 = scmp.eq.s32.totalorder %s80, 0
      %p448 = por %p446, %p447
      %s450 = sadd.s32 %s449, 1
      %p453 = scmp.eq.s32.totalorder %s74, 1
      %p454 = scmp.ne.s32.totalorder %s449, %s451
      %p455 = scmp.eq.s32.totalorder %s74, 0
      %p456 = por %p454, %p455
      %p457 = scmp.ne.s32.totalorder %s449, %s451
      %p458 = scmp.eq.s32.totalorder %s79, 1
      %p459 = por %p457, %p458
      %p460 = scmp.ne.s32.totalorder %s451, %s452
      %p461 = scmp.eq.s32.totalorder %s79, 0
      %p462 = por %p460, %p461
      %p463 = scmp.ne.s32.totalorder %s451, %s452
      %p464 = scmp.eq.s32.totalorder %s80, 1
      %p465 = por %p463, %p464
      %p467 = scmp.ne.s32.totalorder %s452, %s466
      %p468 = scmp.eq.s32.totalorder %s80, 0
      %p469 = por %p467, %p468
      %s471 = sadd.s32 %s470, 1
      %p474 = scmp.eq.s32.totalorder %s74, 1
      %p475 = scmp.ne.s32.totalorder %s470, %s472
      %p476 = scmp.eq.s32.totalorder %s74, 0
      %p477 = por %p475, %p476
      %p478 = scmp.ne.s32.totalorder %s470, %s472
      %p479 = scmp.eq.s32.totalorder %s79, 1
      %p480 = por %p478, %p479
      %p481 = scmp.ne.s32.totalorder %s472, %s473
      %p482 = scmp.eq.s32.totalorder %s79, 0
      %p483 = por %p481, %p482
      %p484 = scmp.ne.s32.totalorder %s472, %s473
      %p485 = scmp.eq.s32.totalorder %s80, 1
      %p486 = por %p484, %p485
      %p488 = scmp.ne.s32.totalorder %s473, %s487
      %p489 = scmp.eq.s32.totalorder %s80, 0
      %p490 = por %p488, %p489
      %s492 = sadd.s32 %s491, 1
      %p495 = scmp.eq.s32.totalorder %s74, 1
      %p496 = scmp.ne.s32.totalorder %s491, %s493
      %p497 = scmp.eq.s32.totalorder %s74, 0
      %p498 = por %p496, %p497
      %p499 = scmp.ne.s32.totalorder %s491, %s493
      %p500 = scmp.eq.s32.totalorder %s79, 1
      %p501 = por %p499, %p500
      %p502 = scmp.ne.s32.totalorder %s493, %s494
      %p503 = scmp.eq.s32.totalorder %s79, 0
      %p504 = por %p502, %p503
      %p505 = scmp.ne.s32.totalorder %s493, %s494
      %p506 = scmp.eq.s32.totalorder %s80, 1
      %p507 = por %p505, %p506
      %p509 = scmp.ne.s32.totalorder %s494, %s508
      %p510 = scmp.eq.s32.totalorder %s80, 0
      %p511 = por %p509, %p510
      %s513 = sadd.s32 %s512, 1
      %p516 = scmp.eq.s32.totalorder %s74, 1
      %p517 = scmp.ne.s32.totalorder %s512, %s514
      %p518 = scmp.eq.s32.totalorder %s74, 0
      %p519 = por %p517, %p518
      %p520 = scmp.ne.s32.totalorder %s512, %s514
      %p521 = scmp.eq.s32.totalorder %s79, 1
      %p522 = por %p520, %p521
      %p523 = scmp.ne.s32.totalorder %s514, %s515
      %p524 = scmp.eq.s32.totalorder %s79, 0
      %p525 = por %p523, %p524
      %p526 = scmp.ne.s32.totalorder %s514, %s515
      %p527 = scmp.eq.s32.totalorder %s80, 1
      %p528 = por %p526, %p527
      %p530 = scmp.ne.s32.totalorder %s515, %s529
      %p531 = scmp.eq.s32.totalorder %s80, 0
      %p532 = por %p530, %p531
      %s534 = sadd.s32 %s533, 1
      %p537 = scmp.eq.s32.totalorder %s74, 1
      %p538 = scmp.ne.s32.totalorder %s533, %s535
      %p539 = scmp.eq.s32.totalorder %s74, 0
      %p540 = por %p538, %p539
      %p541 = scmp.ne.s32.totalorder %s533, %s535
      %p542 = scmp.eq.s32.totalorder %s79, 1
      %p543 = por %p541, %p542
      %p544 = scmp.ne.s32.totalorder %s535, %s536
      %p545 = scmp.eq.s32.totalorder %s79, 0
      %p546 = por %p544, %p545
      %p547 = scmp.ne.s32.totalorder %s535, %s536
      %p548 = scmp.eq.s32.totalorder %s80, 1
      %p549 = por %p547, %p548
      %p551 = scmp.ne.s32.totalorder %s536, %s550
      %p552 = scmp.eq.s32.totalorder %s80, 0
      %p553 = por %p551, %p552
      %s555 = sadd.s32 %s554, 1
      %p558 = scmp.eq.s32.totalorder %s74, 1
      %p559 = scmp.ne.s32.totalorder %s554, %s556
      %p560 = scmp.eq.s32.totalorder %s74, 0
      %p561 = por %p559, %p560
      %p562 = scmp.ne.s32.totalorder %s554, %s556
      %p563 = scmp.eq.s32.totalorder %s79, 1
      %p564 = por %p562, %p563
      %p565 = scmp.ne.s32.totalorder %s556, %s557
      %p566 = scmp.eq.s32.totalorder %s79, 0
      %p567 = por %p565, %p566
      %p568 = scmp.ne.s32.totalorder %s556, %s557
      %p569 = scmp.eq.s32.totalorder %s80, 1
      %p570 = por %p568, %p569
      %p572 = scmp.ne.s32.totalorder %s557, %s571
      %p573 = scmp.eq.s32.totalorder %s80, 0
      %p574 = por %p572, %p573
      %s576 = sadd.s32 %s575, 1
      %p579 = scmp.eq.s32.totalorder %s74, 1
      %p580 = scmp.ne.s32.totalorder %s575, %s577
      %p581 = scmp.eq.s32.totalorder %s74, 0
      %p582 = por %p580, %p581
      %p583 = scmp.ne.s32.totalorder %s575, %s577
      %p584 = scmp.eq.s32.totalorder %s79, 1
      %p585 = por %p583, %p584
      %p586 = scmp.ne.s32.totalorder %s577, %s578
      %p587 = scmp.eq.s32.totalorder %s79, 0
      %p588 = por %p586, %p587
      %p589 = scmp.ne.s32.totalorder %s577, %s578
      %p590 = scmp.eq.s32.totalorder %s80, 1
      %p591 = por %p589, %p590
      %p593 = scmp.ne.s32.totalorder %s578, %s592
      %p594 = scmp.eq.s32.totalorder %s80, 0
      %p595 = por %p593, %p594
      %s597 = sadd.s32 %s596, 1
      %p600 = scmp.eq.s32.totalorder %s74, 1
      %p601 = scmp.ne.s32.totalorder %s596, %s598
      %p602 = scmp.eq.s32.totalorder %s74, 0
      %p603 = por %p601, %p602
      %p604 = scmp.ne.s32.totalorder %s596, %s598
      %p605 = scmp.eq.s32.totalorder %s79, 1
      %p606 = por %p604, %p605
      %p607 = scmp.ne.s32.totalorder %s598, %s599
      %p608 = scmp.eq.s32.totalorder %s79, 0
      %p609 = por %p607, %p608
      %p610 = scmp.ne.s32.totalorder %s598, %s599
      %p611 = scmp.eq.s32.totalorder %s80, 1
      %p612 = por %p610, %p611
      %p614 = scmp.ne.s32.totalorder %s599, %s613
      %p615 = scmp.eq.s32.totalorder %s80, 0
      %p616 = por %p614, %p615
      %s618 = sadd.s32 %s617, 1
      %p621 = scmp.eq.s32.totalorder %s74, 1
      %p622 = scmp.ne.s32.totalorder %s617, %s619
      %p623 = scmp.eq.s32.totalorder %s74, 0
      %p624 = por %p622, %p623
      %p625 = scmp.ne.s32.totalorder %s617, %s619
      %p626 = scmp.eq.s32.totalorder %s79, 1
      %p627 = por %p625, %p626
      %p628 = scmp.ne.s32.totalorder %s619, %s620
      %p629 = scmp.eq.s32.totalorder %s79, 0
      %p630 = por %p628, %p629
      %p631 = scmp.ne.s32.totalorder %s619, %s620
      %p632 = scmp.eq.s32.totalorder %s80, 1
      %p633 = por %p631, %p632
      %p635 = scmp.ne.s32.totalorder %s620, %s634
      %p636 = scmp.eq.s32.totalorder %s80, 0
      %p637 = por %p635, %p636
      %s639 = sadd.s32 %s638, 1
      %p642 = scmp.eq.s32.totalorder %s74, 1
      %p643 = scmp.ne.s32.totalorder %s638, %s640
      %p644 = scmp.eq.s32.totalorder %s74, 0
      %p645 = por %p643, %p644
      %p646 = scmp.ne.s32.totalorder %s638, %s640
      %p647 = scmp.eq.s32.totalorder %s79, 1
      %p648 = por %p646, %p647
      %p649 = scmp.ne.s32.totalorder %s640, %s641
      %p650 = scmp.eq.s32.totalorder %s79, 0
      %p651 = por %p649, %p650
      %p652 = scmp.ne.s32.totalorder %s640, %s641
      %p653 = scmp.eq.s32.totalorder %s80, 1
      %p654 = por %p652, %p653
      %p656 = scmp.ne.s32.totalorder %s641, %s655
      %p657 = scmp.eq.s32.totalorder %s80, 0
      %p658 = por %p656, %p657
      %s660 = sadd.s32 %s659, 1
      %p663 = scmp.eq.s32.totalorder %s74, 1
      %p664 = scmp.ne.s32.totalorder %s659, %s661
      %p665 = scmp.eq.s32.totalorder %s74, 0
      %p666 = por %p664, %p665
      %p667 = scmp.ne.s32.totalorder %s659, %s661
      %p668 = scmp.eq.s32.totalorder %s79, 1
      %p669 = por %p667, %p668
      %p670 = scmp.ne.s32.totalorder %s661, %s662
      %p671 = scmp.eq.s32.totalorder %s79, 0
      %p672 = por %p670, %p671
      %p673 = scmp.ne.s32.totalorder %s661, %s662
      %p674 = scmp.eq.s32.totalorder %s80, 1
      %p675 = por %p673, %p674
      %p677 = scmp.ne.s32.totalorder %s662, %s676
      %p678 = scmp.eq.s32.totalorder %s80, 0
      %p679 = por %p677, %p678
      %s681 = sadd.s32 %s680, 1
      %p684 = scmp.eq.s32.totalorder %s74, 1
      %p685 = scmp.ne.s32.totalorder %s680, %s682
      %p686 = scmp.eq.s32.totalorder %s74, 0
      %p687 = por %p685, %p686
      %p688 = scmp.ne.s32.totalorder %s680, %s682
      %p689 = scmp.eq.s32.totalorder %s79, 1
      %p690 = por %p688, %p689
      %p691 = scmp.ne.s32.totalorder %s682, %s683
      %p692 = scmp.eq.s32.totalorder %s79, 0
      %p693 = por %p691, %p692
      %p694 = scmp.ne.s32.totalorder %s682, %s683
      %p695 = scmp.eq.s32.totalorder %s80, 1
      %p696 = por %p694, %p695
      %p698 = scmp.ne.s32.totalorder %s683, %s697
      %p699 = scmp.eq.s32.totalorder %s80, 0
      %p700 = por %p698, %p699
      %s702 = sadd.s32 %s701, 1
      %p705 = scmp.eq.s32.totalorder %s74, 1
      %p706 = scmp.ne.s32.totalorder %s701, %s703
      %p707 = scmp.eq.s32.totalorder %s74, 0
      %p708 = por %p706, %p707
      %p709 = scmp.ne.s32.totalorder %s701, %s703
      %p710 = scmp.eq.s32.totalorder %s79, 1
      %p711 = por %p709, %p710
      %p712 = scmp.ne.s32.totalorder %s703, %s704
      %p713 = scmp.eq.s32.totalorder %s79, 0
      %p714 = por %p712, %p713
      %p715 = scmp.ne.s32.totalorder %s703, %s704
      %p716 = scmp.eq.s32.totalorder %s80, 1
      %p717 = por %p715, %p716
      %p719 = scmp.ne.s32.totalorder %s704, %s718
      %p720 = scmp.eq.s32.totalorder %s80, 0
      %p721 = por %p719, %p720
      %s723 = sadd.s32 %s722, 1
      %p726 = scmp.eq.s32.totalorder %s74, 1
      %p727 = scmp.ne.s32.totalorder %s722, %s724
      %p728 = scmp.eq.s32.totalorder %s74, 0
      %p729 = por %p727, %p728
      %p730 = scmp.ne.s32.totalorder %s722, %s724
      %p731 = scmp.eq.s32.totalorder %s79, 1
      %p732 = por %p730, %p731
      %p733 = scmp.ne.s32.totalorder %s724, %s725
      %p734 = scmp.eq.s32.totalorder %s79, 0
      %p735 = por %p733, %p734
      %p736 = scmp.ne.s32.totalorder %s724, %s725
      %p737 = scmp.eq.s32.totalorder %s80, 1
      %p738 = por %p736, %p737
      %p740 = scmp.ne.s32.totalorder %s725, %s739
      %p741 = scmp.eq.s32.totalorder %s80, 0
      %p742 = por %p740, %p741
      %s744 = sadd.s32 %s743, 1
      %p747 = scmp.eq.s32.totalorder %s74, 1
      %p748 = scmp.ne.s32.totalorder %s743, %s745
      %p749 = scmp.eq.s32.totalorder %s74, 0
      %p750 = por %p748, %p749
      %p751 = scmp.ne.s32.totalorder %s743, %s745
      %p752 = scmp.eq.s32.totalorder %s79, 1
      %p753 = por %p751, %p752
      %p754 = scmp.ne.s32.totalorder %s745, %s746
      %p755 = scmp.eq.s32.totalorder %s79, 0
      %p756 = por %p754, %p755
      %p757 = scmp.ne.s32.totalorder %s745, %s746
      %p758 = scmp.eq.s32.totalorder %s80, 1
      %p759 = por %p757, %p758
      %p761 = scmp.ne.s32.totalorder %s746, %s760
      %p762 = scmp.eq.s32.totalorder %s80, 0
      %p763 = por %p761, %p762
      %s764 = ssub.s32 %s74, %s81
      %p765 = scmp.eq.s32.totalorder %s764, 0
      %s767 = sadd.s32 %s766, 1
      %s768 = scalar_select %p765, %s766, %s767
      %p771 = pneg %p765
      %p772 = scmp.eq.s32.totalorder %s74, 1
      %p773 = por %p771, %p772
      %p774 = scmp.ne.s32.totalorder %s766, %s769
      %p775 = scmp.eq.s32.totalorder %s74, 0
      %p776 = por %p774, %p775
      %p777 = scmp.ne.s32.totalorder %s766, %s769
      %p778 = scmp.eq.s32.totalorder %s79, 1
      %p779 = por %p777, %p778
      %p780 = scmp.ne.s32.totalorder %s769, %s770
      %p781 = scmp.eq.s32.totalorder %s79, 0
      %p782 = por %p780, %p781
      %p783 = scmp.ne.s32.totalorder %s769, %s770
      %p784 = scmp.eq.s32.totalorder %s80, 1
      %p785 = por %p783, %p784
      %p787 = scmp.ne.s32.totalorder %s770, %s786
      %p788 = scmp.eq.s32.totalorder %s80, 0
      %p789 = por %p787, %p788
      %p790 = scmp.le.s32.totalorder 1, %s74
      %p791 = scmp.lt.s32.totalorder %s74, 3
      %p792 = pnand %p790, %p791
      %p793 = pneg %p792
      // Predicated region
      $region9: #{tpu_custom_call.1} parent=5 // pred_check
        _
      $region10: #{tpu_custom_call.1} parent=5 // pred_check_branch
        %795 = sbr.rel (%p792) target = $region12
      $region11: #{tpu_custom_call.1} parent=5 // pred_region
        %s796 = ssub.s32 %s74, 1
        // Predicated region
        $region13: #{tpu_custom_call.1} parent=11 // pred_check
          %p797 = pneg %p147
        $region14: #{tpu_custom_call.1} parent=11 // pred_check_branch
          %799 = sbr.rel (%p797) target = $region16
        $region15: #{tpu_custom_call.1} parent=11 // pred_region
          _
        $region16: #{tpu_custom_call.1} parent=11 // pred_fallthru
          _
        // Predicated region
        $region17: #{tpu_custom_call.1} parent=11 // pred_check
          %p800 = pneg %p168
        $region18: #{tpu_custom_call.1} parent=11 // pred_check_branch
          %802 = sbr.rel (%p800) target = $region20
        $region19: #{tpu_custom_call.1} parent=11 // pred_region
          _
        $region20: #{tpu_custom_call.1} parent=11 // pred_fallthru
          _
        // Predicated region
        $region21: #{tpu_custom_call.1} parent=11 // pred_check
          %p803 = pneg %p189
        $region22: #{tpu_custom_call.1} parent=11 // pred_check_branch
          %805 = sbr.rel (%p803) target = $region24
        $region23: #{tpu_custom_call.1} parent=11 // pred_region
          _
        $region24: #{tpu_custom_call.1} parent=11 // pred_fallthru
          _
        // Predicated region
        $region25: #{tpu_custom_call.1} parent=11 // pred_check
          %p806 = pneg %p210
        $region26: #{tpu_custom_call.1} parent=11 // pred_check_branch
          %808 = sbr.rel (%p806) target = $region28
        $region27: #{tpu_custom_call.1} parent=11 // pred_region
          _
        $region28: #{tpu_custom_call.1} parent=11 // pred_fallthru
          _
        // Predicated region
        $region29: #{tpu_custom_call.1} parent=11 // pred_check
          %p809 = pneg %p231
        $region30: #{tpu_custom_call.1} parent=11 // pred_check_branch
          %811 = sbr.rel (%p809) target = $region32
        $region31: #{tpu_custom_call.1} parent=11 // pred_region
          _
        $region32: #{tpu_custom_call.1} parent=11 // pred_fallthru
          _
        // Predicated region
        $region33: #{tpu_custom_call.1} parent=11 // pred_check
          %p812 = pneg %p252
        $region34: #{tpu_custom_call.1} parent=11 // pred_check_branch
          %814 = sbr.rel (%p812) target = $region36
        $region35: #{tpu_custom_call.1} parent=11 // pred_region
          _
        $region36: #{tpu_custom_call.1} parent=11 // pred_fallthru
          _
        // Predicated region
        $region37: #{tpu_custom_call.1} parent=11 // pred_check
          %p815 = pneg %p273
        $region38: #{tpu_custom_call.1} parent=11 // pred_check_branch
          %817 = sbr.rel (%p815) target = $region40
        $region39: #{tpu_custom_call.1} parent=11 // pred_region
          _
        $region40: #{tpu_custom_call.1} parent=11 // pred_fallthru
          _
        // Predicated region
        $region41: #{tpu_custom_call.1} parent=11 // pred_check
          %p818 = pneg %p294
        $region42: #{tpu_custom_call.1} parent=11 // pred_check_branch
          %820 = sbr.rel (%p818) target = $region44
        $region43: #{tpu_custom_call.1} parent=11 // pred_region
          _
        $region44: #{tpu_custom_call.1} parent=11 // pred_fallthru
          _
        // Predicated region
        $region45: #{tpu_custom_call.1} parent=11 // pred_check
          %p821 = pneg %p315
        $region46: #{tpu_custom_call.1} parent=11 // pred_check_branch
          %823 = sbr.rel (%p821) target = $region48
        $region47: #{tpu_custom_call.1} parent=11 // pred_region
          _
        $region48: #{tpu_custom_call.1} parent=11 // pred_fallthru
          _
        // Predicated region
        $region49: #{tpu_custom_call.1} parent=11 // pred_check
          %p824 = pneg %p336
        $region50: #{tpu_custom_call.1} parent=11 // pred_check_branch
          %826 = sbr.rel (%p824) target = $region52
        $region51: #{tpu_custom_call.1} parent=11 // pred_region
          _
        $region52: #{tpu_custom_call.1} parent=11 // pred_fallthru
          _
        // Predicated region
        $region53: #{tpu_custom_call.1} parent=11 // pred_check
          %p827 = pneg %p357
        $region54: #{tpu_custom_call.1} parent=11 // pred_check_branch
          %829 = sbr.rel (%p827) target = $region56
        $region55: #{tpu_custom_call.1} parent=11 // pred_region
          _
        $region56: #{tpu_custom_call.1} parent=11 // pred_fallthru
          _
        // Predicated region
        $region57: #{tpu_custom_call.1} parent=11 // pred_check
          %p830 = pneg %p378
        $region58: #{tpu_custom_call.1} parent=11 // pred_check_branch
          %832 = sbr.rel (%p830) target = $region60
        $region59: #{tpu_custom_call.1} parent=11 // pred_region
          _
        $region60: #{tpu_custom_call.1} parent=11 // pred_fallthru
          _
        // Predicated region
        $region61: #{tpu_custom_call.1} parent=11 // pred_check
          %p833 = pneg %p399
        $region62: #{tpu_custom_call.1} parent=11 // pred_check_branch
          %835 = sbr.rel (%p833) target = $region64
        $region63: #{tpu_custom_call.1} parent=11 // pred_region
          _
        $region64: #{tpu_custom_call.1} parent=11 // pred_fallthru
          _
        // Predicated region
        $region65: #{tpu_custom_call.1} parent=11 // pred_check
          %p836 = pneg %p420
        $region66: #{tpu_custom_call.1} parent=11 // pred_check_branch
          %838 = sbr.rel (%p836) target = $region68
        $region67: #{tpu_custom_call.1} parent=11 // pred_region
          _
        $region68: #{tpu_custom_call.1} parent=11 // pred_fallthru
          _
        // Predicated region
        $region69: #{tpu_custom_call.1} parent=11 // pred_check
          %p839 = pneg %p441
        $region70: #{tpu_custom_call.1} parent=11 // pred_check_branch
          %841 = sbr.rel (%p839) target = $region72
        $region71: #{tpu_custom_call.1} parent=11 // pred_region
          _
        $region72: #{tpu_custom_call.1} parent=11 // pred_fallthru
          _
        // Predicated region
        $region73: #{tpu_custom_call.1} parent=11 // pred_check
          %p842 = pneg %p462
        $region74: #{tpu_custom_call.1} parent=11 // pred_check_branch
          %844 = sbr.rel (%p842) target = $region76
        $region75: #{tpu_custom_call.1} parent=11 // pred_region
          _
        $region76: #{tpu_custom_call.1} parent=11 // pred_fallthru
          _
        // Predicated region
        $region77: #{tpu_custom_call.1} parent=11 // pred_check
          %p845 = pneg %p483
        $region78: #{tpu_custom_call.1} parent=11 // pred_check_branch
          %847 = sbr.rel (%p845) target = $region80
        $region79: #{tpu_custom_call.1} parent=11 // pred_region
          _
        $region80: #{tpu_custom_call.1} parent=11 // pred_fallthru
          _
        // Predicated region
        $region81: #{tpu_custom_call.1} parent=11 // pred_check
          %p848 = pneg %p504
        $region82: #{tpu_custom_call.1} parent=11 // pred_check_branch
          %850 = sbr.rel (%p848) target = $region84
        $region83: #{tpu_custom_call.1} parent=11 // pred_region
          _
        $region84: #{tpu_custom_call.1} parent=11 // pred_fallthru
          _
        // Predicated region
        $region85: #{tpu_custom_call.1} parent=11 // pred_check
          %p851 = pneg %p525
        $region86: #{tpu_custom_call.1} parent=11 // pred_check_branch
          %853 = sbr.rel (%p851) target = $region88
        $region87: #{tpu_custom_call.1} parent=11 // pred_region
          _
        $region88: #{tpu_custom_call.1} parent=11 // pred_fallthru
          _
        // Predicated region
        $region89: #{tpu_custom_call.1} parent=11 // pred_check
          %p854 = pneg %p546
        $region90: #{tpu_custom_call.1} parent=11 // pred_check_branch
          %856 = sbr.rel (%p854) target = $region92
        $region91: #{tpu_custom_call.1} parent=11 // pred_region
          _
        $region92: #{tpu_custom_call.1} parent=11 // pred_fallthru
          _
        // Predicated region
        $region93: #{tpu_custom_call.1} parent=11 // pred_check
          %p857 = pneg %p567
        $region94: #{tpu_custom_call.1} parent=11 // pred_check_branch
          %859 = sbr.rel (%p857) target = $region96
        $region95: #{tpu_custom_call.1} parent=11 // pred_region
          _
        $region96: #{tpu_custom_call.1} parent=11 // pred_fallthru
          _
        // Predicated region
        $region97: #{tpu_custom_call.1} parent=11 // pred_check
          %p860 = pneg %p588
        $region98: #{tpu_custom_call.1} parent=11 // pred_check_branch
          %862 = sbr.rel (%p860) target = $region100
        $region99: #{tpu_custom_call.1} parent=11 // pred_region
          _
        $region100: #{tpu_custom_call.1} parent=11 // pred_fallthru
          _
        // Predicated region
        $region101: #{tpu_custom_call.1} parent=11 // pred_check
          %p863 = pneg %p609
        $region102: #{tpu_custom_call.1} parent=11 // pred_check_branch
          %865 = sbr.rel (%p863) target = $region104
        $region103: #{tpu_custom_call.1} parent=11 // pred_region
          _
        $region104: #{tpu_custom_call.1} parent=11 // pred_fallthru
          _
        // Predicated region
        $region105: #{tpu_custom_call.1} parent=11 // pred_check
          %p866 = pneg %p630
        $region106: #{tpu_custom_call.1} parent=11 // pred_check_branch
          %868 = sbr.rel (%p866) target = $region108
        $region107: #{tpu_custom_call.1} parent=11 // pred_region
          _
        $region108: #{tpu_custom_call.1} parent=11 // pred_fallthru
          _
        // Predicated region
        $region109: #{tpu_custom_call.1} parent=11 // pred_check
          %p869 = pneg %p651
        $region110: #{tpu_custom_call.1} parent=11 // pred_check_branch
          %871 = sbr.rel (%p869) target = $region112
        $region111: #{tpu_custom_call.1} parent=11 // pred_region
          _
        $region112: #{tpu_custom_call.1} parent=11 // pred_fallthru
          _
        // Predicated region
        $region113: #{tpu_custom_call.1} parent=11 // pred_check
          %p872 = pneg %p672
        $region114: #{tpu_custom_call.1} parent=11 // pred_check_branch
          %874 = sbr.rel (%p872) target = $region116
        $region115: #{tpu_custom_call.1} parent=11 // pred_region
          _
        $region116: #{tpu_custom_call.1} parent=11 // pred_fallthru
          _
        // Predicated region
        $region117: #{tpu_custom_call.1} parent=11 // pred_check
          %p875 = pneg %p693
        $region118: #{tpu_custom_call.1} parent=11 // pred_check_branch
          %877 = sbr.rel (%p875) target = $region120
        $region119: #{tpu_custom_call.1} parent=11 // pred_region
          _
        $region120: #{tpu_custom_call.1} parent=11 // pred_fallthru
          _
        // Predicated region
        $region121: #{tpu_custom_call.1} parent=11 // pred_check
          %p878 = pneg %p714
        $region122: #{tpu_custom_call.1} parent=11 // pred_check_branch
          %880 = sbr.rel (%p878) target = $region124
        $region123: #{tpu_custom_call.1} parent=11 // pred_region
          _
        $region124: #{tpu_custom_call.1} parent=11 // pred_fallthru
          _
        // Predicated region
        $region125: #{tpu_custom_call.1} parent=11 // pred_check
          %p881 = pneg %p735
        $region126: #{tpu_custom_call.1} parent=11 // pred_check_branch
          %883 = sbr.rel (%p881) target = $region128
        $region127: #{tpu_custom_call.1} parent=11 // pred_region
          _
        $region128: #{tpu_custom_call.1} parent=11 // pred_fallthru
          _
        // Predicated region
        $region129: #{tpu_custom_call.1} parent=11 // pred_check
          %p884 = pneg %p756
        $region130: #{tpu_custom_call.1} parent=11 // pred_check_branch
          %886 = sbr.rel (%p884) target = $region132
        $region131: #{tpu_custom_call.1} parent=11 // pred_region
          _
        $region132: #{tpu_custom_call.1} parent=11 // pred_fallthru
          _
      $region12: #{tpu_custom_call.1} parent=5 // pred_fallthru
        _
      %p887 = scmp.lt.s32.totalorder %s74, 2
      // Predicated region
      $region133: #{tpu_custom_call.1} parent=5 // pred_check
        %p888 = pneg %p887
      $region134: #{tpu_custom_call.1} parent=5 // pred_check_branch
        %890 = sbr.rel (%p888) target = $region136
      $region135: #{tpu_custom_call.1} parent=5 // pred_region
        // Predicated region
        $region137: #{tpu_custom_call.1} parent=135 // pred_check
          %p891 = pneg %p94
        $region138: #{tpu_custom_call.1} parent=135 // pred_check_branch
          %893 = sbr.rel (%p891) target = $region140
        $region139: #{tpu_custom_call.1} parent=135 // pred_region
          %p894 = scmp.lt.s32.totalorder %s74, 1
          %s895 = scalar_select %p894, %s74, 1
          %s896 = smul.addr %s895, 8
          %s897 = scalar_lea.vmem %s1, %s896
        $region140: #{tpu_custom_call.1} parent=135 // pred_fallthru
          _
        // Predicated region
        $region141: #{tpu_custom_call.1} parent=135 // pred_check
          %p898 = pneg %p120
        $region142: #{tpu_custom_call.1} parent=135 // pred_check_branch
          %900 = sbr.rel (%p898) target = $region144
        $region143: #{tpu_custom_call.1} parent=135 // pred_region
          %p901 = scmp.lt.s32.totalorder %s74, 1
          %s902 = scalar_select %p901, %s74, 1
          %s903 = smul.addr %s902, 2
          %s904 = smul.addr %s903, 8
          %s905 = scalar_lea.vmem %s3, %s904
        $region144: #{tpu_custom_call.1} parent=135 // pred_fallthru
          _
      $region136: #{tpu_custom_call.1} parent=5 // pred_fallthru
        _
      %p906 = scmp.le.s32.totalorder 1, %s74
      %p907 = scmp.lt.s32.totalorder %s74, 3
      %p908 = pnand %p906, %p907
      %p909 = pneg %p908
      // Predicated region
      $region145: #{tpu_custom_call.1} parent=5 // pred_check
        _
      $region146: #{tpu_custom_call.1} parent=5 // pred_check_branch
        %911 = sbr.rel (%p908) target = $region148
      $region147: #{tpu_custom_call.1} parent=5 // pred_region
        %s912 = ssub.s32 %s74, 1
        %p913 = scmp.lt.s32.totalorder %s79, 1
        %s914 = scalar_select %p913, %s79, 1
        %s915 = smul.addr %s914, 8
        %s916 = scalar_lea.vmem %s1, %s915
        %p917 = pneg %p100
        %p918 = pneg %p97
        %p919 = scmp.lt.s32.totalorder %s79, 1
        %s920 = scalar_select %p919, %s79, 1
        %s921 = smul.addr %s920, 2
        %s922 = smul.addr %s921, 8
        %s923 = scalar_lea.vmem %s3, %s922
        %p924 = pneg %p126
        %p925 = pneg %p123
        %p926 = pneg %p147
        %p927 = pneg %p144
        %p928 = pneg %p168
        %p929 = pneg %p165
        %p930 = pneg %p189
        %p931 = pneg %p186
        %p932 = pneg %p210
        %p933 = pneg %p207
        %p934 = pneg %p231
        %p935 = pneg %p228
        %p936 = pneg %p252
        %p937 = pneg %p249
        %p938 = pneg %p273
        %p939 = pneg %p270
        %p940 = pneg %p294
        %p941 = pneg %p291
        %p942 = pneg %p315
        %p943 = pneg %p312
        %p944 = pneg %p336
        %p945 = pneg %p333
        %p946 = pneg %p357
        %p947 = pneg %p354
        %p948 = pneg %p378
        %p949 = pneg %p375
        %p950 = pneg %p399
        %p951 = pneg %p396
        %p952 = pneg %p420
        %p953 = pneg %p417
        %p954 = pneg %p441
        %p955 = pneg %p438
        %p956 = pneg %p462
        %p957 = pneg %p459
        %p958 = pneg %p483
        %p959 = pneg %p480
        %p960 = pneg %p504
        %p961 = pneg %p501
        %p962 = pneg %p525
        %p963 = pneg %p522
        %p964 = pneg %p546
        %p965 = pneg %p543
        %p966 = pneg %p567
        %p967 = pneg %p564
        %p968 = pneg %p588
        %p969 = pneg %p585
        %p970 = pneg %p609
        %p971 = pneg %p606
        %p972 = pneg %p630
        %p973 = pneg %p627
        %p974 = pneg %p651
        %p975 = pneg %p648
        %p976 = pneg %p672
        %p977 = pneg %p669
        %p978 = pneg %p693
        %p979 = pneg %p690
        %p980 = pneg %p714
        %p981 = pneg %p711
        %p982 = pneg %p735
        %p983 = pneg %p732
        %p984 = pneg %p756
        %p985 = pneg %p753
        %p986 = pneg %p782
        %p987 = pneg %p779
        %s988 = sand.u32 %s769, 1
        %s989 = scalar_lea.sflag [#allocation3], %s988
        %s990 = sand.u32 %s769, 1
        %s991 = smul.addr %s990, 8
        %s992 = scalar_lea.vmem [#allocation2], %s991
        %p993 = scmp.lt.s32.totalorder %s79, 1
        %s994 = scalar_select %p993, %s79, 1
        %s995 = smul.addr %s994, 8
        %s996 = scalar_lea.vmem %s1, %s995
        %p997 = scmp.lt.s32.totalorder %s79, 1
        %s998 = scalar_select %p997, %s79, 1
        %s999 = smul.addr %s998, 2
        %s1000 = smul.addr %s999, 8
        %s1001 = scalar_lea.vmem %s3, %s1000
        %v1002 = vld [vmem:[%s13] sm:$0xff]
        %v1003 = vld [vmem:[%s13 + $0x8] sm:$0xff]
        %v1004 = vld [vmem:[%s13 + $0x10] sm:$0xff]
        %v1005 = vld [vmem:[%s13 + $0x18] sm:$0xff]
        %v1006 = vld [vmem:[%s13 + $0x20] sm:$0xff]
        %v1007 = vld [vmem:[%s13 + $0x28] sm:$0xff]
        %v1008 = vld [vmem:[%s13 + $0x30] sm:$0xff]
        %v1009 = vld [vmem:[%s13 + $0x38] sm:$0xff]
        %v1010 = vld [vmem:[%s13 + $0x40] sm:$0xff]
        %v1011 = vld [vmem:[%s13 + $0x48] sm:$0xff]
        %v1012 = vld [vmem:[%s13 + $0x50] sm:$0xff]
        %v1013 = vld [vmem:[%s13 + $0x58] sm:$0xff]
        %v1014 = vld [vmem:[%s13 + $0x60] sm:$0xff]
        %v1015 = vld [vmem:[%s13 + $0x68] sm:$0xff]
        %v1016 = vld [vmem:[%s13 + $0x70] sm:$0xff]
        %v1017 = vld [vmem:[%s13 + $0x78] sm:$0xff]
        %v1018 = vld [vmem:[%s15] sm:$0xff]
        %v1019 = vld [vmem:[%s15 + $0x8] sm:$0xff]
        %v1020 = vld [vmem:[%s15 + $0x10] sm:$0xff]
        %v1021 = vld [vmem:[%s15 + $0x18] sm:$0xff]
        %v1022 = vld [vmem:[%s15 + $0x20] sm:$0xff]
        %v1023 = vld [vmem:[%s15 + $0x28] sm:$0xff]
        %v1024 = vld [vmem:[%s15 + $0x30] sm:$0xff]
        %v1025 = vld [vmem:[%s15 + $0x38] sm:$0xff]
        %v1026 = vld [vmem:[%s15 + $0x40] sm:$0xff]
        %v1027 = vld [vmem:[%s15 + $0x48] sm:$0xff]
        %v1028 = vld [vmem:[%s15 + $0x50] sm:$0xff]
        %v1029 = vld [vmem:[%s15 + $0x58] sm:$0xff]
        %v1030 = vld [vmem:[%s15 + $0x60] sm:$0xff]
        %v1031 = vld [vmem:[%s15 + $0x68] sm:$0xff]
        %v1032 = vld [vmem:[%s15 + $0x70] sm:$0xff]
        %v1033 = vld [vmem:[%s15 + $0x78] sm:$0xff]
        %v1034 = vld [vmem:[%s17] sm:$0xff]
        %v1035 = vld [vmem:[%s17 + $0x8] sm:$0xff]
        %v1036 = vld [vmem:[%s17 + $0x10] sm:$0xff]
        %v1037 = vld [vmem:[%s17 + $0x18] sm:$0xff]
        %v1038 = vld [vmem:[%s17 + $0x20] sm:$0xff]
        %v1039 = vld [vmem:[%s17 + $0x28] sm:$0xff]
        %v1040 = vld [vmem:[%s17 + $0x30] sm:$0xff]
        %v1041 = vld [vmem:[%s17 + $0x38] sm:$0xff]
        %v1042 = vld [vmem:[%s17 + $0x40] sm:$0xff]
        %v1043 = vld [vmem:[%s17 + $0x48] sm:$0xff]
        %v1044 = vld [vmem:[%s17 + $0x50] sm:$0xff]
        %v1045 = vld [vmem:[%s17 + $0x58] sm:$0xff]
        %v1046 = vld [vmem:[%s17 + $0x60] sm:$0xff]
        %v1047 = vld [vmem:[%s17 + $0x68] sm:$0xff]
        %v1048 = vld [vmem:[%s17 + $0x70] sm:$0xff]
        %v1049 = vld [vmem:[%s17 + $0x78] sm:$0xff]
        %v1050 = vld [vmem:[%s19] sm:$0xff]
        %v1051 = vld [vmem:[%s19 + $0x8] sm:$0xff]
        %v1052 = vld [vmem:[%s19 + $0x10] sm:$0xff]
        %v1053 = vld [vmem:[%s19 + $0x18] sm:$0xff]
        %v1054 = vld [vmem:[%s21] sm:$0x1]
        %v1055 = vld [vmem:[%s23] sm:$0x1]
        %v1056 = vld [vmem:[%s25] sm:$0x1]
        %v1057 = vld [vmem:[%s27] sm:$0xff]
        %v1058 = vld [vmem:[%s27 + $0x8] sm:$0xff]
        %v1059 = vld [vmem:[%s27 + $0x10] sm:$0xff]
        %v1060 = vld [vmem:[%s27 + $0x18] sm:$0xff]
        %v1061 = vld [vmem:[%s29] sm:$0x1]
        %v1062 = vld [vmem:[%s31] sm:$0xff]
        %v1063 = vld [vmem:[%s31 + $0x8] sm:$0xff]
        %v1064 = vld [vmem:[%s31 + $0x10] sm:$0xff]
        %v1065 = vld [vmem:[%s31 + $0x18] sm:$0xff]
        %v1066 = vld [vmem:[%s31 + $0x20] sm:$0xff]
        %v1067 = vld [vmem:[%s31 + $0x28] sm:$0xff]
        %v1068 = vld [vmem:[%s31 + $0x30] sm:$0xff]
        %v1069 = vld [vmem:[%s31 + $0x38] sm:$0xff]
        %v1070 = vld [vmem:[%s33] sm:$0x1]
        %v1071 = vld [vmem:[%s35] sm:$0x1]
        %v1072 = vld [vmem:[%s37] sm:$0x1]
        %v1073 = vld [vmem:[%s39] sm:$0xff]
        %v1074 = vld [vmem:[%s39 + $0x8] sm:$0xff]
        %v1075 = vld [vmem:[%s39 + $0x10] sm:$0xff]
        %v1076 = vld [vmem:[%s39 + $0x18] sm:$0xff]
        %v1077 = vld [vmem:[%s39 + $0x20] sm:$0xff]
        %v1078 = vld [vmem:[%s39 + $0x28] sm:$0xff]
        %v1079 = vld [vmem:[%s39 + $0x30] sm:$0xff]
        %v1080 = vld [vmem:[%s39 + $0x38] sm:$0xff]
        %v1081 = vld [vmem:[%s39 + $0x40] sm:$0xff]
        %v1082 = vld [vmem:[%s39 + $0x48] sm:$0xff]
        %v1083 = vld [vmem:[%s39 + $0x50] sm:$0xff]
        %v1084 = vld [vmem:[%s39 + $0x58] sm:$0xff]
        %v1085 = vld [vmem:[%s39 + $0x60] sm:$0xff]
        %v1086 = vld [vmem:[%s39 + $0x68] sm:$0xff]
        %v1087 = vld [vmem:[%s39 + $0x70] sm:$0xff]
        %v1088 = vld [vmem:[%s39 + $0x78] sm:$0xff]
        %v1089 = vld [vmem:[%s41] sm:$0xff]
        %v1090 = vld [vmem:[%s41 + $0x8] sm:$0xff]
        %v1091 = vld [vmem:[%s41 + $0x10] sm:$0xff]
        %v1092 = vld [vmem:[%s41 + $0x18] sm:$0xff]
        %v1093 = vld [vmem:[%s41 + $0x20] sm:$0xff]
        %v1094 = vld [vmem:[%s41 + $0x28] sm:$0xff]
        %v1095 = vld [vmem:[%s41 + $0x30] sm:$0xff]
        %v1096 = vld [vmem:[%s41 + $0x38] sm:$0xff]
        %v1097 = vld [vmem:[%s41 + $0x40] sm:$0xff]
        %v1098 = vld [vmem:[%s41 + $0x48] sm:$0xff]
        %v1099 = vld [vmem:[%s41 + $0x50] sm:$0xff]
        %v1100 = vld [vmem:[%s41 + $0x58] sm:$0xff]
        %v1101 = vld [vmem:[%s41 + $0x60] sm:$0xff]
        %v1102 = vld [vmem:[%s41 + $0x68] sm:$0xff]
        %v1103 = vld [vmem:[%s41 + $0x70] sm:$0xff]
        %v1104 = vld [vmem:[%s41 + $0x78] sm:$0xff]
        %v1105 = vld [vmem:[%s43] sm:$0xff]
        %v1106 = vld [vmem:[%s43 + $0x8] sm:$0xff]
        %v1107 = vld [vmem:[%s43 + $0x10] sm:$0xff]
        %v1108 = vld [vmem:[%s43 + $0x18] sm:$0xff]
        %v1109 = vld [vmem:[%s43 + $0x20] sm:$0xff]
        %v1110 = vld [vmem:[%s43 + $0x28] sm:$0xff]
        %v1111 = vld [vmem:[%s43 + $0x30] sm:$0xff]
        %v1112 = vld [vmem:[%s43 + $0x38] sm:$0xff]
        %v1113 = vld [vmem:[%s43 + $0x40] sm:$0xff]
        %v1114 = vld [vmem:[%s43 + $0x48] sm:$0xff]
        %v1115 = vld [vmem:[%s43 + $0x50] sm:$0xff]
        %v1116 = vld [vmem:[%s43 + $0x58] sm:$0xff]
        %v1117 = vld [vmem:[%s43 + $0x60] sm:$0xff]
        %v1118 = vld [vmem:[%s43 + $0x68] sm:$0xff]
        %v1119 = vld [vmem:[%s43 + $0x70] sm:$0xff]
        %v1120 = vld [vmem:[%s43 + $0x78] sm:$0xff]
        %v1121 = vld [vmem:[%s45] sm:$0xff]
        %v1122 = vld [vmem:[%s45 + $0x8] sm:$0xff]
        %v1123 = vld [vmem:[%s45 + $0x10] sm:$0xff]
        %v1124 = vld [vmem:[%s45 + $0x18] sm:$0xff]
        %v1125 = vld [vmem:[%s47] sm:$0x1]
        %v1126 = vld [vmem:[%s49] sm:$0x1]
        %v1127 = vld [vmem:[%s51] sm:$0x1]
        %v1128 = vld [vmem:[%s53] sm:$0xff]
        %v1129 = vld [vmem:[%s53 + $0x8] sm:$0xff]
        %v1130 = vld [vmem:[%s53 + $0x10] sm:$0xff]
        %v1131 = vld [vmem:[%s53 + $0x18] sm:$0xff]
        %v1132 = vld [vmem:[%s55] sm:$0x1]
        %v1133 = vld [vmem:[%s57] sm:$0xff]
        %v1134 = vld [vmem:[%s57 + $0x8] sm:$0xff]
        %v1135 = vld [vmem:[%s57 + $0x10] sm:$0xff]
        %v1136 = vld [vmem:[%s57 + $0x18] sm:$0xff]
        %v1137 = vld [vmem:[%s57 + $0x20] sm:$0xff]
        %v1138 = vld [vmem:[%s57 + $0x28] sm:$0xff]
        %v1139 = vld [vmem:[%s57 + $0x30] sm:$0xff]
        %v1140 = vld [vmem:[%s57 + $0x38] sm:$0xff]
        %v1141 = vld [vmem:[%s59] sm:$0x1]
        %v1142 = vld [vmem:[%s61] sm:$0x1]
        %v1143 = vld [vmem:[%s63] sm:$0x1]
        %v1144 = vld [vmem:[%s996] sm:$0xff]
        %v1145 = vld [vmem:[%s1001] sm:$0xff]
        %v1146 = vld [vmem:[%s1001 + $0x8] sm:$0xff]
        %v1147 = vld [vmem:[%s7] sm:$0xff]
        %v1148 = vld [vmem:[%s7 + $0x8] sm:$0xff]
        %v1149 = vld [vmem:[%s9] sm:$0x1]
        %v1151 = vlaneseq
        %v1152 = vshrl.u32 %v1151, 7
        %v1153 = vsub.s32 0, %v1152
        %v1154 = vrot.slane %v1149, %v1153
        %vm1156 = vcmask 130048
        %v1158 = vsel %vm1156, %v1144, 0
        %1160 = vmatprep.subr.mxu0 0.0
        %1161 = vmatpush1.msra.mxu0 %v1147
        %1162 = vmatprep.subr.mxu0 0.0
        %1163 = vmatpush1.msra.mxu0 %v1148
        %1164 = vmatprep.subr.mxu0 0.0
        %1165 = vmatpush1.msra.mxu0 0.0
        %1166 = vmatprep.subr.mxu0 0.0
        %1167 = vmatpush1.msra.mxu0 0.0
        %1168 = vmatprep.subr.mxu0 0.0
        %1169 = vmatpush1.msra.mxu0 0.0
        %1170 = vmatprep.subr.mxu0 0.0
        %1171 = vmatpush1.msra.mxu0 0.0
        %1172 = vmatprep.subr.mxu0 0.0
        %1173 = vmatpush1.msra.mxu0 0.0
        %1174 = vmatprep.subr.mxu0 0.0
        %1175 = vmatpush1.msra.mxu0 0.0
        %1176 = vmatprep.subr.mxu0 0.0
        %1177 = vmatpush1.msra.mxu0 0.0
        %1178 = vmatprep.subr.mxu0 0.0
        %1179 = vmatpush1.msra.mxu0 0.0
        %1180 = vmatprep.subr.mxu0 0.0
        %1181 = vmatpush1.msra.mxu0 0.0
        %1182 = vmatprep.subr.mxu0 0.0
        %1183 = vmatpush1.msra.mxu0 0.0
        %1184 = vmatprep.subr.mxu0 0.0
        %1185 = vmatpush1.msra.mxu0 0.0
        %1186 = vmatprep.subr.mxu0 0.0
        %1187 = vmatpush1.msra.mxu0 0.0
        %1188 = vmatprep.subr.mxu0 0.0
        %1189 = vmatpush1.msra.mxu0 0.0
        %1190 = vmatprep.subr.mxu0 0.0
        %1191 = vmatpush1.msra.mxu0 0.0
        %1192 = vmatprep.subr.mxu0 0.0
        %1193 = vmatpush1.msra.mxu0 0.0
        %1194 = vmatprep.subr.mxu0 0.0
        %1195 = vmatpush1.msra.mxu0 0.0
        %1196 = vmatprep.subr.mxu0 0.0
        %1197 = vmatpush1.msra.mxu0 0.0
        %1198 = vmatprep.subr.mxu0 0.0
        %1199 = vmatpush1.msra.mxu0 0.0
        %1200 = vmatprep.subr.mxu0 0.0
        %1201 = vmatpush1.msra.mxu0 0.0
        %1202 = vmatprep.subr.mxu0 0.0
        %1203 = vmatpush1.msra.mxu0 0.0
        %1204 = vmatprep.subr.mxu0 0.0
        %1205 = vmatpush1.msra.mxu0 0.0
        %1206 = vmatprep.subr.mxu0 0.0
        %1207 = vmatpush1.msra.mxu0 0.0
        %1208 = vmatprep.subr.mxu0 0.0
        %1209 = vmatpush1.msra.mxu0 0.0
        %1210 = vmatprep.subr.mxu0 0.0
        %1211 = vmatpush1.msra.mxu0 0.0
        %1212 = vmatprep.subr.mxu0 0.0
        %1213 = vmatpush1.msra.mxu0 0.0
        %1214 = vmatprep.subr.mxu0 0.0
        %1215 = vmatpush1.msra.mxu0 0.0
        %1216 = vmatprep.subr.mxu0 0.0
        %1217 = vmatpush1.msra.mxu0 0.0
        %1218 = vmatprep.subr.mxu0 0.0
        %1219 = vmatpush1.msra.mxu0 0.0
        %1220 = vmatprep.subr.mxu0 0.0
        %1221 = vmatpush1.msra.mxu0 0.0
        %1222 = vmatprep.subr.mxu0 0.0
        %1223 = vmatpush1.msra.mxu0 0.0
        %1224 = vmatprep.mubr.f32.mxu0 0.0
        %1225 = vmatmul.mubr.f32.gmra.mrb[0].mxu0 %v1158
        %v1226 = vpop.f32.mrb[0].mxu0
        %v1227 = vadd.f32 %v1154, %v1226
        %v1228 = vpop.f32.mrb[0].mxu0
        %1229 = vdwg.mxu0
        %v1230 = vld [vmem:[%s11] sm:$0xff]
        %v1231 = vadd.f32 %v1227, %v1230
        %vm1232 = vcmask 261120
        %v1234 = vsel %vm1232, %v1231, 0
        %1236 = vmatprep.subr.mxu0 0.0
        %1237 = vmatpush1.msra.mxu0 %v1002
        %1238 = vmatprep.subr.mxu0 0.0
        %1239 = vmatpush1.msra.mxu0 %v1003
        %1240 = vmatprep.subr.mxu0 0.0
        %1241 = vmatpush1.msra.mxu0 %v1004
        %1242 = vmatprep.subr.mxu0 0.0
        %1243 = vmatpush1.msra.mxu0 %v1005
        %1244 = vmatprep.subr.mxu0 0.0
        %1245 = vmatpush1.msra.mxu0 0.0
        %1246 = vmatprep.subr.mxu0 0.0
        %1247 = vmatpush1.msra.mxu0 0.0
        %1248 = vmatprep.subr.mxu0 0.0
        %1249 = vmatpush1.msra.mxu0 0.0
        %1250 = vmatprep.subr.mxu0 0.0
        %1251 = vmatpush1.msra.mxu0 0.0
        %1252 = vmatprep.subr.mxu0 0.0
        %1253 = vmatpush1.msra.mxu0 0.0
        %1254 = vmatprep.subr.mxu0 0.0
        %1255 = vmatpush1.msra.mxu0 0.0
        %1256 = vmatprep.subr.mxu0 0.0
        %1257 = vmatpush1.msra.mxu0 0.0
        %1258 = vmatprep.subr.mxu0 0.0
        %1259 = vmatpush1.msra.mxu0 0.0
        %1260 = vmatprep.subr.mxu0 0.0
        %1261 = vmatpush1.msra.mxu0 0.0
        %1262 = vmatprep.subr.mxu0 0.0
        %1263 = vmatpush1.msra.mxu0 0.0
        %1264 = vmatprep.subr.mxu0 0.0
        %1265 = vmatpush1.msra.mxu0 0.0
        %1266 = vmatprep.subr.mxu0 0.0
        %1267 = vmatpush1.msra.mxu0 0.0
        %1268 = vmatprep.subr.mxu0 0.0
        %1269 = vmatpush1.msra.mxu0 0.0
        %1270 = vmatprep.subr.mxu0 0.0
        %1271 = vmatpush1.msra.mxu0 0.0
        %1272 = vmatprep.subr.mxu0 0.0
        %1273 = vmatpush1.msra.mxu0 0.0
        %1274 = vmatprep.subr.mxu0 0.0
        %1275 = vmatpush1.msra.mxu0 0.0
        %1276 = vmatprep.subr.mxu0 0.0
        %1277 = vmatpush1.msra.mxu0 0.0
        %1278 = vmatprep.subr.mxu0 0.0
        %1279 = vmatpush1.msra.mxu0 0.0
        %1280 = vmatprep.subr.mxu0 0.0
        %1281 = vmatpush1.msra.mxu0 0.0
        %1282 = vmatprep.subr.mxu0 0.0
        %1283 = vmatpush1.msra.mxu0 0.0
        %1284 = vmatprep.subr.mxu0 0.0
        %1285 = vmatpush1.msra.mxu0 0.0
        %1286 = vmatprep.subr.mxu0 0.0
        %1287 = vmatpush1.msra.mxu0 0.0
        %1288 = vmatprep.subr.mxu0 0.0
        %1289 = vmatpush1.msra.mxu0 0.0
        %1290 = vmatprep.subr.mxu0 0.0
        %1291 = vmatpush1.msra.mxu0 0.0
        %1292 = vmatprep.subr.mxu0 0.0
        %1293 = vmatpush1.msra.mxu0 0.0
        %1294 = vmatprep.subr.mxu0 0.0
        %1295 = vmatpush1.msra.mxu0 0.0
        %1296 = vmatprep.subr.mxu0 0.0
        %1297 = vmatpush1.msra.mxu0 0.0
        %1298 = vmatprep.subr.mxu0 0.0
        %1299 = vmatpush1.msra.mxu0 0.0
        %1300 = vmatprep.mubr.f32.mxu0 0.0
        %1301 = vmatmul.mubr.f32.gmra.mrb[0].mxu0 %v1234
        %v1302 = vpop.f32.mrb[0].mxu0
        %v1303 = vadd.f32 0.0, %v1302
        %v1304 = vpop.f32.mrb[0].mxu0
        %1305 = vdwg.mxu0
        %1306 = vmatprep.subr.mxu0 0.0
        %1307 = vmatpush1.msra.mxu0 %v1006
        %1308 = vmatprep.subr.mxu0 0.0
        %1309 = vmatpush1.msra.mxu0 %v1007
        %1310 = vmatprep.subr.mxu0 0.0
        %1311 = vmatpush1.msra.mxu0 %v1008
        %1312 = vmatprep.subr.mxu0 0.0
        %1313 = vmatpush1.msra.mxu0 %v1009
        %1314 = vmatprep.subr.mxu0 0.0
        %1315 = vmatpush1.msra.mxu0 0.0
        %1316 = vmatprep.subr.mxu0 0.0
        %1317 = vmatpush1.msra.mxu0 0.0
        %1318 = vmatprep.subr.mxu0 0.0
        %1319 = vmatpush1.msra.mxu0 0.0
        %1320 = vmatprep.subr.mxu0 0.0
        %1321 = vmatpush1.msra.mxu0 0.0
        %1322 = vmatprep.subr.mxu0 0.0
        %1323 = vmatpush1.msra.mxu0 0.0
        %1324 = vmatprep.subr.mxu0 0.0
        %1325 = vmatpush1.msra.mxu0 0.0
        %1326 = vmatprep.subr.mxu0 0.0
        %1327 = vmatpush1.msra.mxu0 0.0
        %1328 = vmatprep.subr.mxu0 0.0
        %1329 = vmatpush1.msra.mxu0 0.0
        %1330 = vmatprep.subr.mxu0 0.0
        %1331 = vmatpush1.msra.mxu0 0.0
        %1332 = vmatprep.subr.mxu0 0.0
        %1333 = vmatpush1.msra.mxu0 0.0
        %1334 = vmatprep.subr.mxu0 0.0
        %1335 = vmatpush1.msra.mxu0 0.0
        %1336 = vmatprep.subr.mxu0 0.0
        %1337 = vmatpush1.msra.mxu0 0.0
        %1338 = vmatprep.subr.mxu0 0.0
        %1339 = vmatpush1.msra.mxu0 0.0
        %1340 = vmatprep.subr.mxu0 0.0
        %1341 = vmatpush1.msra.mxu0 0.0
        %1342 = vmatprep.subr.mxu0 0.0
        %1343 = vmatpush1.msra.mxu0 0.0
        %1344 = vmatprep.subr.mxu0 0.0
        %1345 = vmatpush1.msra.mxu0 0.0
        %1346 = vmatprep.subr.mxu0 0.0
        %1347 = vmatpush1.msra.mxu0 0.0
        %1348 = vmatprep.subr.mxu0 0.0
        %1349 = vmatpush1.msra.mxu0 0.0
        %1350 = vmatprep.subr.mxu0 0.0
        %1351 = vmatpush1.msra.mxu0 0.0
        %1352 = vmatprep.subr.mxu0 0.0
        %1353 = vmatpush1.msra.mxu0 0.0
        %1354 = vmatprep.subr.mxu0 0.0
        %1355 = vmatpush1.msra.mxu0 0.0
        %1356 = vmatprep.subr.mxu0 0.0
        %1357 = vmatpush1.msra.mxu0 0.0
        %1358 = vmatprep.subr.mxu0 0.0
        %1359 = vmatpush1.msra.mxu0 0.0
        %1360 = vmatprep.subr.mxu0 0.0
        %1361 = vmatpush1.msra.mxu0 0.0
        %1362 = vmatprep.subr.mxu0 0.0
        %1363 = vmatpush1.msra.mxu0 0.0
        %1364 = vmatprep.subr.mxu0 0.0
        %1365 = vmatpush1.msra.mxu0 0.0
        %1366 = vmatprep.subr.mxu0 0.0
        %1367 = vmatpush1.msra.mxu0 0.0
        %1368 = vmatprep.subr.mxu0 0.0
        %1369 = vmatpush1.msra.mxu0 0.0
        %1370 = vmatprep.mubr.f32.mxu0 0.0
        %1371 = vmatmul.mubr.f32.gmra.mrb[0].mxu0 %v1234
        %v1372 = vpop.f32.mrb[0].mxu0
        %v1373 = vadd.f32 0.0, %v1372
        %v1374 = vpop.f32.mrb[0].mxu0
        %1375 = vdwg.mxu0
        %1376 = vmatprep.subr.mxu0 0.0
        %1377 = vmatpush1.msra.mxu0 %v1010
        %1378 = vmatprep.subr.mxu0 0.0
        %1379 = vmatpush1.msra.mxu0 %v1011
        %1380 = vmatprep.subr.mxu0 0.0
        %1381 = vmatpush1.msra.mxu0 %v1012
        %1382 = vmatprep.subr.mxu0 0.0
        %1383 = vmatpush1.msra.mxu0 %v1013
        %1384 = vmatprep.subr.mxu0 0.0
        %1385 = vmatpush1.msra.mxu0 0.0
        %1386 = vmatprep.subr.mxu0 0.0
        %1387 = vmatpush1.msra.mxu0 0.0
        %1388 = vmatprep.subr.mxu0 0.0
        %1389 = vmatpush1.msra.mxu0 0.0
        %1390 = vmatprep.subr.mxu0 0.0
        %1391 = vmatpush1.msra.mxu0 0.0
        %1392 = vmatprep.subr.mxu0 0.0
        %1393 = vmatpush1.msra.mxu0 0.0
        %1394 = vmatprep.subr.mxu0 0.0
        %1395 = vmatpush1.msra.mxu0 0.0
        %1396 = vmatprep.subr.mxu0 0.0
        %1397 = vmatpush1.msra.mxu0 0.0
        %1398 = vmatprep.subr.mxu0 0.0
        %1399 = vmatpush1.msra.mxu0 0.0
        %1400 = vmatprep.subr.mxu0 0.0
        %1401 = vmatpush1.msra.mxu0 0.0
        %1402 = vmatprep.subr.mxu0 0.0
        %1403 = vmatpush1.msra.mxu0 0.0
        %1404 = vmatprep.subr.mxu0 0.0
        %1405 = vmatpush1.msra.mxu0 0.0
        %1406 = vmatprep.subr.mxu0 0.0
        %1407 = vmatpush1.msra.mxu0 0.0
        %1408 = vmatprep.subr.mxu0 0.0
        %1409 = vmatpush1.msra.mxu0 0.0
        %1410 = vmatprep.subr.mxu0 0.0
        %1411 = vmatpush1.msra.mxu0 0.0
        %1412 = vmatprep.subr.mxu0 0.0
        %1413 = vmatpush1.msra.mxu0 0.0
        %1414 = vmatprep.subr.mxu0 0.0
        %1415 = vmatpush1.msra.mxu0 0.0
        %1416 = vmatprep.subr.mxu0 0.0
        %1417 = vmatpush1.msra.mxu0 0.0
        %1418 = vmatprep.subr.mxu0 0.0
        %1419 = vmatpush1.msra.mxu0 0.0
        %1420 = vmatprep.subr.mxu0 0.0
        %1421 = vmatpush1.msra.mxu0 0.0
        %1422 = vmatprep.subr.mxu0 0.0
        %1423 = vmatpush1.msra.mxu0 0.0
        %1424 = vmatprep.subr.mxu0 0.0
        %1425 = vmatpush1.msra.mxu0 0.0
        %1426 = vmatprep.subr.mxu0 0.0
        %1427 = vmatpush1.msra.mxu0 0.0
        %1428 = vmatprep.subr.mxu0 0.0
        %1429 = vmatpush1.msra.mxu0 0.0
        %1430 = vmatprep.subr.mxu0 0.0
        %1431 = vmatpush1.msra.mxu0 0.0
        %1432 = vmatprep.subr.mxu0 0.0
        %1433 = vmatpush1.msra.mxu0 0.0
        %1434 = vmatprep.subr.mxu0 0.0
        %1435 = vmatpush1.msra.mxu0 0.0
        %1436 = vmatprep.subr.mxu0 0.0
        %1437 = vmatpush1.msra.mxu0 0.0
        %1438 = vmatprep.subr.mxu0 0.0
        %1439 = vmatpush1.msra.mxu0 0.0
        %1440 = vmatprep.mubr.f32.mxu0 0.0
        %1441 = vmatmul.mubr.f32.gmra.mrb[0].mxu0 %v1234
        %v1442 = vpop.f32.mrb[0].mxu0
        %v1443 = vadd.f32 0.0, %v1442
        %v1444 = vpop.f32.mrb[0].mxu0
        %1445 = vdwg.mxu0
        %1446 = vmatprep.subr.mxu0 0.0
        %1447 = vmatpush1.msra.mxu0 %v1014
        %1448 = vmatprep.subr.mxu0 0.0
        %1449 = vmatpush1.msra.mxu0 %v1015
        %1450 = vmatprep.subr.mxu0 0.0
        %1451 = vmatpush1.msra.mxu0 %v1016
        %1452 = vmatprep.subr.mxu0 0.0
        %1453 = vmatpush1.msra.mxu0 %v1017
        %1454 = vmatprep.subr.mxu0 0.0
        %1455 = vmatpush1.msra.mxu0 0.0
        %1456 = vmatprep.subr.mxu0 0.0
        %1457 = vmatpush1.msra.mxu0 0.0
        %1458 = vmatprep.subr.mxu0 0.0
        %1459 = vmatpush1.msra.mxu0 0.0
        %1460 = vmatprep.subr.mxu0 0.0
        %1461 = vmatpush1.msra.mxu0 0.0
        %1462 = vmatprep.subr.mxu0 0.0
        %1463 = vmatpush1.msra.mxu0 0.0
        %1464 = vmatprep.subr.mxu0 0.0
        %1465 = vmatpush1.msra.mxu0 0.0
        %1466 = vmatprep.subr.mxu0 0.0
        %1467 = vmatpush1.msra.mxu0 0.0
        %1468 = vmatprep.subr.mxu0 0.0
        %1469 = vmatpush1.msra.mxu0 0.0
        %1470 = vmatprep.subr.mxu0 0.0
        %1471 = vmatpush1.msra.mxu0 0.0
        %1472 = vmatprep.subr.mxu0 0.0
        %1473 = vmatpush1.msra.mxu0 0.0
        %1474 = vmatprep.subr.mxu0 0.0
        %1475 = vmatpush1.msra.mxu0 0.0
        %1476 = vmatprep.subr.mxu0 0.0
        %1477 = vmatpush1.msra.mxu0 0.0
        %1478 = vmatprep.subr.mxu0 0.0
        %1479 = vmatpush1.msra.mxu0 0.0
        %1480 = vmatprep.subr.mxu0 0.0
        %1481 = vmatpush1.msra.mxu0 0.0
        %1482 = vmatprep.subr.mxu0 0.0
        %1483 = vmatpush1.msra.mxu0 0.0
        %1484 = vmatprep.subr.mxu0 0.0
        %1485 = vmatpush1.msra.mxu0 0.0
        %1486 = vmatprep.subr.mxu0 0.0
        %1487 = vmatpush1.msra.mxu0 0.0
        %1488 = vmatprep.subr.mxu0 0.0
        %1489 = vmatpush1.msra.mxu0 0.0
        %1490 = vmatprep.subr.mxu0 0.0
        %1491 = vmatpush1.msra.mxu0 0.0
        %1492 = vmatprep.subr.mxu0 0.0
        %1493 = vmatpush1.msra.mxu0 0.0
        %1494 = vmatprep.subr.mxu0 0.0
        %1495 = vmatpush1.msra.mxu0 0.0
        %1496 = vmatprep.subr.mxu0 0.0
        %1497 = vmatpush1.msra.mxu0 0.0
        %1498 = vmatprep.subr.mxu0 0.0
        %1499 = vmatpush1.msra.mxu0 0.0
        %1500 = vmatprep.subr.mxu0 0.0
        %1501 = vmatpush1.msra.mxu0 0.0
        %1502 = vmatprep.subr.mxu0 0.0
        %1503 = vmatpush1.msra.mxu0 0.0
        %1504 = vmatprep.subr.mxu0 0.0
        %1505 = vmatpush1.msra.mxu0 0.0
        %1506 = vmatprep.subr.mxu0 0.0
        %1507 = vmatpush1.msra.mxu0 0.0
        %1508 = vmatprep.subr.mxu0 0.0
        %1509 = vmatpush1.msra.mxu0 0.0
        %1510 = vmatprep.mubr.f32.mxu0 0.0
        %1511 = vmatmul.mubr.f32.gmra.mrb[0].mxu0 %v1234
        %v1512 = vpop.f32.mrb[0].mxu0
        %v1513 = vadd.f32 0.0, %v1512
        %v1514 = vpop.f32.mrb[0].mxu0
        %1515 = vdwg.mxu0
        %v1517 = vsel %vm1232, %v1145, 0
        %v1520 = vsel %vm1232, %v1146, 0
        %1522 = vmatprep.subr.mxu0 0.0
        %1523 = vmatpush1.msra.mxu0 %v1018
        %1524 = vmatprep.subr.mxu0 0.0
        %1525 = vmatpush1.msra.mxu0 %v1019
        %1526 = vmatprep.subr.mxu0 0.0
        %1527 = vmatpush1.msra.mxu0 %v1020
        %1528 = vmatprep.subr.mxu0 0.0
        %1529 = vmatpush1.msra.mxu0 %v1021
        %1530 = vmatprep.subr.mxu0 0.0
        %1531 = vmatpush1.msra.mxu0 0.0
        %1532 = vmatprep.subr.mxu0 0.0
        %1533 = vmatpush1.msra.mxu0 0.0
        %1534 = vmatprep.subr.mxu0 0.0
        %1535 = vmatpush1.msra.mxu0 0.0
        %1536 = vmatprep.subr.mxu0 0.0
        %1537 = vmatpush1.msra.mxu0 0.0
        %1538 = vmatprep.subr.mxu0 0.0
        %1539 = vmatpush1.msra.mxu0 0.0
        %1540 = vmatprep.subr.mxu0 0.0
        %1541 = vmatpush1.msra.mxu0 0.0
        %1542 = vmatprep.subr.mxu0 0.0
        %1543 = vmatpush1.msra.mxu0 0.0
        %1544 = vmatprep.subr.mxu0 0.0
        %1545 = vmatpush1.msra.mxu0 0.0
        %1546 = vmatprep.subr.mxu0 0.0
        %1547 = vmatpush1.msra.mxu0 0.0
        %1548 = vmatprep.subr.mxu0 0.0
        %1549 = vmatpush1.msra.mxu0 0.0
        %1550 = vmatprep.subr.mxu0 0.0
        %1551 = vmatpush1.msra.mxu0 0.0
        %1552 = vmatprep.subr.mxu0 0.0
        %1553 = vmatpush1.msra.mxu0 0.0
        %1554 = vmatprep.subr.mxu0 0.0
        %1555 = vmatpush1.msra.mxu0 0.0
        %1556 = vmatprep.subr.mxu0 0.0
        %1557 = vmatpush1.msra.mxu0 0.0
        %1558 = vmatprep.subr.mxu0 0.0
        %1559 = vmatpush1.msra.mxu0 0.0
        %1560 = vmatprep.subr.mxu0 0.0
        %1561 = vmatpush1.msra.mxu0 0.0
        %1562 = vmatprep.subr.mxu0 0.0
        %1563 = vmatpush1.msra.mxu0 0.0
        %1564 = vmatprep.subr.mxu0 0.0
        %1565 = vmatpush1.msra.mxu0 0.0
        %1566 = vmatprep.subr.mxu0 0.0
        %1567 = vmatpush1.msra.mxu0 0.0
        %1568 = vmatprep.subr.mxu0 0.0
        %1569 = vmatpush1.msra.mxu0 0.0
        %1570 = vmatprep.subr.mxu0 0.0
        %1571 = vmatpush1.msra.mxu0 0.0
        %1572 = vmatprep.subr.mxu0 0.0
        %1573 = vmatpush1.msra.mxu0 0.0
        %1574 = vmatprep.subr.mxu0 0.0
        %1575 = vmatpush1.msra.mxu0 0.0
        %1576 = vmatprep.subr.mxu0 0.0
        %1577 = vmatpush1.msra.mxu0 0.0
        %1578 = vmatprep.subr.mxu0 0.0
        %1579 = vmatpush1.msra.mxu0 0.0
        %1580 = vmatprep.subr.mxu0 0.0
        %1581 = vmatpush1.msra.mxu0 0.0
        %1582 = vmatprep.subr.mxu0 0.0
        %1583 = vmatpush1.msra.mxu0 0.0
        %1584 = vmatprep.subr.mxu0 0.0
        %1585 = vmatpush1.msra.mxu0 0.0
        %1586 = vmatprep.mubr.f32.mxu0 0.0
        %1587 = vmatmul.mubr.f32.gmra.mrb[0].mxu0 %v1517
        %v1588 = vpop.f32.mrb[0].mxu0
        %v1589 = vadd.f32 0.0, %v1588
        %v1590 = vpop.f32.mrb[0].mxu0
        %1591 = vmatprep.mubr.f32.mxu0 0.0
        %1592 = vmatmul.mubr.f32.gmra.mrb[0].mxu0 %v1520
        %v1593 = vpop.f32.mrb[0].mxu0
        %v1594 = vadd.f32 0.0, %v1593
        %v1595 = vpop.f32.mrb[0].mxu0
        %1596 = vdwg.mxu0
        %1597 = vmatprep.subr.mxu0 0.0
        %1598 = vmatpush1.msra.mxu0 %v1022
        %1599 = vmatprep.subr.mxu0 0.0
        %1600 = vmatpush1.msra.mxu0 %v1023
        %1601 = vmatprep.subr.mxu0 0.0
        %1602 = vmatpush1.msra.mxu0 %v1024
        %1603 = vmatprep.subr.mxu0 0.0
        %1604 = vmatpush1.msra.mxu0 %v1025
        %1605 = vmatprep.subr.mxu0 0.0
        %1606 = vmatpush1.msra.mxu0 0.0
        %1607 = vmatprep.subr.mxu0 0.0
        %1608 = vmatpush1.msra.mxu0 0.0
        %1609 = vmatprep.subr.mxu0 0.0
        %1610 = vmatpush1.msra.mxu0 0.0
        %1611 = vmatprep.subr.mxu0 0.0
        %1612 = vmatpush1.msra.mxu0 0.0
        %1613 = vmatprep.subr.mxu0 0.0
        %1614 = vmatpush1.msra.mxu0 0.0
        %1615 = vmatprep.subr.mxu0 0.0
        %1616 = vmatpush1.msra.mxu0 0.0
        %1617 = vmatprep.subr.mxu0 0.0
        %1618 = vmatpush1.msra.mxu0 0.0
        %1619 = vmatprep.subr.mxu0 0.0
        %1620 = vmatpush1.msra.mxu0 0.0
        %1621 = vmatprep.subr.mxu0 0.0
        %1622 = vmatpush1.msra.mxu0 0.0
        %1623 = vmatprep.subr.mxu0 0.0
        %1624 = vmatpush1.msra.mxu0 0.0
        %1625 = vmatprep.subr.mxu0 0.0
        %1626 = vmatpush1.msra.mxu0 0.0
        %1627 = vmatprep.subr.mxu0 0.0
        %1628 = vmatpush1.msra.mxu0 0.0
        %1629 = vmatprep.subr.mxu0 0.0
        %1630 = vmatpush1.msra.mxu0 0.0
        %1631 = vmatprep.subr.mxu0 0.0
        %1632 = vmatpush1.msra.mxu0 0.0
        %1633 = vmatprep.subr.mxu0 0.0
        %1634 = vmatpush1.msra.mxu0 0.0
        %1635 = vmatprep.subr.mxu0 0.0
        %1636 = vmatpush1.msra.mxu0 0.0
        %1637 = vmatprep.subr.mxu0 0.0
        %1638 = vmatpush1.msra.mxu0 0.0
        %1639 = vmatprep.subr.mxu0 0.0
        %1640 = vmatpush1.msra.mxu0 0.0
        %1641 = vmatprep.subr.mxu0 0.0
        %1642 = vmatpush1.msra.mxu0 0.0
        %1643 = vmatprep.subr.mxu0 0.0
        %1644 = vmatpush1.msra.mxu0 0.0
        %1645 = vmatprep.subr.mxu0 0.0
        %1646 = vmatpush1.msra.mxu0 0.0
        %1647 = vmatprep.subr.mxu0 0.0
        %1648 = vmatpush1.msra.mxu0 0.0
        %1649 = vmatprep.subr.mxu0 0.0
        %1650 = vmatpush1.msra.mxu0 0.0
        %1651 = vmatprep.subr.mxu0 0.0
        %1652 = vmatpush1.msra.mxu0 0.0
        %1653 = vmatprep.subr.mxu0 0.0
        %1654 = vmatpush1.msra.mxu0 0.0
        %1655 = vmatprep.subr.mxu0 0.0
        %1656 = vmatpush1.msra.mxu0 0.0
        %1657 = vmatprep.subr.mxu0 0.0
        %1658 = vmatpush1.msra.mxu0 0.0
        %1659 = vmatprep.subr.mxu0 0.0
        %1660 = vmatpush1.msra.mxu0 0.0
        %1661 = vmatprep.mubr.f32.mxu0 0.0
        %1662 = vmatmul.mubr.f32.gmra.mrb[0].mxu0 %v1517
        %v1663 = vpop.f32.mrb[0].mxu0
        %v1664 = vadd.f32 0.0, %v1663
        %v1665 = vpop.f32.mrb[0].mxu0
        %1666 = vmatprep.mubr.f32.mxu0 0.0
        %1667 = vmatmul.mubr.f32.gmra.mrb[0].mxu0 %v1520
        %v1668 = vpop.f32.mrb[0].mxu0
        %v1669 = vadd.f32 0.0, %v1668
        %v1670 = vpop.f32.mrb[0].mxu0
        %1671 = vdwg.mxu0
        %1672 = vmatprep.subr.mxu0 0.0
        %1673 = vmatpush1.msra.mxu0 %v1026
        %1674 = vmatprep.subr.mxu0 0.0
        %1675 = vmatpush1.msra.mxu0 %v1027
        %1676 = vmatprep.subr.mxu0 0.0
        %1677 = vmatpush1.msra.mxu0 %v1028
        %1678 = vmatprep.subr.mxu0 0.0
        %1679 = vmatpush1.msra.mxu0 %v1029
        %1680 = vmatprep.subr.mxu0 0.0
        %1681 = vmatpush1.msra.mxu0 0.0
        %1682 = vmatprep.subr.mxu0 0.0
        %1683 = vmatpush1.msra.mxu0 0.0
        %1684 = vmatprep.subr.mxu0 0.0
        %1685 = vmatpush1.msra.mxu0 0.0
        %1686 = vmatprep.subr.mxu0 0.0
        %1687 = vmatpush1.msra.mxu0 0.0
        %1688 = vmatprep.subr.mxu0 0.0
        %1689 = vmatpush1.msra.mxu0 0.0
        %1690 = vmatprep.subr.mxu0 0.0
        %1691 = vmatpush1.msra.mxu0 0.0
        %1692 = vmatprep.subr.mxu0 0.0
        %1693 = vmatpush1.msra.mxu0 0.0
        %1694 = vmatprep.subr.mxu0 0.0
        %1695 = vmatpush1.msra.mxu0 0.0
        %1696 = vmatprep.subr.mxu0 0.0
        %1697 = vmatpush1.msra.mxu0 0.0
        %1698 = vmatprep.subr.mxu0 0.0
        %1699 = vmatpush1.msra.mxu0 0.0
        %1700 = vmatprep.subr.mxu0 0.0
        %1701 = vmatpush1.msra.mxu0 0.0
        %1702 = vmatprep.subr.mxu0 0.0
        %1703 = vmatpush1.msra.mxu0 0.0
        %1704 = vmatprep.subr.mxu0 0.0
        %1705 = vmatpush1.msra.mxu0 0.0
        %1706 = vmatprep.subr.mxu0 0.0
        %1707 = vmatpush1.msra.mxu0 0.0
        %1708 = vmatprep.subr.mxu0 0.0
        %1709 = vmatpush1.msra.mxu0 0.0
        %1710 = vmatprep.subr.mxu0 0.0
        %1711 = vmatpush1.msra.mxu0 0.0
        %1712 = vmatprep.subr.mxu0 0.0
        %1713 = vmatpush1.msra.mxu0 0.0
        %1714 = vmatprep.subr.mxu0 0.0
        %1715 = vmatpush1.msra.mxu0 0.0
        %1716 = vmatprep.subr.mxu0 0.0
        %1717 = vmatpush1.msra.mxu0 0.0
        %1718 = vmatprep.subr.mxu0 0.0
        %1719 = vmatpush1.msra.mxu0 0.0
        %1720 = vmatprep.subr.mxu0 0.0
        %1721 = vmatpush1.msra.mxu0 0.0
        %1722 = vmatprep.subr.mxu0 0.0
        %1723 = vmatpush1.msra.mxu0 0.0
        %1724 = vmatprep.subr.mxu0 0.0
        %1725 = vmatpush1.msra.mxu0 0.0
        %1726 = vmatprep.subr.mxu0 0.0
        %1727 = vmatpush1.msra.mxu0 0.0
        %1728 = vmatprep.subr.mxu0 0.0
        %1729 = vmatpush1.msra.mxu0 0.0
        %1730 = vmatprep.subr.mxu0 0.0
        %1731 = vmatpush1.msra.mxu0 0.0
        %1732 = vmatprep.subr.mxu0 0.0
        %1733 = vmatpush1.msra.mxu0 0.0
        %1734 = vmatprep.subr.mxu0 0.0
        %1735 = vmatpush1.msra.mxu0 0.0
        %1736 = vmatprep.mubr.f32.mxu0 0.0
        %1737 = vmatmul.mubr.f32.gmra.mrb[0].mxu0 %v1517
        %v1738 = vpop.f32.mrb[0].mxu0
        %v1739 = vadd.f32 0.0, %v1738
        %v1740 = vpop.f32.mrb[0].mxu0
        %1741 = vmatprep.mubr.f32.mxu0 0.0
        %1742 = vmatmul.mubr.f32.gmra.mrb[0].mxu0 %v1520
        %v1743 = vpop.f32.mrb[0].mxu0
        %v1744 = vadd.f32 0.0, %v1743
        %v1745 = vpop.f32.mrb[0].mxu0
        %1746 = vdwg.mxu0
        %1747 = vmatprep.subr.mxu0 0.0
        %1748 = vmatpush1.msra.mxu0 %v1030
        %1749 = vmatprep.subr.mxu0 0.0
        %1750 = vmatpush1.msra.mxu0 %v1031
        %1751 = vmatprep.subr.mxu0 0.0
        %1752 = vmatpush1.msra.mxu0 %v1032
        %1753 = vmatprep.subr.mxu0 0.0
        %1754 = vmatpush1.msra.mxu0 %v1033
        %1755 = vmatprep.subr.mxu0 0.0
        %1756 = vmatpush1.msra.mxu0 0.0
        %1757 = vmatprep.subr.mxu0 0.0
        %1758 = vmatpush1.msra.mxu0 0.0
        %1759 = vmatprep.subr.mxu0 0.0
        %1760 = vmatpush1.msra.mxu0 0.0
        %1761 = vmatprep.subr.mxu0 0.0
        %1762 = vmatpush1.msra.mxu0 0.0
        %1763 = vmatprep.subr.mxu0 0.0
        %1764 = vmatpush1.msra.mxu0 0.0
        %1765 = vmatprep.subr.mxu0 0.0
        %1766 = vmatpush1.msra.mxu0 0.0
        %1767 = vmatprep.subr.mxu0 0.0
        %1768 = vmatpush1.msra.mxu0 0.0
        %1769 = vmatprep.subr.mxu0 0.0
        %1770 = vmatpush1.msra.mxu0 0.0
        %1771 = vmatprep.subr.mxu0 0.0
        %1772 = vmatpush1.msra.mxu0 0.0
        %1773 = vmatprep.subr.mxu0 0.0
        %1774 = vmatpush1.msra.mxu0 0.0
        %1775 = vmatprep.subr.mxu0 0.0
        %1776 = vmatpush1.msra.mxu0 0.0
        %1777 = vmatprep.subr.mxu0 0.0
        %1778 = vmatpush1.msra.mxu0 0.0
        %1779 = vmatprep.subr.mxu0 0.0
        %1780 = vmatpush1.msra.mxu0 0.0
        %1781 = vmatprep.subr.mxu0 0.0
        %1782 = vmatpush1.msra.mxu0 0.0
        %1783 = vmatprep.subr.mxu0 0.0
        %1784 = vmatpush1.msra.mxu0 0.0
        %1785 = vmatprep.subr.mxu0 0.0
        %1786 = vmatpush1.msra.mxu0 0.0
        %1787 = vmatprep.subr.mxu0 0.0
        %1788 = vmatpush1.msra.mxu0 0.0
        %1789 = vmatprep.subr.mxu0 0.0
        %1790 = vmatpush1.msra.mxu0 0.0
        %1791 = vmatprep.subr.mxu0 0.0
        %1792 = vmatpush1.msra.mxu0 0.0
        %1793 = vmatprep.subr.mxu0 0.0
        %1794 = vmatpush1.msra.mxu0 0.0
        %1795 = vmatprep.subr.mxu0 0.0
        %1796 = vmatpush1.msra.mxu0 0.0
        %1797 = vmatprep.subr.mxu0 0.0
        %1798 = vmatpush1.msra.mxu0 0.0
        %1799 = vmatprep.subr.mxu0 0.0
        %1800 = vmatpush1.msra.mxu0 0.0
        %1801 = vmatprep.subr.mxu0 0.0
        %1802 = vmatpush1.msra.mxu0 0.0
        %1803 = vmatprep.subr.mxu0 0.0
        %1804 = vmatpush1.msra.mxu0 0.0
        %1805 = vmatprep.subr.mxu0 0.0
        %1806 = vmatpush1.msra.mxu0 0.0
        %1807 = vmatprep.subr.mxu0 0.0
        %1808 = vmatpush1.msra.mxu0 0.0
        %1809 = vmatprep.subr.mxu0 0.0
        %1810 = vmatpush1.msra.mxu0 0.0
        %1811 = vmatprep.mubr.f32.mxu0 0.0
        %1812 = vmatmul.mubr.f32.gmra.mrb[0].mxu0 %v1517
        %v1813 = vpop.f32.mrb[0].mxu0
        %v1814 = vadd.f32 0.0, %v1813
        %v1815 = vpop.f32.mrb[0].mxu0
        %1816 = vmatprep.mubr.f32.mxu0 0.0
        %1817 = vmatmul.mubr.f32.gmra.mrb[0].mxu0 %v1520
        %v1818 = vpop.f32.mrb[0].mxu0
        %v1819 = vadd.f32 0.0, %v1818
        %v1820 = vpop.f32.mrb[0].mxu0
        %1821 = vdwg.mxu0
        %1822 = vmatprep.subr.mxu0 0.0
        %1823 = vmatpush1.msra.mxu0 %v1034
        %1824 = vmatprep.subr.mxu0 0.0
        %1825 = vmatpush1.msra.mxu0 %v1035
        %1826 = vmatprep.subr.mxu0 0.0
        %1827 = vmatpush1.msra.mxu0 %v1036
        %1828 = vmatprep.subr.mxu0 0.0
        %1829 = vmatpush1.msra.mxu0 %v1037
        %1830 = vmatprep.subr.mxu0 0.0
        %1831 = vmatpush1.msra.mxu0 0.0
        %1832 = vmatprep.subr.mxu0 0.0
        %1833 = vmatpush1.msra.mxu0 0.0
        %1834 = vmatprep.subr.mxu0 0.0
        %1835 = vmatpush1.msra.mxu0 0.0
        %1836 = vmatprep.subr.mxu0 0.0
        %1837 = vmatpush1.msra.mxu0 0.0
        %1838 = vmatprep.subr.mxu0 0.0
        %1839 = vmatpush1.msra.mxu0 0.0
        %1840 = vmatprep.subr.mxu0 0.0
        %1841 = vmatpush1.msra.mxu0 0.0
        %1842 = vmatprep.subr.mxu0 0.0
        %1843 = vmatpush1.msra.mxu0 0.0
        %1844 = vmatprep.subr.mxu0 0.0
        %1845 = vmatpush1.msra.mxu0 0.0
        %1846 = vmatprep.subr.mxu0 0.0
        %1847 = vmatpush1.msra.mxu0 0.0
        %1848 = vmatprep.subr.mxu0 0.0
        %1849 = vmatpush1.msra.mxu0 0.0
        %1850 = vmatprep.subr.mxu0 0.0
        %1851 = vmatpush1.msra.mxu0 0.0
        %1852 = vmatprep.subr.mxu0 0.0
        %1853 = vmatpush1.msra.mxu0 0.0
        %1854 = vmatprep.subr.mxu0 0.0
        %1855 = vmatpush1.msra.mxu0 0.0
        %1856 = vmatprep.subr.mxu0 0.0
        %1857 = vmatpush1.msra.mxu0 0.0
        %1858 = vmatprep.subr.mxu0 0.0
        %1859 = vmatpush1.msra.mxu0 0.0
        %1860 = vmatprep.subr.mxu0 0.0
        %1861 = vmatpush1.msra.mxu0 0.0
        %1862 = vmatprep.subr.mxu0 0.0
        %1863 = vmatpush1.msra.mxu0 0.0
        %1864 = vmatprep.subr.mxu0 0.0
        %1865 = vmatpush1.msra.mxu0 0.0
        %1866 = vmatprep.subr.mxu0 0.0
        %1867 = vmatpush1.msra.mxu0 0.0
        %1868 = vmatprep.subr.mxu0 0.0
        %1869 = vmatpush1.msra.mxu0 0.0
        %1870 = vmatprep.subr.mxu0 0.0
        %1871 = vmatpush1.msra.mxu0 0.0
        %1872 = vmatprep.subr.mxu0 0.0
        %1873 = vmatpush1.msra.mxu0 0.0
        %1874 = vmatprep.subr.mxu0 0.0
        %1875 = vmatpush1.msra.mxu0 0.0
        %1876 = vmatprep.subr.mxu0 0.0
        %1877 = vmatpush1.msra.mxu0 0.0
        %1878 = vmatprep.subr.mxu0 0.0
        %1879 = vmatpush1.msra.mxu0 0.0
        %1880 = vmatprep.subr.mxu0 0.0
        %1881 = vmatpush1.msra.mxu0 0.0
        %1882 = vmatprep.subr.mxu0 0.0
        %1883 = vmatpush1.msra.mxu0 0.0
        %1884 = vmatprep.subr.mxu0 0.0
        %1885 = vmatpush1.msra.mxu0 0.0
        %1886 = vmatprep.mubr.f32.mxu0 0.0
        %1887 = vmatmul.mubr.f32.gmra.mrb[0].mxu0 %v1517
        %v1888 = vpop.f32.mrb[0].mxu0
        %v1889 = vadd.f32 0.0, %v1888
        %v1890 = vpop.f32.mrb[0].mxu0
        %1891 = vmatprep.mubr.f32.mxu0 0.0
        %1892 = vmatmul.mubr.f32.gmra.mrb[0].mxu0 %v1520
        %v1893 = vpop.f32.mrb[0].mxu0
        %v1894 = vadd.f32 0.0, %v1893
        %v1895 = vpop.f32.mrb[0].mxu0
        %1896 = vdwg.mxu0
        %1897 = vmatprep.subr.mxu0 0.0
        %1898 = vmatpush1.msra.mxu0 %v1038
        %1899 = vmatprep.subr.mxu0 0.0
        %1900 = vmatpush1.msra.mxu0 %v1039
        %1901 = vmatprep.subr.mxu0 0.0
        %1902 = vmatpush1.msra.mxu0 %v1040
        %1903 = vmatprep.subr.mxu0 0.0
        %1904 = vmatpush1.msra.mxu0 %v1041
        %1905 = vmatprep.subr.mxu0 0.0
        %1906 = vmatpush1.msra.mxu0 0.0
        %1907 = vmatprep.subr.mxu0 0.0
        %1908 = vmatpush1.msra.mxu0 0.0
        %1909 = vmatprep.subr.mxu0 0.0
        %1910 = vmatpush1.msra.mxu0 0.0
        %1911 = vmatprep.subr.mxu0 0.0
        %1912 = vmatpush1.msra.mxu0 0.0
        %1913 = vmatprep.subr.mxu0 0.0
        %1914 = vmatpush1.msra.mxu0 0.0
        %1915 = vmatprep.subr.mxu0 0.0
        %1916 = vmatpush1.msra.mxu0 0.0
        %1917 = vmatprep.subr.mxu0 0.0
        %1918 = vmatpush1.msra.mxu0 0.0
        %1919 = vmatprep.subr.mxu0 0.0
        %1920 = vmatpush1.msra.mxu0 0.0
        %1921 = vmatprep.subr.mxu0 0.0
        %1922 = vmatpush1.msra.mxu0 0.0
        %1923 = vmatprep.subr.mxu0 0.0
        %1924 = vmatpush1.msra.mxu0 0.0
        %1925 = vmatprep.subr.mxu0 0.0
        %1926 = vmatpush1.msra.mxu0 0.0
        %1927 = vmatprep.subr.mxu0 0.0
        %1928 = vmatpush1.msra.mxu0 0.0
        %1929 = vmatprep.subr.mxu0 0.0
        %1930 = vmatpush1.msra.mxu0 0.0
        %1931 = vmatprep.subr.mxu0 0.0
        %1932 = vmatpush1.msra.mxu0 0.0
        %1933 = vmatprep.subr.mxu0 0.0
        %1934 = vmatpush1.msra.mxu0 0.0
        %1935 = vmatprep.subr.mxu0 0.0
        %1936 = vmatpush1.msra.mxu0 0.0
        %1937 = vmatprep.subr.mxu0 0.0
        %1938 = vmatpush1.msra.mxu0 0.0
        %1939 = vmatprep.subr.mxu0 0.0
        %1940 = vmatpush1.msra.mxu0 0.0
        %1941 = vmatprep.subr.mxu0 0.0
        %1942 = vmatpush1.msra.mxu0 0.0
        %1943 = vmatprep.subr.mxu0 0.0
        %1944 = vmatpush1.msra.mxu0 0.0
        %1945 = vmatprep.subr.mxu0 0.0
        %1946 = vmatpush1.msra.mxu0 0.0
        %1947 = vmatprep.subr.mxu0 0.0
        %1948 = vmatpush1.msra.mxu0 0.0
        %1949 = vmatprep.subr.mxu0 0.0
        %1950 = vmatpush1.msra.mxu0 0.0
        %1951 = vmatprep.subr.mxu0 0.0
        %1952 = vmatpush1.msra.mxu0 0.0
        %1953 = vmatprep.subr.mxu0 0.0
        %1954 = vmatpush1.msra.mxu0 0.0
        %1955 = vmatprep.subr.mxu0 0.0
        %1956 = vmatpush1.msra.mxu0 0.0
        %1957 = vmatprep.subr.mxu0 0.0
        %1958 = vmatpush1.msra.mxu0 0.0
        %1959 = vmatprep.subr.mxu0 0.0
        %1960 = vmatpush1.msra.mxu0 0.0
        %1961 = vmatprep.mubr.f32.mxu0 0.0
        %1962 = vmatmul.mubr.f32.gmra.mrb[0].mxu0 %v1517
        %v1963 = vpop.f32.mrb[0].mxu0
        %v1964 = vadd.f32 0.0, %v1963
        %v1965 = vpop.f32.mrb[0].mxu0
        %1966 = vmatprep.mubr.f32.mxu0 0.0
        %1967 = vmatmul.mubr.f32.gmra.mrb[0].mxu0 %v1520
        %v1968 = vpop.f32.mrb[0].mxu0
        %v1969 = vadd.f32 0.0, %v1968
        %v1970 = vpop.f32.mrb[0].mxu0
        %1971 = vdwg.mxu0
        %1972 = vmatprep.subr.mxu0 0.0
        %1973 = vmatpush1.msra.mxu0 %v1042
        %1974 = vmatprep.subr.mxu0 0.0
        %1975 = vmatpush1.msra.mxu0 %v1043
        %1976 = vmatprep.subr.mxu0 0.0
        %1977 = vmatpush1.msra.mxu0 %v1044
        %1978 = vmatprep.subr.mxu0 0.0
        %1979 = vmatpush1.msra.mxu0 %v1045
        %1980 = vmatprep.subr.mxu0 0.0
        %1981 = vmatpush1.msra.mxu0 0.0
        %1982 = vmatprep.subr.mxu0 0.0
        %1983 = vmatpush1.msra.mxu0 0.0
        %1984 = vmatprep.subr.mxu0 0.0
        %1985 = vmatpush1.msra.mxu0 0.0
        %1986 = vmatprep.subr.mxu0 0.0
        %1987 = vmatpush1.msra.mxu0 0.0
        %1988 = vmatprep.subr.mxu0 0.0
        %1989 = vmatpush1.msra.mxu0 0.0
        %1990 = vmatprep.subr.mxu0 0.0
        %1991 = vmatpush1.msra.mxu0 0.0
        %1992 = vmatprep.subr.mxu0 0.0
        %1993 = vmatpush1.msra.mxu0 0.0
        %1994 = vmatprep.subr.mxu0 0.0
        %1995 = vmatpush1.msra.mxu0 0.0
        %1996 = vmatprep.subr.mxu0 0.0
        %1997 = vmatpush1.msra.mxu0 0.0
        %1998 = vmatprep.subr.mxu0 0.0
        %1999 = vmatpush1.msra.mxu0 0.0
        %2000 = vmatprep.subr.mxu0 0.0
        %2001 = vmatpush1.msra.mxu0 0.0
        %2002 = vmatprep.subr.mxu0 0.0
        %2003 = vmatpush1.msra.mxu0 0.0
        %2004 = vmatprep.subr.mxu0 0.0
        %2005 = vmatpush1.msra.mxu0 0.0
        %2006 = vmatprep.subr.mxu0 0.0
        %2007 = vmatpush1.msra.mxu0 0.0
        %2008 = vmatprep.subr.mxu0 0.0
        %2009 = vmatpush1.msra.mxu0 0.0
        %2010 = vmatprep.subr.mxu0 0.0
        %2011 = vmatpush1.msra.mxu0 0.0
        %2012 = vmatprep.subr.mxu0 0.0
        %2013 = vmatpush1.msra.mxu0 0.0
        %2014 = vmatprep.subr.mxu0 0.0
        %2015 = vmatpush1.msra.mxu0 0.0
        %2016 = vmatprep.subr.mxu0 0.0
        %2017 = vmatpush1.msra.mxu0 0.0
        %2018 = vmatprep.subr.mxu0 0.0
        %2019 = vmatpush1.msra.mxu0 0.0
        %2020 = vmatprep.subr.mxu0 0.0
        %2021 = vmatpush1.msra.mxu0 0.0
        %2022 = vmatprep.subr.mxu0 0.0
        %2023 = vmatpush1.msra.mxu0 0.0
        %2024 = vmatprep.subr.mxu0 0.0
        %2025 = vmatpush1.msra.mxu0 0.0
        %2026 = vmatprep.subr.mxu0 0.0
        %2027 = vmatpush1.msra.mxu0 0.0
        %2028 = vmatprep.subr.mxu0 0.0
        %2029 = vmatpush1.msra.mxu0 0.0
        %2030 = vmatprep.subr.mxu0 0.0
        %2031 = vmatpush1.msra.mxu0 0.0
        %2032 = vmatprep.subr.mxu0 0.0
        %2033 = vmatpush1.msra.mxu0 0.0
        %2034 = vmatprep.subr.mxu0 0.0
        %2035 = vmatpush1.msra.mxu0 0.0
        %2036 = vmatprep.mubr.f32.mxu0 0.0
        %2037 = vmatmul.mubr.f32.gmra.mrb[0].mxu0 %v1517
        %v2038 = vpop.f32.mrb[0].mxu0
        %v2039 = vadd.f32 0.0, %v2038
        %v2040 = vpop.f32.mrb[0].mxu0
        %2041 = vmatprep.mubr.f32.mxu0 0.0
        %2042 = vmatmul.mubr.f32.gmra.mrb[0].mxu0 %v1520
        %v2043 = vpop.f32.mrb[0].mxu0
        %v2044 = vadd.f32 0.0, %v2043
        %v2045 = vpop.f32.mrb[0].mxu0
        %2046 = vdwg.mxu0
        %2047 = vmatprep.subr.mxu0 0.0
        %2048 = vmatpush1.msra.mxu0 %v1046
        %2049 = vmatprep.subr.mxu0 0.0
        %2050 = vmatpush1.msra.mxu0 %v1047
        %2051 = vmatprep.subr.mxu0 0.0
        %2052 = vmatpush1.msra.mxu0 %v1048
        %2053 = vmatprep.subr.mxu0 0.0
        %2054 = vmatpush1.msra.mxu0 %v1049
        %2055 = vmatprep.subr.mxu0 0.0
        %2056 = vmatpush1.msra.mxu0 0.0
        %2057 = vmatprep.subr.mxu0 0.0
        %2058 = vmatpush1.msra.mxu0 0.0
        %2059 = vmatprep.subr.mxu0 0.0
        %2060 = vmatpush1.msra.mxu0 0.0
        %2061 = vmatprep.subr.mxu0 0.0
        %2062 = vmatpush1.msra.mxu0 0.0
        %2063 = vmatprep.subr.mxu0 0.0
        %2064 = vmatpush1.msra.mxu0 0.0
        %2065 = vmatprep.subr.mxu0 0.0
        %2066 = vmatpush1.msra.mxu0 0.0
        %2067 = vmatprep.subr.mxu0 0.0
        %2068 = vmatpush1.msra.mxu0 0.0
        %2069 = vmatprep.subr.mxu0 0.0
        %2070 = vmatpush1.msra.mxu0 0.0
        %2071 = vmatprep.subr.mxu0 0.0
        %2072 = vmatpush1.msra.mxu0 0.0
        %2073 = vmatprep.subr.mxu0 0.0
        %2074 = vmatpush1.msra.mxu0 0.0
        %2075 = vmatprep.subr.mxu0 0.0
        %2076 = vmatpush1.msra.mxu0 0.0
        %2077 = vmatprep.subr.mxu0 0.0
        %2078 = vmatpush1.msra.mxu0 0.0
        %2079 = vmatprep.subr.mxu0 0.0
        %2080 = vmatpush1.msra.mxu0 0.0
        %2081 = vmatprep.subr.mxu0 0.0
        %2082 = vmatpush1.msra.mxu0 0.0
        %2083 = vmatprep.subr.mxu0 0.0
        %2084 = vmatpush1.msra.mxu0 0.0
        %2085 = vmatprep.subr.mxu0 0.0
        %2086 = vmatpush1.msra.mxu0 0.0
        %2087 = vmatprep.subr.mxu0 0.0
        %2088 = vmatpush1.msra.mxu0 0.0
        %2089 = vmatprep.subr.mxu0 0.0
        %2090 = vmatpush1.msra.mxu0 0.0
        %2091 = vmatprep.subr.mxu0 0.0
        %2092 = vmatpush1.msra.mxu0 0.0
        %2093 = vmatprep.subr.mxu0 0.0
        %2094 = vmatpush1.msra.mxu0 0.0
        %2095 = vmatprep.subr.mxu0 0.0
        %2096 = vmatpush1.msra.mxu0 0.0
        %2097 = vmatprep.subr.mxu0 0.0
        %2098 = vmatpush1.msra.mxu0 0.0
        %2099 = vmatprep.subr.mxu0 0.0
        %2100 = vmatpush1.msra.mxu0 0.0
        %2101 = vmatprep.subr.mxu0 0.0
        %2102 = vmatpush1.msra.mxu0 0.0
        %2103 = vmatprep.subr.mxu0 0.0
        %2104 = vmatpush1.msra.mxu0 0.0
        %2105 = vmatprep.subr.mxu0 0.0
        %2106 = vmatpush1.msra.mxu0 0.0
        %2107 = vmatprep.subr.mxu0 0.0
        %2108 = vmatpush1.msra.mxu0 0.0
        %2109 = vmatprep.subr.mxu0 0.0
        %2110 = vmatpush1.msra.mxu0 0.0
        %2111 = vmatprep.mubr.f32.mxu0 0.0
        %2112 = vmatmul.mubr.f32.gmra.mrb[0].mxu0 %v1517
        %v2113 = vpop.f32.mrb[0].mxu0
        %v2114 = vadd.f32 0.0, %v2113
        %v2115 = vpop.f32.mrb[0].mxu0
        %2116 = vmatprep.mubr.f32.mxu0 0.0
        %2117 = vmatmul.mubr.f32.gmra.mrb[0].mxu0 %v1520
        %v2118 = vpop.f32.mrb[0].mxu0
        %v2119 = vadd.f32 0.0, %v2118
        %v2120 = vpop.f32.mrb[0].mxu0
        %2121 = vdwg.mxu0
        %vm2122 = vcmask 64512
        %v2124 = vsel %vm2122, %v1303, 0
        %v2127 = vsel %vm2122, %v1589, 0
        %v2130 = vsel %vm2122, %v1594, 0
        %2132 = vmatprep.subr.mxu0 0.0
        %2133 = vmatpush1.xpose.msra.mxu0 %v2127
        %2134 = vmatprep.subr.mxu0 0.0
        %2135 = vmatpush1.xpose.msra.mxu0 %v2130
        %2136 = vmatprep.subr.mxu0 0.0
        %2137 = vmatpush1.xpose.msra.mxu0 0.0
        %2138 = vmatprep.subr.mxu0 0.0
        %2139 = vmatpush1.xpose.msra.mxu0 0.0
        %2140 = vmatprep.subr.mxu0 0.0
        %2141 = vmatpush1.xpose.msra.mxu0 0.0
        %2142 = vmatprep.subr.mxu0 0.0
        %2143 = vmatpush1.xpose.msra.mxu0 0.0
        %2144 = vmatprep.subr.mxu0 0.0
        %2145 = vmatpush1.xpose.msra.mxu0 0.0
        %2146 = vmatprep.subr.mxu0 0.0
        %2147 = vmatpush1.xpose.msra.mxu0 0.0
        %2148 = vmatprep.subr.mxu0 0.0
        %2149 = vmatpush1.xpose.msra.mxu0 0.0
        %2150 = vmatprep.subr.mxu0 0.0
        %2151 = vmatpush1.xpose.msra.mxu0 0.0
        %2152 = vmatprep.subr.mxu0 0.0
        %2153 = vmatpush1.xpose.msra.mxu0 0.0
        %2154 = vmatprep.subr.mxu0 0.0
        %2155 = vmatpush1.xpose.msra.mxu0 0.0
        %2156 = vmatprep.subr.mxu0 0.0
        %2157 = vmatpush1.xpose.msra.mxu0 0.0
        %2158 = vmatprep.subr.mxu0 0.0
        %2159 = vmatpush1.xpose.msra.mxu0 0.0
        %2160 = vmatprep.subr.mxu0 0.0
        %2161 = vmatpush1.xpose.msra.mxu0 0.0
        %2162 = vmatprep.subr.mxu0 0.0
        %2163 = vmatpush1.xpose.msra.mxu0 0.0
        %2164 = vmatprep.subr.mxu0 0.0
        %2165 = vmatpush1.xpose.msra.mxu0 0.0
        %2166 = vmatprep.subr.mxu0 0.0
        %2167 = vmatpush1.xpose.msra.mxu0 0.0
        %2168 = vmatprep.subr.mxu0 0.0
        %2169 = vmatpush1.xpose.msra.mxu0 0.0
        %2170 = vmatprep.subr.mxu0 0.0
        %2171 = vmatpush1.xpose.msra.mxu0 0.0
        %2172 = vmatprep.subr.mxu0 0.0
        %2173 = vmatpush1.xpose.msra.mxu0 0.0
        %2174 = vmatprep.subr.mxu0 0.0
        %2175 = vmatpush1.xpose.msra.mxu0 0.0
        %2176 = vmatprep.subr.mxu0 0.0
        %2177 = vmatpush1.xpose.msra.mxu0 0.0
        %2178 = vmatprep.subr.mxu0 0.0
        %2179 = vmatpush1.xpose.msra.mxu0 0.0
        %2180 = vmatprep.subr.mxu0 0.0
        %2181 = vmatpush1.xpose.msra.mxu0 0.0
        %2182 = vmatprep.subr.mxu0 0.0
        %2183 = vmatpush1.xpose.msra.mxu0 0.0
        %2184 = vmatprep.subr.mxu0 0.0
        %2185 = vmatpush1.xpose.msra.mxu0 0.0
        %2186 = vmatprep.subr.mxu0 0.0
        %2187 = vmatpush1.xpose.msra.mxu0 0.0
        %2188 = vmatprep.subr.mxu0 0.0
        %2189 = vmatpush1.xpose.msra.mxu0 0.0
        %2190 = vmatprep.subr.mxu0 0.0
        %2191 = vmatpush1.xpose.msra.mxu0 0.0
        %2192 = vmatprep.subr.mxu0 0.0
        %2193 = vmatpush1.xpose.msra.mxu0 0.0
        %2194 = vmatprep.subr.mxu0 0.0
        %2195 = vmatpush1.xpose.msra.mxu0 0.0
        %2196 = vmatprep.mubr.f32.mxu0 0.0
        %2197 = vmatmul.mubr.f32.gmra.mrb[0].mxu0 %v2124
        %v2198 = vpop.f32.mrb[0].mxu0
        %v2199 = vadd.f32 0.0, %v2198
        %v2200 = vpop.f32.mrb[0].mxu0
        %2201 = vdwg.mxu0
        %v2203 = vsel %vm2122, %v1373, 0
        %v2206 = vsel %vm2122, %v1664, 0
        %v2209 = vsel %vm2122, %v1669, 0
        %2211 = vmatprep.subr.mxu0 0.0
        %2212 = vmatpush1.xpose.msra.mxu0 %v2206
        %2213 = vmatprep.subr.mxu0 0.0
        %2214 = vmatpush1.xpose.msra.mxu0 %v2209
        %2215 = vmatprep.subr.mxu0 0.0
        %2216 = vmatpush1.xpose.msra.mxu0 0.0
        %2217 = vmatprep.subr.mxu0 0.0
        %2218 = vmatpush1.xpose.msra.mxu0 0.0
        %2219 = vmatprep.subr.mxu0 0.0
        %2220 = vmatpush1.xpose.msra.mxu0 0.0
        %2221 = vmatprep.subr.mxu0 0.0
        %2222 = vmatpush1.xpose.msra.mxu0 0.0
        %2223 = vmatprep.subr.mxu0 0.0
        %2224 = vmatpush1.xpose.msra.mxu0 0.0
        %2225 = vmatprep.subr.mxu0 0.0
        %2226 = vmatpush1.xpose.msra.mxu0 0.0
        %2227 = vmatprep.subr.mxu0 0.0
        %2228 = vmatpush1.xpose.msra.mxu0 0.0
        %2229 = vmatprep.subr.mxu0 0.0
        %2230 = vmatpush1.xpose.msra.mxu0 0.0
        %2231 = vmatprep.subr.mxu0 0.0
        %2232 = vmatpush1.xpose.msra.mxu0 0.0
        %2233 = vmatprep.subr.mxu0 0.0
        %2234 = vmatpush1.xpose.msra.mxu0 0.0
        %2235 = vmatprep.subr.mxu0 0.0
        %2236 = vmatpush1.xpose.msra.mxu0 0.0
        %2237 = vmatprep.subr.mxu0 0.0
        %2238 = vmatpush1.xpose.msra.mxu0 0.0
        %2239 = vmatprep.subr.mxu0 0.0
        %2240 = vmatpush1.xpose.msra.mxu0 0.0
        %2241 = vmatprep.subr.mxu0 0.0
        %2242 = vmatpush1.xpose.msra.mxu0 0.0
        %2243 = vmatprep.subr.mxu0 0.0
        %2244 = vmatpush1.xpose.msra.mxu0 0.0
        %2245 = vmatprep.subr.mxu0 0.0
        %2246 = vmatpush1.xpose.msra.mxu0 0.0
        %2247 = vmatprep.subr.mxu0 0.0
        %2248 = vmatpush1.xpose.msra.mxu0 0.0
        %2249 = vmatprep.subr.mxu0 0.0
        %2250 = vmatpush1.xpose.msra.mxu0 0.0
        %2251 = vmatprep.subr.mxu0 0.0
        %2252 = vmatpush1.xpose.msra.mxu0 0.0
        %2253 = vmatprep.subr.mxu0 0.0
        %2254 = vmatpush1.xpose.msra.mxu0 0.0
        %2255 = vmatprep.subr.mxu0 0.0
        %2256 = vmatpush1.xpose.msra.mxu0 0.0
        %2257 = vmatprep.subr.mxu0 0.0
        %2258 = vmatpush1.xpose.msra.mxu0 0.0
        %2259 = vmatprep.subr.mxu0 0.0
        %2260 = vmatpush1.xpose.msra.mxu0 0.0
        %2261 = vmatprep.subr.mxu0 0.0
        %2262 = vmatpush1.xpose.msra.mxu0 0.0
        %2263 = vmatprep.subr.mxu0 0.0
        %2264 = vmatpush1.xpose.msra.mxu0 0.0
        %2265 = vmatprep.subr.mxu0 0.0
        %2266 = vmatpush1.xpose.msra.mxu0 0.0
        %2267 = vmatprep.subr.mxu0 0.0
        %2268 = vmatpush1.xpose.msra.mxu0 0.0
        %2269 = vmatprep.subr.mxu0 0.0
        %2270 = vmatpush1.xpose.msra.mxu0 0.0
        %2271 = vmatprep.subr.mxu0 0.0
        %2272 = vmatpush1.xpose.msra.mxu0 0.0
        %2273 = vmatprep.subr.mxu0 0.0
        %2274 = vmatpush1.xpose.msra.mxu0 0.0
        %2275 = vmatprep.mubr.f32.mxu0 0.0
        %2276 = vmatmul.mubr.f32.gmra.mrb[0].mxu0 %v2203
        %v2277 = vpop.f32.mrb[0].mxu0
        %v2278 = vadd.f32 0.0, %v2277
        %v2279 = vpop.f32.mrb[0].mxu0
        %2280 = vdwg.mxu0
        %v2282 = vsel %vm2122, %v1443, 0
        %v2285 = vsel %vm2122, %v1739, 0
        %v2288 = vsel %vm2122, %v1744, 0
        %2290 = vmatprep.subr.mxu0 0.0
        %2291 = vmatpush1.xpose.msra.mxu0 %v2285
        %2292 = vmatprep.subr.mxu0 0.0
        %2293 = vmatpush1.xpose.msra.mxu0 %v2288
        %2294 = vmatprep.subr.mxu0 0.0
        %2295 = vmatpush1.xpose.msra.mxu0 0.0
        %2296 = vmatprep.subr.mxu0 0.0
        %2297 = vmatpush1.xpose.msra.mxu0 0.0
        %2298 = vmatprep.subr.mxu0 0.0
        %2299 = vmatpush1.xpose.msra.mxu0 0.0
        %2300 = vmatprep.subr.mxu0 0.0
        %2301 = vmatpush1.xpose.msra.mxu0 0.0
        %2302 = vmatprep.subr.mxu0 0.0
        %2303 = vmatpush1.xpose.msra.mxu0 0.0
        %2304 = vmatprep.subr.mxu0 0.0
        %2305 = vmatpush1.xpose.msra.mxu0 0.0
        %2306 = vmatprep.subr.mxu0 0.0
        %2307 = vmatpush1.xpose.msra.mxu0 0.0
        %2308 = vmatprep.subr.mxu0 0.0
        %2309 = vmatpush1.xpose.msra.mxu0 0.0
        %2310 = vmatprep.subr.mxu0 0.0
        %2311 = vmatpush1.xpose.msra.mxu0 0.0
        %2312 = vmatprep.subr.mxu0 0.0
        %2313 = vmatpush1.xpose.msra.mxu0 0.0
        %2314 = vmatprep.subr.mxu0 0.0
        %2315 = vmatpush1.xpose.msra.mxu0 0.0
        %2316 = vmatprep.subr.mxu0 0.0
        %2317 = vmatpush1.xpose.msra.mxu0 0.0
        %2318 = vmatprep.subr.mxu0 0.0
        %2319 = vmatpush1.xpose.msra.mxu0 0.0
        %2320 = vmatprep.subr.mxu0 0.0
        %2321 = vmatpush1.xpose.msra.mxu0 0.0
        %2322 = vmatprep.subr.mxu0 0.0
        %2323 = vmatpush1.xpose.msra.mxu0 0.0
        %2324 = vmatprep.subr.mxu0 0.0
        %2325 = vmatpush1.xpose.msra.mxu0 0.0
        %2326 = vmatprep.subr.mxu0 0.0
        %2327 = vmatpush1.xpose.msra.mxu0 0.0
        %2328 = vmatprep.subr.mxu0 0.0
        %2329 = vmatpush1.xpose.msra.mxu0 0.0
        %2330 = vmatprep.subr.mxu0 0.0
        %2331 = vmatpush1.xpose.msra.mxu0 0.0
        %2332 = vmatprep.subr.mxu0 0.0
        %2333 = vmatpush1.xpose.msra.mxu0 0.0
        %2334 = vmatprep.subr.mxu0 0.0
        %2335 = vmatpush1.xpose.msra.mxu0 0.0
        %2336 = vmatprep.subr.mxu0 0.0
        %2337 = vmatpush1.xpose.msra.mxu0 0.0
        %2338 = vmatprep.subr.mxu0 0.0
        %2339 = vmatpush1.xpose.msra.mxu0 0.0
        %2340 = vmatprep.subr.mxu0 0.0
        %2341 = vmatpush1.xpose.msra.mxu0 0.0
        %2342 = vmatprep.subr.mxu0 0.0
        %2343 = vmatpush1.xpose.msra.mxu0 0.0
        %2344 = vmatprep.subr.mxu0 0.0
        %2345 = vmatpush1.xpose.msra.mxu0 0.0
        %2346 = vmatprep.subr.mxu0 0.0
        %2347 = vmatpush1.xpose.msra.mxu0 0.0
        %2348 = vmatprep.subr.mxu0 0.0
        %2349 = vmatpush1.xpose.msra.mxu0 0.0
        %2350 = vmatprep.subr.mxu0 0.0
        %2351 = vmatpush1.xpose.msra.mxu0 0.0
        %2352 = vmatprep.subr.mxu0 0.0
        %2353 = vmatpush1.xpose.msra.mxu0 0.0
        %2354 = vmatprep.mubr.f32.mxu0 0.0
        %2355 = vmatmul.mubr.f32.gmra.mrb[0].mxu0 %v2282
        %v2356 = vpop.f32.mrb[0].mxu0
        %v2357 = vadd.f32 0.0, %v2356
        %v2358 = vpop.f32.mrb[0].mxu0
        %2359 = vdwg.mxu0
        %v2361 = vsel %vm2122, %v1513, 0
        %v2364 = vsel %vm2122, %v1814, 0
        %v2367 = vsel %vm2122, %v1819, 0
        %2369 = vmatprep.subr.mxu0 0.0
        %2370 = vmatpush1.xpose.msra.mxu0 %v2364
        %2371 = vmatprep.subr.mxu0 0.0
        %2372 = vmatpush1.xpose.msra.mxu0 %v2367
        %2373 = vmatprep.subr.mxu0 0.0
        %2374 = vmatpush1.xpose.msra.mxu0 0.0
        %2375 = vmatprep.subr.mxu0 0.0
        %2376 = vmatpush1.xpose.msra.mxu0 0.0
        %2377 = vmatprep.subr.mxu0 0.0
        %2378 = vmatpush1.xpose.msra.mxu0 0.0
        %2379 = vmatprep.subr.mxu0 0.0
        %2380 = vmatpush1.xpose.msra.mxu0 0.0
        %2381 = vmatprep.subr.mxu0 0.0
        %2382 = vmatpush1.xpose.msra.mxu0 0.0
        %2383 = vmatprep.subr.mxu0 0.0
        %2384 = vmatpush1.xpose.msra.mxu0 0.0
        %2385 = vmatprep.subr.mxu0 0.0
        %2386 = vmatpush1.xpose.msra.mxu0 0.0
        %2387 = vmatprep.subr.mxu0 0.0
        %2388 = vmatpush1.xpose.msra.mxu0 0.0
        %2389 = vmatprep.subr.mxu0 0.0
        %2390 = vmatpush1.xpose.msra.mxu0 0.0
        %2391 = vmatprep.subr.mxu0 0.0
        %2392 = vmatpush1.xpose.msra.mxu0 0.0
        %2393 = vmatprep.subr.mxu0 0.0
        %2394 = vmatpush1.xpose.msra.mxu0 0.0
        %2395 = vmatprep.subr.mxu0 0.0
        %2396 = vmatpush1.xpose.msra.mxu0 0.0
        %2397 = vmatprep.subr.mxu0 0.0
        %2398 = vmatpush1.xpose.msra.mxu0 0.0
        %2399 = vmatprep.subr.mxu0 0.0
        %2400 = vmatpush1.xpose.msra.mxu0 0.0
        %2401 = vmatprep.subr.mxu0 0.0
        %2402 = vmatpush1.xpose.msra.mxu0 0.0
        %2403 = vmatprep.subr.mxu0 0.0
        %2404 = vmatpush1.xpose.msra.mxu0 0.0
        %2405 = vmatprep.subr.mxu0 0.0
        %2406 = vmatpush1.xpose.msra.mxu0 0.0
        %2407 = vmatprep.subr.mxu0 0.0
        %2408 = vmatpush1.xpose.msra.mxu0 0.0
        %2409 = vmatprep.subr.mxu0 0.0
        %2410 = vmatpush1.xpose.msra.mxu0 0.0
        %2411 = vmatprep.subr.mxu0 0.0
        %2412 = vmatpush1.xpose.msra.mxu0 0.0
        %2413 = vmatprep.subr.mxu0 0.0
        %2414 = vmatpush1.xpose.msra.mxu0 0.0
        %2415 = vmatprep.subr.mxu0 0.0
        %2416 = vmatpush1.xpose.msra.mxu0 0.0
        %2417 = vmatprep.subr.mxu0 0.0
        %2418 = vmatpush1.xpose.msra.mxu0 0.0
        %2419 = vmatprep.subr.mxu0 0.0
        %2420 = vmatpush1.xpose.msra.mxu0 0.0
        %2421 = vmatprep.subr.mxu0 0.0
        %2422 = vmatpush1.xpose.msra.mxu0 0.0
        %2423 = vmatprep.subr.mxu0 0.0
        %2424 = vmatpush1.xpose.msra.mxu0 0.0
        %2425 = vmatprep.subr.mxu0 0.0
        %2426 = vmatpush1.xpose.msra.mxu0 0.0
        %2427 = vmatprep.subr.mxu0 0.0
        %2428 = vmatpush1.xpose.msra.mxu0 0.0
        %2429 = vmatprep.subr.mxu0 0.0
        %2430 = vmatpush1.xpose.msra.mxu0 0.0
        %2431 = vmatprep.subr.mxu0 0.0
        %2432 = vmatpush1.xpose.msra.mxu0 0.0
        %2433 = vmatprep.mubr.f32.mxu0 0.0
        %2434 = vmatmul.mubr.f32.gmra.mrb[0].mxu0 %v2361
        %v2435 = vpop.f32.mrb[0].mxu0
        %v2436 = vadd.f32 0.0, %v2435
        %v2437 = vpop.f32.mrb[0].mxu0
        %2438 = vdwg.mxu0
        %v2439 = vmul.f32 %v2199, 0.35355338
        %v2440 = vmul.f32 %v2278, 0.35355338
        %v2441 = vmul.f32 %v2357, 0.35355338
        %v2442 = vmul.f32 %v2436, 0.35355338
        %v2443 = vsel %vm1156, %v2439, -inf
        %2444 = vmax.xlane.f32.xlu0 %v2443
        %v2445 = vpop.xlane.xlu0 %2444
        %v2446 = vsel %vm1156, %v2440, -inf
        %2447 = vmax.xlane.f32.xlu0 %v2446
        %v2448 = vpop.xlane.xlu0 %2447
        %v2449 = vsel %vm1156, %v2441, -inf
        %2450 = vmax.xlane.f32.xlu0 %v2449
        %v2451 = vpop.xlane.xlu0 %2450
        %v2452 = vsel %vm1156, %v2442, -inf
        %2453 = vmax.xlane.f32.xlu0 %v2452
        %v2454 = vpop.xlane.xlu0 %2453
        %v2455 = vsub.f32 %v2439, %v2445
        %v2456 = vsub.f32 %v2440, %v2448
        %v2457 = vsub.f32 %v2441, %v2451
        %v2458 = vsub.f32 %v2442, %v2454
        %v2459 = vmul.f32 %v2455, 1.442695
        %v2460 = vpow.pop %v2459
        %v2461 = vmul.f32 %v2456, 1.442695
        %v2462 = vpow.pop %v2461
        %v2463 = vmul.f32 %v2457, 1.442695
        %v2464 = vpow.pop %v2463
        %v2465 = vmul.f32 %v2458, 1.442695
        %v2466 = vpow.pop %v2465
        %v2467 = vsel %vm1156, %v2460, 0.0
        %2468 = vadd.xlane.f32.xlu0 %v2467
        %v2469 = vpop.xlane.xlu0 %2468
        %v2470 = vsel %vm1156, %v2462, 0.0
        %2471 = vadd.xlane.f32.xlu0 %v2470
        %v2472 = vpop.xlane.xlu0 %2471
        %v2473 = vsel %vm1156, %v2464, 0.0
        %2474 = vadd.xlane.f32.xlu0 %v2473
        %v2475 = vpop.xlane.xlu0 %2474
        %v2476 = vsel %vm1156, %v2466, 0.0
        %2477 = vadd.xlane.f32.xlu0 %v2476
        %v2478 = vpop.xlane.xlu0 %2477
        %v2479 = vrcp.pop %v2469
        %v2480 = vrcp.pop %v2472
        %v2481 = vrcp.pop %v2475
        %v2482 = vrcp.pop %v2478
        %v2483 = vmul.f32 %v2460, %v2479
        %v2484 = vmul.f32 %v2462, %v2480
        %v2485 = vmul.f32 %v2464, %v2481
        %v2486 = vmul.f32 %v2466, %v2482
        %v2488 = vsel %vm1156, %v2483, 0
        %2490 = vmatprep.subr.mxu0 0.0
        %2491 = vmatpush1.msra.mxu0 %v1889
        %2492 = vmatprep.subr.mxu0 0.0
        %2493 = vmatpush1.msra.mxu0 %v1894
        %2494 = vmatprep.subr.mxu0 0.0
        %2495 = vmatpush1.msra.mxu0 0.0
        %2496 = vmatprep.subr.mxu0 0.0
        %2497 = vmatpush1.msra.mxu0 0.0
        %2498 = vmatprep.subr.mxu0 0.0
        %2499 = vmatpush1.msra.mxu0 0.0
        %2500 = vmatprep.subr.mxu0 0.0
        %2501 = vmatpush1.msra.mxu0 0.0
        %2502 = vmatprep.subr.mxu0 0.0
        %2503 = vmatpush1.msra.mxu0 0.0
        %2504 = vmatprep.subr.mxu0 0.0
        %2505 = vmatpush1.msra.mxu0 0.0
        %2506 = vmatprep.subr.mxu0 0.0
        %2507 = vmatpush1.msra.mxu0 0.0
        %2508 = vmatprep.subr.mxu0 0.0
        %2509 = vmatpush1.msra.mxu0 0.0
        %2510 = vmatprep.subr.mxu0 0.0
        %2511 = vmatpush1.msra.mxu0 0.0
        %2512 = vmatprep.subr.mxu0 0.0
        %2513 = vmatpush1.msra.mxu0 0.0
        %2514 = vmatprep.subr.mxu0 0.0
        %2515 = vmatpush1.msra.mxu0 0.0
        %2516 = vmatprep.subr.mxu0 0.0
        %2517 = vmatpush1.msra.mxu0 0.0
        %2518 = vmatprep.subr.mxu0 0.0
        %2519 = vmatpush1.msra.mxu0 0.0
        %2520 = vmatprep.subr.mxu0 0.0
        %2521 = vmatpush1.msra.mxu0 0.0
        %2522 = vmatprep.subr.mxu0 0.0
        %2523 = vmatpush1.msra.mxu0 0.0
        %2524 = vmatprep.subr.mxu0 0.0
        %2525 = vmatpush1.msra.mxu0 0.0
        %2526 = vmatprep.subr.mxu0 0.0
        %2527 = vmatpush1.msra.mxu0 0.0
        %2528 = vmatprep.subr.mxu0 0.0
        %2529 = vmatpush1.msra.mxu0 0.0
        %2530 = vmatprep.subr.mxu0 0.0
        %2531 = vmatpush1.msra.mxu0 0.0
        %2532 = vmatprep.subr.mxu0 0.0
        %2533 = vmatpush1.msra.mxu0 0.0
        %2534 = vmatprep.subr.mxu0 0.0
        %2535 = vmatpush1.msra.mxu0 0.0
        %2536 = vmatprep.subr.mxu0 0.0
        %2537 = vmatpush1.msra.mxu0 0.0
        %2538 = vmatprep.subr.mxu0 0.0
        %2539 = vmatpush1.msra.mxu0 0.0
        %2540 = vmatprep.subr.mxu0 0.0
        %2541 = vmatpush1.msra.mxu0 0.0
        %2542 = vmatprep.subr.mxu0 0.0
        %2543 = vmatpush1.msra.mxu0 0.0
        %2544 = vmatprep.subr.mxu0 0.0
        %2545 = vmatpush1.msra.mxu0 0.0
        %2546 = vmatprep.subr.mxu0 0.0
        %2547 = vmatpush1.msra.mxu0 0.0
        %2548 = vmatprep.subr.mxu0 0.0
        %2549 = vmatpush1.msra.mxu0 0.0
        %2550 = vmatprep.subr.mxu0 0.0
        %2551 = vmatpush1.msra.mxu0 0.0
        %2552 = vmatprep.subr.mxu0 0.0
        %2553 = vmatpush1.msra.mxu0 0.0
        %2554 = vmatprep.mubr.f32.mxu0 0.0
        %2555 = vmatmul.mubr.f32.gmra.mrb[0].mxu0 %v2488
        %v2556 = vpop.f32.mrb[0].mxu0
        %v2557 = vadd.f32 0.0, %v2556
        %v2558 = vpop.f32.mrb[0].mxu0
        %2559 = vdwg.mxu0
        %v2561 = vsel %vm1156, %v2484, 0
        %2563 = vmatprep.subr.mxu0 0.0
        %2564 = vmatpush1.msra.mxu0 %v1964
        %2565 = vmatprep.subr.mxu0 0.0
        %2566 = vmatpush1.msra.mxu0 %v1969
        %2567 = vmatprep.subr.mxu0 0.0
        %2568 = vmatpush1.msra.mxu0 0.0
        %2569 = vmatprep.subr.mxu0 0.0
        %2570 = vmatpush1.msra.mxu0 0.0
        %2571 = vmatprep.subr.mxu0 0.0
        %2572 = vmatpush1.msra.mxu0 0.0
        %2573 = vmatprep.subr.mxu0 0.0
        %2574 = vmatpush1.msra.mxu0 0.0
        %2575 = vmatprep.subr.mxu0 0.0
        %2576 = vmatpush1.msra.mxu0 0.0
        %2577 = vmatprep.subr.mxu0 0.0
        %2578 = vmatpush1.msra.mxu0 0.0
        %2579 = vmatprep.subr.mxu0 0.0
        %2580 = vmatpush1.msra.mxu0 0.0
        %2581 = vmatprep.subr.mxu0 0.0
        %2582 = vmatpush1.msra.mxu0 0.0
        %2583 = vmatprep.subr.mxu0 0.0
        %2584 = vmatpush1.msra.mxu0 0.0
        %2585 = vmatprep.subr.mxu0 0.0
        %2586 = vmatpush1.msra.mxu0 0.0
        %2587 = vmatprep.subr.mxu0 0.0
        %2588 = vmatpush1.msra.mxu0 0.0
        %2589 = vmatprep.subr.mxu0 0.0
        %2590 = vmatpush1.msra.mxu0 0.0
        %2591 = vmatprep.subr.mxu0 0.0
        %2592 = vmatpush1.msra.mxu0 0.0
        %2593 = vmatprep.subr.mxu0 0.0
        %2594 = vmatpush1.msra.mxu0 0.0
        %2595 = vmatprep.subr.mxu0 0.0
        %2596 = vmatpush1.msra.mxu0 0.0
        %2597 = vmatprep.subr.mxu0 0.0
        %2598 = vmatpush1.msra.mxu0 0.0
        %2599 = vmatprep.subr.mxu0 0.0
        %2600 = vmatpush1.msra.mxu0 0.0
        %2601 = vmatprep.subr.mxu0 0.0
        %2602 = vmatpush1.msra.mxu0 0.0
        %2603 = vmatprep.subr.mxu0 0.0
        %2604 = vmatpush1.msra.mxu0 0.0
        %2605 = vmatprep.subr.mxu0 0.0
        %2606 = vmatpush1.msra.mxu0 0.0
        %2607 = vmatprep.subr.mxu0 0.0
        %2608 = vmatpush1.msra.mxu0 0.0
        %2609 = vmatprep.subr.mxu0 0.0
        %2610 = vmatpush1.msra.mxu0 0.0
        %2611 = vmatprep.subr.mxu0 0.0
        %2612 = vmatpush1.msra.mxu0 0.0
        %2613 = vmatprep.subr.mxu0 0.0
        %2614 = vmatpush1.msra.mxu0 0.0
        %2615 = vmatprep.subr.mxu0 0.0
        %2616 = vmatpush1.msra.mxu0 0.0
        %2617 = vmatprep.subr.mxu0 0.0
        %2618 = vmatpush1.msra.mxu0 0.0
        %2619 = vmatprep.subr.mxu0 0.0
        %2620 = vmatpush1.msra.mxu0 0.0
        %2621 = vmatprep.subr.mxu0 0.0
        %2622 = vmatpush1.msra.mxu0 0.0
        %2623 = vmatprep.subr.mxu0 0.0
        %2624 = vmatpush1.msra.mxu0 0.0
        %2625 = vmatprep.subr.mxu0 0.0
        %2626 = vmatpush1.msra.mxu0 0.0
        %2627 = vmatprep.mubr.f32.mxu0 0.0
        %2628 = vmatmul.mubr.f32.gmra.mrb[0].mxu0 %v2561
        %v2629 = vpop.f32.mrb[0].mxu0
        %v2630 = vadd.f32 0.0, %v2629
        %v2631 = vpop.f32.mrb[0].mxu0
        %2632 = vdwg.mxu0
        %v2634 = vsel %vm1156, %v2485, 0
        %2636 = vmatprep.subr.mxu0 0.0
        %2637 = vmatpush1.msra.mxu0 %v2039
        %2638 = vmatprep.subr.mxu0 0.0
        %2639 = vmatpush1.msra.mxu0 %v2044
        %2640 = vmatprep.subr.mxu0 0.0
        %2641 = vmatpush1.msra.mxu0 0.0
        %2642 = vmatprep.subr.mxu0 0.0
        %2643 = vmatpush1.msra.mxu0 0.0
        %2644 = vmatprep.subr.mxu0 0.0
        %2645 = vmatpush1.msra.mxu0 0.0
        %2646 = vmatprep.subr.mxu0 0.0
        %2647 = vmatpush1.msra.mxu0 0.0
        %2648 = vmatprep.subr.mxu0 0.0
        %2649 = vmatpush1.msra.mxu0 0.0
        %2650 = vmatprep.subr.mxu0 0.0
        %2651 = vmatpush1.msra.mxu0 0.0
        %2652 = vmatprep.subr.mxu0 0.0
        %2653 = vmatpush1.msra.mxu0 0.0
        %2654 = vmatprep.subr.mxu0 0.0
        %2655 = vmatpush1.msra.mxu0 0.0
        %2656 = vmatprep.subr.mxu0 0.0
        %2657 = vmatpush1.msra.mxu0 0.0
        %2658 = vmatprep.subr.mxu0 0.0
        %2659 = vmatpush1.msra.mxu0 0.0
        %2660 = vmatprep.subr.mxu0 0.0
        %2661 = vmatpush1.msra.mxu0 0.0
        %2662 = vmatprep.subr.mxu0 0.0
        %2663 = vmatpush1.msra.mxu0 0.0
        %2664 = vmatprep.subr.mxu0 0.0
        %2665 = vmatpush1.msra.mxu0 0.0
        %2666 = vmatprep.subr.mxu0 0.0
        %2667 = vmatpush1.msra.mxu0 0.0
        %2668 = vmatprep.subr.mxu0 0.0
        %2669 = vmatpush1.msra.mxu0 0.0
        %2670 = vmatprep.subr.mxu0 0.0
        %2671 = vmatpush1.msra.mxu0 0.0
        %2672 = vmatprep.subr.mxu0 0.0
        %2673 = vmatpush1.msra.mxu0 0.0
        %2674 = vmatprep.subr.mxu0 0.0
        %2675 = vmatpush1.msra.mxu0 0.0
        %2676 = vmatprep.subr.mxu0 0.0
        %2677 = vmatpush1.msra.mxu0 0.0
        %2678 = vmatprep.subr.mxu0 0.0
        %2679 = vmatpush1.msra.mxu0 0.0
        %2680 = vmatprep.subr.mxu0 0.0
        %2681 = vmatpush1.msra.mxu0 0.0
        %2682 = vmatprep.subr.mxu0 0.0
        %2683 = vmatpush1.msra.mxu0 0.0
        %2684 = vmatprep.subr.mxu0 0.0
        %2685 = vmatpush1.msra.mxu0 0.0
        %2686 = vmatprep.subr.mxu0 0.0
        %2687 = vmatpush1.msra.mxu0 0.0
        %2688 = vmatprep.subr.mxu0 0.0
        %2689 = vmatpush1.msra.mxu0 0.0
        %2690 = vmatprep.subr.mxu0 0.0
        %2691 = vmatpush1.msra.mxu0 0.0
        %2692 = vmatprep.subr.mxu0 0.0
        %2693 = vmatpush1.msra.mxu0 0.0
        %2694 = vmatprep.subr.mxu0 0.0
        %2695 = vmatpush1.msra.mxu0 0.0
        %2696 = vmatprep.subr.mxu0 0.0
        %2697 = vmatpush1.msra.mxu0 0.0
        %2698 = vmatprep.subr.mxu0 0.0
        %2699 = vmatpush1.msra.mxu0 0.0
        %2700 = vmatprep.mubr.f32.mxu0 0.0
        %2701 = vmatmul.mubr.f32.gmra.mrb[0].mxu0 %v2634
        %v2702 = vpop.f32.mrb[0].mxu0
        %v2703 = vadd.f32 0.0, %v2702
        %v2704 = vpop.f32.mrb[0].mxu0
        %2705 = vdwg.mxu0
        %v2707 = vsel %vm1156, %v2486, 0
        %2709 = vmatprep.subr.mxu0 0.0
        %2710 = vmatpush1.msra.mxu0 %v2114
        %2711 = vmatprep.subr.mxu0 0.0
        %2712 = vmatpush1.msra.mxu0 %v2119
        %2713 = vmatprep.subr.mxu0 0.0
        %2714 = vmatpush1.msra.mxu0 0.0
        %2715 = vmatprep.subr.mxu0 0.0
        %2716 = vmatpush1.msra.mxu0 0.0
        %2717 = vmatprep.subr.mxu0 0.0
        %2718 = vmatpush1.msra.mxu0 0.0
        %2719 = vmatprep.subr.mxu0 0.0
        %2720 = vmatpush1.msra.mxu0 0.0
        %2721 = vmatprep.subr.mxu0 0.0
        %2722 = vmatpush1.msra.mxu0 0.0
        %2723 = vmatprep.subr.mxu0 0.0
        %2724 = vmatpush1.msra.mxu0 0.0
        %2725 = vmatprep.subr.mxu0 0.0
        %2726 = vmatpush1.msra.mxu0 0.0
        %2727 = vmatprep.subr.mxu0 0.0
        %2728 = vmatpush1.msra.mxu0 0.0
        %2729 = vmatprep.subr.mxu0 0.0
        %2730 = vmatpush1.msra.mxu0 0.0
        %2731 = vmatprep.subr.mxu0 0.0
        %2732 = vmatpush1.msra.mxu0 0.0
        %2733 = vmatprep.subr.mxu0 0.0
        %2734 = vmatpush1.msra.mxu0 0.0
        %2735 = vmatprep.subr.mxu0 0.0
        %2736 = vmatpush1.msra.mxu0 0.0
        %2737 = vmatprep.subr.mxu0 0.0
        %2738 = vmatpush1.msra.mxu0 0.0
        %2739 = vmatprep.subr.mxu0 0.0
        %2740 = vmatpush1.msra.mxu0 0.0
        %2741 = vmatprep.subr.mxu0 0.0
        %2742 = vmatpush1.msra.mxu0 0.0
        %2743 = vmatprep.subr.mxu0 0.0
        %2744 = vmatpush1.msra.mxu0 0.0
        %2745 = vmatprep.subr.mxu0 0.0
        %2746 = vmatpush1.msra.mxu0 0.0
        %2747 = vmatprep.subr.mxu0 0.0
        %2748 = vmatpush1.msra.mxu0 0.0
        %2749 = vmatprep.subr.mxu0 0.0
        %2750 = vmatpush1.msra.mxu0 0.0
        %2751 = vmatprep.subr.mxu0 0.0
        %2752 = vmatpush1.msra.mxu0 0.0
        %2753 = vmatprep.subr.mxu0 0.0
        %2754 = vmatpush1.msra.mxu0 0.0
        %2755 = vmatprep.subr.mxu0 0.0
        %2756 = vmatpush1.msra.mxu0 0.0
        %2757 = vmatprep.subr.mxu0 0.0
        %2758 = vmatpush1.msra.mxu0 0.0
        %2759 = vmatprep.subr.mxu0 0.0
        %2760 = vmatpush1.msra.mxu0 0.0
        %2761 = vmatprep.subr.mxu0 0.0
        %2762 = vmatpush1.msra.mxu0 0.0
        %2763 = vmatprep.subr.mxu0 0.0
        %2764 = vmatpush1.msra.mxu0 0.0
        %2765 = vmatprep.subr.mxu0 0.0
        %2766 = vmatpush1.msra.mxu0 0.0
        %2767 = vmatprep.subr.mxu0 0.0
        %2768 = vmatpush1.msra.mxu0 0.0
        %2769 = vmatprep.subr.mxu0 0.0
        %2770 = vmatpush1.msra.mxu0 0.0
        %2771 = vmatprep.subr.mxu0 0.0
        %2772 = vmatpush1.msra.mxu0 0.0
        %2773 = vmatprep.mubr.f32.mxu0 0.0
        %2774 = vmatmul.mubr.f32.gmra.mrb[0].mxu0 %v2707
        %v2775 = vpop.f32.mrb[0].mxu0
        %v2776 = vadd.f32 0.0, %v2775
        %v2777 = vpop.f32.mrb[0].mxu0
        %2778 = vdwg.mxu0
        %v2780 = vsel %vm2122, %v2557, 0
        %2782 = vmatprep.subr.mxu0 0.0
        %2783 = vmatpush1.msra.mxu0 %v1050
        %2784 = vmatprep.subr.mxu0 0.0
        %2785 = vmatpush1.msra.mxu0 0.0
        %2786 = vmatprep.subr.mxu0 0.0
        %2787 = vmatpush1.msra.mxu0 0.0
        %2788 = vmatprep.subr.mxu0 0.0
        %2789 = vmatpush1.msra.mxu0 0.0
        %2790 = vmatprep.subr.mxu0 0.0
        %2791 = vmatpush1.msra.mxu0 0.0
        %2792 = vmatprep.subr.mxu0 0.0
        %2793 = vmatpush1.msra.mxu0 0.0
        %2794 = vmatprep.subr.mxu0 0.0
        %2795 = vmatpush1.msra.mxu0 0.0
        %2796 = vmatprep.subr.mxu0 0.0
        %2797 = vmatpush1.msra.mxu0 0.0
        %2798 = vmatprep.subr.mxu0 0.0
        %2799 = vmatpush1.msra.mxu0 0.0
        %2800 = vmatprep.subr.mxu0 0.0
        %2801 = vmatpush1.msra.mxu0 0.0
        %2802 = vmatprep.subr.mxu0 0.0
        %2803 = vmatpush1.msra.mxu0 0.0
        %2804 = vmatprep.subr.mxu0 0.0
        %2805 = vmatpush1.msra.mxu0 0.0
        %2806 = vmatprep.subr.mxu0 0.0
        %2807 = vmatpush1.msra.mxu0 0.0
        %2808 = vmatprep.subr.mxu0 0.0
        %2809 = vmatpush1.msra.mxu0 0.0
        %2810 = vmatprep.subr.mxu0 0.0
        %2811 = vmatpush1.msra.mxu0 0.0
        %2812 = vmatprep.subr.mxu0 0.0
        %2813 = vmatpush1.msra.mxu0 0.0
        %2814 = vmatprep.subr.mxu0 0.0
        %2815 = vmatpush1.msra.mxu0 0.0
        %2816 = vmatprep.subr.mxu0 0.0
        %2817 = vmatpush1.msra.mxu0 0.0
        %2818 = vmatprep.subr.mxu0 0.0
        %2819 = vmatpush1.msra.mxu0 0.0
        %2820 = vmatprep.subr.mxu0 0.0
        %2821 = vmatpush1.msra.mxu0 0.0
        %2822 = vmatprep.subr.mxu0 0.0
        %2823 = vmatpush1.msra.mxu0 0.0
        %2824 = vmatprep.subr.mxu0 0.0
        %2825 = vmatpush1.msra.mxu0 0.0
        %2826 = vmatprep.subr.mxu0 0.0
        %2827 = vmatpush1.msra.mxu0 0.0
        %2828 = vmatprep.subr.mxu0 0.0
        %2829 = vmatpush1.msra.mxu0 0.0
        %2830 = vmatprep.subr.mxu0 0.0
        %2831 = vmatpush1.msra.mxu0 0.0
        %2832 = vmatprep.subr.mxu0 0.0
        %2833 = vmatpush1.msra.mxu0 0.0
        %2834 = vmatprep.subr.mxu0 0.0
        %2835 = vmatpush1.msra.mxu0 0.0
        %2836 = vmatprep.subr.mxu0 0.0
        %2837 = vmatpush1.msra.mxu0 0.0
        %2838 = vmatprep.subr.mxu0 0.0
        %2839 = vmatpush1.msra.mxu0 0.0
        %2840 = vmatprep.subr.mxu0 0.0
        %2841 = vmatpush1.msra.mxu0 0.0
        %2842 = vmatprep.subr.mxu0 0.0
        %2843 = vmatpush1.msra.mxu0 0.0
        %2844 = vmatprep.subr.mxu0 0.0
        %2845 = vmatpush1.msra.mxu0 0.0
        %2846 = vmatprep.mubr.f32.mxu0 0.0
        %2847 = vmatmul.mubr.f32.gmra.mrb[0].mxu0 %v2780
        %v2848 = vpop.f32.mrb[0].mxu0
        %v2849 = vadd.f32 0.0, %v2848
        %v2850 = vpop.f32.mrb[0].mxu0
        %2851 = vdwg.mxu0
        %v2853 = vsel %vm2122, %v2630, 0
        %2855 = vmatprep.subr.mxu0 0.0
        %2856 = vmatpush1.msra.mxu0 %v1051
        %2857 = vmatprep.subr.mxu0 0.0
        %2858 = vmatpush1.msra.mxu0 0.0
        %2859 = vmatprep.subr.mxu0 0.0
        %2860 = vmatpush1.msra.mxu0 0.0
        %2861 = vmatprep.subr.mxu0 0.0
        %2862 = vmatpush1.msra.mxu0 0.0
        %2863 = vmatprep.subr.mxu0 0.0
        %2864 = vmatpush1.msra.mxu0 0.0
        %2865 = vmatprep.subr.mxu0 0.0
        %2866 = vmatpush1.msra.mxu0 0.0
        %2867 = vmatprep.subr.mxu0 0.0
        %2868 = vmatpush1.msra.mxu0 0.0
        %2869 = vmatprep.subr.mxu0 0.0
        %2870 = vmatpush1.msra.mxu0 0.0
        %2871 = vmatprep.subr.mxu0 0.0
        %2872 = vmatpush1.msra.mxu0 0.0
        %2873 = vmatprep.subr.mxu0 0.0
        %2874 = vmatpush1.msra.mxu0 0.0
        %2875 = vmatprep.subr.mxu0 0.0
        %2876 = vmatpush1.msra.mxu0 0.0
        %2877 = vmatprep.subr.mxu0 0.0
        %2878 = vmatpush1.msra.mxu0 0.0
        %2879 = vmatprep.subr.mxu0 0.0
        %2880 = vmatpush1.msra.mxu0 0.0
        %2881 = vmatprep.subr.mxu0 0.0
        %2882 = vmatpush1.msra.mxu0 0.0
        %2883 = vmatprep.subr.mxu0 0.0
        %2884 = vmatpush1.msra.mxu0 0.0
        %2885 = vmatprep.subr.mxu0 0.0
        %2886 = vmatpush1.msra.mxu0 0.0
        %2887 = vmatprep.subr.mxu0 0.0
        %2888 = vmatpush1.msra.mxu0 0.0
        %2889 = vmatprep.subr.mxu0 0.0
        %2890 = vmatpush1.msra.mxu0 0.0
        %2891 = vmatprep.subr.mxu0 0.0
        %2892 = vmatpush1.msra.mxu0 0.0
        %2893 = vmatprep.subr.mxu0 0.0
        %2894 = vmatpush1.msra.mxu0 0.0
        %2895 = vmatprep.subr.mxu0 0.0
        %2896 = vmatpush1.msra.mxu0 0.0
        %2897 = vmatprep.subr.mxu0 0.0
        %2898 = vmatpush1.msra.mxu0 0.0
        %2899 = vmatprep.subr.mxu0 0.0
        %2900 = vmatpush1.msra.mxu0 0.0
        %2901 = vmatprep.subr.mxu0 0.0
        %2902 = vmatpush1.msra.mxu0 0.0
        %2903 = vmatprep.subr.mxu0 0.0
        %2904 = vmatpush1.msra.mxu0 0.0
        %2905 = vmatprep.subr.mxu0 0.0
        %2906 = vmatpush1.msra.mxu0 0.0
        %2907 = vmatprep.subr.mxu0 0.0
        %2908 = vmatpush1.msra.mxu0 0.0
        %2909 = vmatprep.subr.mxu0 0.0
        %2910 = vmatpush1.msra.mxu0 0.0
        %2911 = vmatprep.subr.mxu0 0.0
        %2912 = vmatpush1.msra.mxu0 0.0
        %2913 = vmatprep.subr.mxu0 0.0
        %2914 = vmatpush1.msra.mxu0 0.0
        %2915 = vmatprep.subr.mxu0 0.0
        %2916 = vmatpush1.msra.mxu0 0.0
        %2917 = vmatprep.subr.mxu0 0.0
        %2918 = vmatpush1.msra.mxu0 0.0
        %2919 = vmatprep.mubr.f32.mxu0 0.0
        %2920 = vmatmul.mubr.f32.gmra.mrb[0].mxu0 %v2853
        %v2921 = vpop.f32.mrb[0].mxu0
        %v2922 = vadd.f32 0.0, %v2921
        %v2923 = vpop.f32.mrb[0].mxu0
        %2924 = vdwg.mxu0
        %v2926 = vsel %vm2122, %v2703, 0
        %2928 = vmatprep.subr.mxu0 0.0
        %2929 = vmatpush1.msra.mxu0 %v1052
        %2930 = vmatprep.subr.mxu0 0.0
        %2931 = vmatpush1.msra.mxu0 0.0
        %2932 = vmatprep.subr.mxu0 0.0
        %2933 = vmatpush1.msra.mxu0 0.0
        %2934 = vmatprep.subr.mxu0 0.0
        %2935 = vmatpush1.msra.mxu0 0.0
        %2936 = vmatprep.subr.mxu0 0.0
        %2937 = vmatpush1.msra.mxu0 0.0
        %2938 = vmatprep.subr.mxu0 0.0
        %2939 = vmatpush1.msra.mxu0 0.0
        %2940 = vmatprep.subr.mxu0 0.0
        %2941 = vmatpush1.msra.mxu0 0.0
        %2942 = vmatprep.subr.mxu0 0.0
        %2943 = vmatpush1.msra.mxu0 0.0
        %2944 = vmatprep.subr.mxu0 0.0
        %2945 = vmatpush1.msra.mxu0 0.0
        %2946 = vmatprep.subr.mxu0 0.0
        %2947 = vmatpush1.msra.mxu0 0.0
        %2948 = vmatprep.subr.mxu0 0.0
        %2949 = vmatpush1.msra.mxu0 0.0
        %2950 = vmatprep.subr.mxu0 0.0
        %2951 = vmatpush1.msra.mxu0 0.0
        %2952 = vmatprep.subr.mxu0 0.0
        %2953 = vmatpush1.msra.mxu0 0.0
        %2954 = vmatprep.subr.mxu0 0.0
        %2955 = vmatpush1.msra.mxu0 0.0
        %2956 = vmatprep.subr.mxu0 0.0
        %2957 = vmatpush1.msra.mxu0 0.0
        %2958 = vmatprep.subr.mxu0 0.0
        %2959 = vmatpush1.msra.mxu0 0.0
        %2960 = vmatprep.subr.mxu0 0.0
        %2961 = vmatpush1.msra.mxu0 0.0
        %2962 = vmatprep.subr.mxu0 0.0
        %2963 = vmatpush1.msra.mxu0 0.0
        %2964 = vmatprep.subr.mxu0 0.0
        %2965 = vmatpush1.msra.mxu0 0.0
        %2966 = vmatprep.subr.mxu0 0.0
        %2967 = vmatpush1.msra.mxu0 0.0
        %2968 = vmatprep.subr.mxu0 0.0
        %2969 = vmatpush1.msra.mxu0 0.0
        %2970 = vmatprep.subr.mxu0 0.0
        %2971 = vmatpush1.msra.mxu0 0.0
        %2972 = vmatprep.subr.mxu0 0.0
        %2973 = vmatpush1.msra.mxu0 0.0
        %2974 = vmatprep.subr.mxu0 0.0
        %2975 = vmatpush1.msra.mxu0 0.0
        %2976 = vmatprep.subr.mxu0 0.0
        %2977 = vmatpush1.msra.mxu0 0.0
        %2978 = vmatprep.subr.mxu0 0.0
        %2979 = vmatpush1.msra.mxu0 0.0
        %2980 = vmatprep.subr.mxu0 0.0
        %2981 = vmatpush1.msra.mxu0 0.0
        %2982 = vmatprep.subr.mxu0 0.0
        %2983 = vmatpush1.msra.mxu0 0.0
        %2984 = vmatprep.subr.mxu0 0.0
        %2985 = vmatpush1.msra.mxu0 0.0
        %2986 = vmatprep.subr.mxu0 0.0
        %2987 = vmatpush1.msra.mxu0 0.0
        %2988 = vmatprep.subr.mxu0 0.0
        %2989 = vmatpush1.msra.mxu0 0.0
        %2990 = vmatprep.subr.mxu0 0.0
        %2991 = vmatpush1.msra.mxu0 0.0
        %2992 = vmatprep.mubr.f32.mxu0 0.0
        %2993 = vmatmul.mubr.f32.gmra.mrb[0].mxu0 %v2926
        %v2994 = vpop.f32.mrb[0].mxu0
        %v2995 = vadd.f32 0.0, %v2994
        %v2996 = vpop.f32.mrb[0].mxu0
        %2997 = vdwg.mxu0
        %v2999 = vsel %vm2122, %v2776, 0
        %3001 = vmatprep.subr.mxu0 0.0
        %3002 = vmatpush1.msra.mxu0 %v1053
        %3003 = vmatprep.subr.mxu0 0.0
        %3004 = vmatpush1.msra.mxu0 0.0
        %3005 = vmatprep.subr.mxu0 0.0
        %3006 = vmatpush1.msra.mxu0 0.0
        %3007 = vmatprep.subr.mxu0 0.0
        %3008 = vmatpush1.msra.mxu0 0.0
        %3009 = vmatprep.subr.mxu0 0.0
        %3010 = vmatpush1.msra.mxu0 0.0
        %3011 = vmatprep.subr.mxu0 0.0
        %3012 = vmatpush1.msra.mxu0 0.0
        %3013 = vmatprep.subr.mxu0 0.0
        %3014 = vmatpush1.msra.mxu0 0.0
        %3015 = vmatprep.subr.mxu0 0.0
        %3016 = vmatpush1.msra.mxu0 0.0
        %3017 = vmatprep.subr.mxu0 0.0
        %3018 = vmatpush1.msra.mxu0 0.0
        %3019 = vmatprep.subr.mxu0 0.0
        %3020 = vmatpush1.msra.mxu0 0.0
        %3021 = vmatprep.subr.mxu0 0.0
        %3022 = vmatpush1.msra.mxu0 0.0
        %3023 = vmatprep.subr.mxu0 0.0
        %3024 = vmatpush1.msra.mxu0 0.0
        %3025 = vmatprep.subr.mxu0 0.0
        %3026 = vmatpush1.msra.mxu0 0.0
        %3027 = vmatprep.subr.mxu0 0.0
        %3028 = vmatpush1.msra.mxu0 0.0
        %3029 = vmatprep.subr.mxu0 0.0
        %3030 = vmatpush1.msra.mxu0 0.0
        %3031 = vmatprep.subr.mxu0 0.0
        %3032 = vmatpush1.msra.mxu0 0.0
        %3033 = vmatprep.subr.mxu0 0.0
        %3034 = vmatpush1.msra.mxu0 0.0
        %3035 = vmatprep.subr.mxu0 0.0
        %3036 = vmatpush1.msra.mxu0 0.0
        %3037 = vmatprep.subr.mxu0 0.0
        %3038 = vmatpush1.msra.mxu0 0.0
        %3039 = vmatprep.subr.mxu0 0.0
        %3040 = vmatpush1.msra.mxu0 0.0
        %3041 = vmatprep.subr.mxu0 0.0
        %3042 = vmatpush1.msra.mxu0 0.0
        %3043 = vmatprep.subr.mxu0 0.0
        %3044 = vmatpush1.msra.mxu0 0.0
        %3045 = vmatprep.subr.mxu0 0.0
        %3046 = vmatpush1.msra.mxu0 0.0
        %3047 = vmatprep.subr.mxu0 0.0
        %3048 = vmatpush1.msra.mxu0 0.0
        %3049 = vmatprep.subr.mxu0 0.0
        %3050 = vmatpush1.msra.mxu0 0.0
        %3051 = vmatprep.subr.mxu0 0.0
        %3052 = vmatpush1.msra.mxu0 0.0
        %3053 = vmatprep.subr.mxu0 0.0
        %3054 = vmatpush1.msra.mxu0 0.0
        %3055 = vmatprep.subr.mxu0 0.0
        %3056 = vmatpush1.msra.mxu0 0.0
        %3057 = vmatprep.subr.mxu0 0.0
        %3058 = vmatpush1.msra.mxu0 0.0
        %3059 = vmatprep.subr.mxu0 0.0
        %3060 = vmatpush1.msra.mxu0 0.0
        %3061 = vmatprep.subr.mxu0 0.0
        %3062 = vmatpush1.msra.mxu0 0.0
        %3063 = vmatprep.subr.mxu0 0.0
        %3064 = vmatpush1.msra.mxu0 0.0
        %3065 = vmatprep.mubr.f32.mxu0 0.0
        %3066 = vmatmul.mubr.f32.gmra.mrb[0].mxu0 %v2999
        %v3067 = vpop.f32.mrb[0].mxu0
        %v3068 = vadd.f32 0.0, %v3067
        %v3069 = vpop.f32.mrb[0].mxu0
        %3070 = vdwg.mxu0
        %v3071 = vsel %vm1232, %v2849, 0.0
        %v3072 = vsel %vm1232, %v2922, 0.0
        %v3073 = vadd.f32 %v3071, %v3072
        %v3074 = vsel %vm1232, %v2995, 0.0
        %v3075 = vadd.f32 %v3073, %v3074
        %v3076 = vsel %vm1232, %v3068, 0.0
        %v3077 = vadd.f32 %v3075, %v3076
        %v3079 = vlaneseq
        %v3080 = vshrl.u32 %v3079, 7
        %v3081 = vsub.s32 0, %v3080
        %v3082 = vrot.slane %v1054, %v3081
        %v3084 = vadd.f32 %v3077, %v3082
        %v3085 = vadd.f32 %v3084, %v1231
        %v3086 = vsel %vm1232, %v3085, 0.0
        %3087 = vadd.xlane.f32.xlu0 %v3086
        %v3088 = vpop.xlane.xlu0 %3087
        %v3089 = vrcp.pop 32.0
        %v3090 = vmul.f32 %v3088, %v3089
        %v3091 = vsub.f32 %v3085, %v3090
        %v3092 = vmul.f32 %v3091, %v3091
        %v3093 = vsel %vm1232, %v3092, 0.0
        %3094 = vadd.xlane.f32.xlu0 %v3093
        %v3095 = vpop.xlane.xlu0 %3094
        %v3096 = vmul.f32 %v3095, %v3089
        %v3097 = vadd.f32 %v3096, 1e-06
        %v3098 = vrsqrt.pop %v3097
        %v3099 = vmul.f32 %v3091, %v3098
        %v3101 = vlaneseq
        %v3102 = vshrl.u32 %v3101, 7
        %v3103 = vsub.s32 0, %v3102
        %v3104 = vrot.slane %v1055, %v3103
        %v3106 = vmul.f32 %v3099, %v3104
        %v3108 = vlaneseq
        %v3109 = vshrl.u32 %v3108, 7
        %v3110 = vsub.s32 0, %v3109
        %v3111 = vrot.slane %v1056, %v3110
        %v3113 = vadd.f32 %v3106, %v3111
        %v3115 = vlaneseq
        %v3116 = vshrl.u32 %v3115, 7
        %v3117 = vsub.s32 0, %v3116
        %v3118 = vrot.slane %v1061, %v3117
        %v3121 = vsel %vm1232, %v3113, 0
        %3123 = vmatprep.subr.mxu0 0.0
        %3124 = vmatpush1.msra.mxu0 %v1057
        %3125 = vmatprep.subr.mxu0 0.0
        %3126 = vmatpush1.msra.mxu0 %v1058
        %3127 = vmatprep.subr.mxu0 0.0
        %3128 = vmatpush1.msra.mxu0 %v1059
        %3129 = vmatprep.subr.mxu0 0.0
        %3130 = vmatpush1.msra.mxu0 %v1060
        %3131 = vmatprep.subr.mxu0 0.0
        %3132 = vmatpush1.msra.mxu0 0.0
        %3133 = vmatprep.subr.mxu0 0.0
        %3134 = vmatpush1.msra.mxu0 0.0
        %3135 = vmatprep.subr.mxu0 0.0
        %3136 = vmatpush1.msra.mxu0 0.0
        %3137 = vmatprep.subr.mxu0 0.0
        %3138 = vmatpush1.msra.mxu0 0.0
        %3139 = vmatprep.subr.mxu0 0.0
        %3140 = vmatpush1.msra.mxu0 0.0
        %3141 = vmatprep.subr.mxu0 0.0
        %3142 = vmatpush1.msra.mxu0 0.0
        %3143 = vmatprep.subr.mxu0 0.0
        %3144 = vmatpush1.msra.mxu0 0.0
        %3145 = vmatprep.subr.mxu0 0.0
        %3146 = vmatpush1.msra.mxu0 0.0
        %3147 = vmatprep.subr.mxu0 0.0
        %3148 = vmatpush1.msra.mxu0 0.0
        %3149 = vmatprep.subr.mxu0 0.0
        %3150 = vmatpush1.msra.mxu0 0.0
        %3151 = vmatprep.subr.mxu0 0.0
        %3152 = vmatpush1.msra.mxu0 0.0
        %3153 = vmatprep.subr.mxu0 0.0
        %3154 = vmatpush1.msra.mxu0 0.0
        %3155 = vmatprep.subr.mxu0 0.0
        %3156 = vmatpush1.msra.mxu0 0.0
        %3157 = vmatprep.subr.mxu0 0.0
        %3158 = vmatpush1.msra.mxu0 0.0
        %3159 = vmatprep.subr.mxu0 0.0
        %3160 = vmatpush1.msra.mxu0 0.0
        %3161 = vmatprep.subr.mxu0 0.0
        %3162 = vmatpush1.msra.mxu0 0.0
        %3163 = vmatprep.subr.mxu0 0.0
        %3164 = vmatpush1.msra.mxu0 0.0
        %3165 = vmatprep.subr.mxu0 0.0
        %3166 = vmatpush1.msra.mxu0 0.0
        %3167 = vmatprep.subr.mxu0 0.0
        %3168 = vmatpush1.msra.mxu0 0.0
        %3169 = vmatprep.subr.mxu0 0.0
        %3170 = vmatpush1.msra.mxu0 0.0
        %3171 = vmatprep.subr.mxu0 0.0
        %3172 = vmatpush1.msra.mxu0 0.0
        %3173 = vmatprep.subr.mxu0 0.0
        %3174 = vmatpush1.msra.mxu0 0.0
        %3175 = vmatprep.subr.mxu0 0.0
        %3176 = vmatpush1.msra.mxu0 0.0
        %3177 = vmatprep.subr.mxu0 0.0
        %3178 = vmatpush1.msra.mxu0 0.0
        %3179 = vmatprep.subr.mxu0 0.0
        %3180 = vmatpush1.msra.mxu0 0.0
        %3181 = vmatprep.subr.mxu0 0.0
        %3182 = vmatpush1.msra.mxu0 0.0
        %3183 = vmatprep.subr.mxu0 0.0
        %3184 = vmatpush1.msra.mxu0 0.0
        %3185 = vmatprep.subr.mxu0 0.0
        %3186 = vmatpush1.msra.mxu0 0.0
        %3187 = vmatprep.mubr.f32.mxu0 0.0
        %3188 = vmatmul.mubr.f32.gmra.mrb[0].mxu0 %v3121
        %v3189 = vpop.f32.mrb[0].mxu0
        %v3190 = vadd.f32 %v3118, %v3189
        %v3191 = vpop.f32.mrb[0].mxu0
        %3192 = vdwg.mxu0
        %v3193 = vmul.f32 %v3190, 0.5
        %v3194 = vmul.f32 %v3190, 0.70710677
        %v3195 = verf.f32.pop %v3194
        %v3196 = vadd.f32 %v3195, 1.0
        %v3197 = vmul.f32 %v3193, %v3196
        %v3199 = vlaneseq
        %v3200 = vshrl.u32 %v3199, 7
        %v3201 = vsub.s32 0, %v3200
        %v3202 = vrot.slane %v1070, %v3201
        %vm3204 = vcmask 523264
        %v3206 = vsel %vm3204, %v3197, 0
        %3208 = vmatprep.subr.mxu0 0.0
        %3209 = vmatpush1.msra.mxu0 %v1062
        %3210 = vmatprep.subr.mxu0 0.0
        %3211 = vmatpush1.msra.mxu0 %v1063
        %3212 = vmatprep.subr.mxu0 0.0
        %3213 = vmatpush1.msra.mxu0 %v1064
        %3214 = vmatprep.subr.mxu0 0.0
        %3215 = vmatpush1.msra.mxu0 %v1065
        %3216 = vmatprep.subr.mxu0 0.0
        %3217 = vmatpush1.msra.mxu0 %v1066
        %3218 = vmatprep.subr.mxu0 0.0
        %3219 = vmatpush1.msra.mxu0 %v1067
        %3220 = vmatprep.subr.mxu0 0.0
        %3221 = vmatpush1.msra.mxu0 %v1068
        %3222 = vmatprep.subr.mxu0 0.0
        %3223 = vmatpush1.msra.mxu0 %v1069
        %3224 = vmatprep.subr.mxu0 0.0
        %3225 = vmatpush1.msra.mxu0 0.0
        %3226 = vmatprep.subr.mxu0 0.0
        %3227 = vmatpush1.msra.mxu0 0.0
        %3228 = vmatprep.subr.mxu0 0.0
        %3229 = vmatpush1.msra.mxu0 0.0
        %3230 = vmatprep.subr.mxu0 0.0
        %3231 = vmatpush1.msra.mxu0 0.0
        %3232 = vmatprep.subr.mxu0 0.0
        %3233 = vmatpush1.msra.mxu0 0.0
        %3234 = vmatprep.subr.mxu0 0.0
        %3235 = vmatpush1.msra.mxu0 0.0
        %3236 = vmatprep.subr.mxu0 0.0
        %3237 = vmatpush1.msra.mxu0 0.0
        %3238 = vmatprep.subr.mxu0 0.0
        %3239 = vmatpush1.msra.mxu0 0.0
        %3240 = vmatprep.subr.mxu0 0.0
        %3241 = vmatpush1.msra.mxu0 0.0
        %3242 = vmatprep.subr.mxu0 0.0
        %3243 = vmatpush1.msra.mxu0 0.0
        %3244 = vmatprep.subr.mxu0 0.0
        %3245 = vmatpush1.msra.mxu0 0.0
        %3246 = vmatprep.subr.mxu0 0.0
        %3247 = vmatpush1.msra.mxu0 0.0
        %3248 = vmatprep.subr.mxu0 0.0
        %3249 = vmatpush1.msra.mxu0 0.0
        %3250 = vmatprep.subr.mxu0 0.0
        %3251 = vmatpush1.msra.mxu0 0.0
        %3252 = vmatprep.subr.mxu0 0.0
        %3253 = vmatpush1.msra.mxu0 0.0
        %3254 = vmatprep.subr.mxu0 0.0
        %3255 = vmatpush1.msra.mxu0 0.0
        %3256 = vmatprep.subr.mxu0 0.0
        %3257 = vmatpush1.msra.mxu0 0.0
        %3258 = vmatprep.subr.mxu0 0.0
        %3259 = vmatpush1.msra.mxu0 0.0
        %3260 = vmatprep.subr.mxu0 0.0
        %3261 = vmatpush1.msra.mxu0 0.0
        %3262 = vmatprep.subr.mxu0 0.0
        %3263 = vmatpush1.msra.mxu0 0.0
        %3264 = vmatprep.subr.mxu0 0.0
        %3265 = vmatpush1.msra.mxu0 0.0
        %3266 = vmatprep.subr.mxu0 0.0
        %3267 = vmatpush1.msra.mxu0 0.0
        %3268 = vmatprep.subr.mxu0 0.0
        %3269 = vmatpush1.msra.mxu0 0.0
        %3270 = vmatprep.subr.mxu0 0.0
        %3271 = vmatpush1.msra.mxu0 0.0
        %3272 = vmatprep.mubr.f32.mxu0 0.0
        %3273 = vmatmul.mubr.f32.gmra.mrb[0].mxu0 %v3206
        %v3274 = vpop.f32.mrb[0].mxu0
        %v3275 = vadd.f32 %v3202, %v3274
        %v3276 = vpop.f32.mrb[0].mxu0
        %3277 = vdwg.mxu0
        %v3278 = vadd.f32 %v3275, %v3113
        %v3279 = vsel %vm1232, %v3278, 0.0
        %3280 = vadd.xlane.f32.xlu0 %v3279
        %v3281 = vpop.xlane.xlu0 %3280
        %v3282 = vmul.f32 %v3281, %v3089
        %v3283 = vsub.f32 %v3278, %v3282
        %v3284 = vmul.f32 %v3283, %v3283
        %v3285 = vsel %vm1232, %v3284, 0.0
        %3286 = vadd.xlane.f32.xlu0 %v3285
        %v3287 = vpop.xlane.xlu0 %3286
        %v3288 = vmul.f32 %v3287, %v3089
        %v3289 = vadd.f32 %v3288, 1e-06
        %v3290 = vrsqrt.pop %v3289
        %v3291 = vmul.f32 %v3283, %v3290
        %v3293 = vlaneseq
        %v3294 = vshrl.u32 %v3293, 7
        %v3295 = vsub.s32 0, %v3294
        %v3296 = vrot.slane %v1071, %v3295
        %v3298 = vmul.f32 %v3291, %v3296
        %v3300 = vlaneseq
        %v3301 = vshrl.u32 %v3300, 7
        %v3302 = vsub.s32 0, %v3301
        %v3303 = vrot.slane %v1072, %v3302
        %v3305 = vadd.f32 %v3298, %v3303
        %v3306 = vld [vmem:[%s5] sm:$0xff]
        %vm3307 = vcmp.eq.f32.partialorder %v3306, 0.0
        %v3309 = vsel %vm1232, %v3305, 0
        %3311 = vmatprep.subr.mxu0 0.0
        %3312 = vmatpush1.msra.mxu0 %v1073
        %3313 = vmatprep.subr.mxu0 0.0
        %3314 = vmatpush1.msra.mxu0 %v1074
        %3315 = vmatprep.subr.mxu0 0.0
        %3316 = vmatpush1.msra.mxu0 %v1075
        %3317 = vmatprep.subr.mxu0 0.0
        %3318 = vmatpush1.msra.mxu0 %v1076
        %3319 = vmatprep.subr.mxu0 0.0
        %3320 = vmatpush1.msra.mxu0 0.0
        %3321 = vmatprep.subr.mxu0 0.0
        %3322 = vmatpush1.msra.mxu0 0.0
        %3323 = vmatprep.subr.mxu0 0.0
        %3324 = vmatpush1.msra.mxu0 0.0
        %3325 = vmatprep.subr.mxu0 0.0
        %3326 = vmatpush1.msra.mxu0 0.0
        %3327 = vmatprep.subr.mxu0 0.0
        %3328 = vmatpush1.msra.mxu0 0.0
        %3329 = vmatprep.subr.mxu0 0.0
        %3330 = vmatpush1.msra.mxu0 0.0
        %3331 = vmatprep.subr.mxu0 0.0
        %3332 = vmatpush1.msra.mxu0 0.0
        %3333 = vmatprep.subr.mxu0 0.0
        %3334 = vmatpush1.msra.mxu0 0.0
        %3335 = vmatprep.subr.mxu0 0.0
        %3336 = vmatpush1.msra.mxu0 0.0
        %3337 = vmatprep.subr.mxu0 0.0
        %3338 = vmatpush1.msra.mxu0 0.0
        %3339 = vmatprep.subr.mxu0 0.0
        %3340 = vmatpush1.msra.mxu0 0.0
        %3341 = vmatprep.subr.mxu0 0.0
        %3342 = vmatpush1.msra.mxu0 0.0
        %3343 = vmatprep.subr.mxu0 0.0
        %3344 = vmatpush1.msra.mxu0 0.0
        %3345 = vmatprep.subr.mxu0 0.0
        %3346 = vmatpush1.msra.mxu0 0.0
        %3347 = vmatprep.subr.mxu0 0.0
        %3348 = vmatpush1.msra.mxu0 0.0
        %3349 = vmatprep.subr.mxu0 0.0
        %3350 = vmatpush1.msra.mxu0 0.0
        %3351 = vmatprep.subr.mxu0 0.0
        %3352 = vmatpush1.msra.mxu0 0.0
        %3353 = vmatprep.subr.mxu0 0.0
        %3354 = vmatpush1.msra.mxu0 0.0
        %3355 = vmatprep.subr.mxu0 0.0
        %3356 = vmatpush1.msra.mxu0 0.0
        %3357 = vmatprep.subr.mxu0 0.0
        %3358 = vmatpush1.msra.mxu0 0.0
        %3359 = vmatprep.subr.mxu0 0.0
        %3360 = vmatpush1.msra.mxu0 0.0
        %3361 = vmatprep.subr.mxu0 0.0
        %3362 = vmatpush1.msra.mxu0 0.0
        %3363 = vmatprep.subr.mxu0 0.0
        %3364 = vmatpush1.msra.mxu0 0.0
        %3365 = vmatprep.subr.mxu0 0.0
        %3366 = vmatpush1.msra.mxu0 0.0
        %3367 = vmatprep.subr.mxu0 0.0
        %3368 = vmatpush1.msra.mxu0 0.0
        %3369 = vmatprep.subr.mxu0 0.0
        %3370 = vmatpush1.msra.mxu0 0.0
        %3371 = vmatprep.subr.mxu0 0.0
        %3372 = vmatpush1.msra.mxu0 0.0
        %3373 = vmatprep.subr.mxu0 0.0
        %3374 = vmatpush1.msra.mxu0 0.0
        %3375 = vmatprep.mubr.f32.mxu0 0.0
        %3376 = vmatmul.mubr.f32.gmra.mrb[0].mxu0 %v3309
        %v3377 = vpop.f32.mrb[0].mxu0
        %v3378 = vadd.f32 0.0, %v3377
        %v3379 = vpop.f32.mrb[0].mxu0
        %3380 = vdwg.mxu0
        %3381 = vmatprep.subr.mxu0 0.0
        %3382 = vmatpush1.msra.mxu0 %v1077
        %3383 = vmatprep.subr.mxu0 0.0
        %3384 = vmatpush1.msra.mxu0 %v1078
        %3385 = vmatprep.subr.mxu0 0.0
        %3386 = vmatpush1.msra.mxu0 %v1079
        %3387 = vmatprep.subr.mxu0 0.0
        %3388 = vmatpush1.msra.mxu0 %v1080
        %3389 = vmatprep.subr.mxu0 0.0
        %3390 = vmatpush1.msra.mxu0 0.0
        %3391 = vmatprep.subr.mxu0 0.0
        %3392 = vmatpush1.msra.mxu0 0.0
        %3393 = vmatprep.subr.mxu0 0.0
        %3394 = vmatpush1.msra.mxu0 0.0
        %3395 = vmatprep.subr.mxu0 0.0
        %3396 = vmatpush1.msra.mxu0 0.0
        %3397 = vmatprep.subr.mxu0 0.0
        %3398 = vmatpush1.msra.mxu0 0.0
        %3399 = vmatprep.subr.mxu0 0.0
        %3400 = vmatpush1.msra.mxu0 0.0
        %3401 = vmatprep.subr.mxu0 0.0
        %3402 = vmatpush1.msra.mxu0 0.0
        %3403 = vmatprep.subr.mxu0 0.0
        %3404 = vmatpush1.msra.mxu0 0.0
        %3405 = vmatprep.subr.mxu0 0.0
        %3406 = vmatpush1.msra.mxu0 0.0
        %3407 = vmatprep.subr.mxu0 0.0
        %3408 = vmatpush1.msra.mxu0 0.0
        %3409 = vmatprep.subr.mxu0 0.0
        %3410 = vmatpush1.msra.mxu0 0.0
        %3411 = vmatprep.subr.mxu0 0.0
        %3412 = vmatpush1.msra.mxu0 0.0
        %3413 = vmatprep.subr.mxu0 0.0
        %3414 = vmatpush1.msra.mxu0 0.0
        %3415 = vmatprep.subr.mxu0 0.0
        %3416 = vmatpush1.msra.mxu0 0.0
        %3417 = vmatprep.subr.mxu0 0.0
        %3418 = vmatpush1.msra.mxu0 0.0
        %3419 = vmatprep.subr.mxu0 0.0
        %3420 = vmatpush1.msra.mxu0 0.0
        %3421 = vmatprep.subr.mxu0 0.0
        %3422 = vmatpush1.msra.mxu0 0.0
        %3423 = vmatprep.subr.mxu0 0.0
        %3424 = vmatpush1.msra.mxu0 0.0
        %3425 = vmatprep.subr.mxu0 0.0
        %3426 = vmatpush1.msra.mxu0 0.0
        %3427 = vmatprep.subr.mxu0 0.0
        %3428 = vmatpush1.msra.mxu0 0.0
        %3429 = vmatprep.subr.mxu0 0.0
        %3430 = vmatpush1.msra.mxu0 0.0
        %3431 = vmatprep.subr.mxu0 0.0
        %3432 = vmatpush1.msra.mxu0 0.0
        %3433 = vmatprep.subr.mxu0 0.0
        %3434 = vmatpush1.msra.mxu0 0.0
        %3435 = vmatprep.subr.mxu0 0.0
        %3436 = vmatpush1.msra.mxu0 0.0
        %3437 = vmatprep.subr.mxu0 0.0
        %3438 = vmatpush1.msra.mxu0 0.0
        %3439 = vmatprep.subr.mxu0 0.0
        %3440 = vmatpush1.msra.mxu0 0.0
        %3441 = vmatprep.subr.mxu0 0.0
        %3442 = vmatpush1.msra.mxu0 0.0
        %3443 = vmatprep.subr.mxu0 0.0
        %3444 = vmatpush1.msra.mxu0 0.0
        %3445 = vmatprep.mubr.f32.mxu0 0.0
        %3446 = vmatmul.mubr.f32.gmra.mrb[0].mxu0 %v3309
        %v3447 = vpop.f32.mrb[0].mxu0
        %v3448 = vadd.f32 0.0, %v3447
        %v3449 = vpop.f32.mrb[0].mxu0
        %3450 = vdwg.mxu0
        %3451 = vmatprep.subr.mxu0 0.0
        %3452 = vmatpush1.msra.mxu0 %v1081
        %3453 = vmatprep.subr.mxu0 0.0
        %3454 = vmatpush1.msra.mxu0 %v1082
        %3455 = vmatprep.subr.mxu0 0.0
        %3456 = vmatpush1.msra.mxu0 %v1083
        %3457 = vmatprep.subr.mxu0 0.0
        %3458 = vmatpush1.msra.mxu0 %v1084
        %3459 = vmatprep.subr.mxu0 0.0
        %3460 = vmatpush1.msra.mxu0 0.0
        %3461 = vmatprep.subr.mxu0 0.0
        %3462 = vmatpush1.msra.mxu0 0.0
        %3463 = vmatprep.subr.mxu0 0.0
        %3464 = vmatpush1.msra.mxu0 0.0
        %3465 = vmatprep.subr.mxu0 0.0
        %3466 = vmatpush1.msra.mxu0 0.0
        %3467 = vmatprep.subr.mxu0 0.0
        %3468 = vmatpush1.msra.mxu0 0.0
        %3469 = vmatprep.subr.mxu0 0.0
        %3470 = vmatpush1.msra.mxu0 0.0
        %3471 = vmatprep.subr.mxu0 0.0
        %3472 = vmatpush1.msra.mxu0 0.0
        %3473 = vmatprep.subr.mxu0 0.0
        %3474 = vmatpush1.msra.mxu0 0.0
        %3475 = vmatprep.subr.mxu0 0.0
        %3476 = vmatpush1.msra.mxu0 0.0
        %3477 = vmatprep.subr.mxu0 0.0
        %3478 = vmatpush1.msra.mxu0 0.0
        %3479 = vmatprep.subr.mxu0 0.0
        %3480 = vmatpush1.msra.mxu0 0.0
        %3481 = vmatprep.subr.mxu0 0.0
        %3482 = vmatpush1.msra.mxu0 0.0
        %3483 = vmatprep.subr.mxu0 0.0
        %3484 = vmatpush1.msra.mxu0 0.0
        %3485 = vmatprep.subr.mxu0 0.0
        %3486 = vmatpush1.msra.mxu0 0.0
        %3487 = vmatprep.subr.mxu0 0.0
        %3488 = vmatpush1.msra.mxu0 0.0
        %3489 = vmatprep.subr.mxu0 0.0
        %3490 = vmatpush1.msra.mxu0 0.0
        %3491 = vmatprep.subr.mxu0 0.0
        %3492 = vmatpush1.msra.mxu0 0.0
        %3493 = vmatprep.subr.mxu0 0.0
        %3494 = vmatpush1.msra.mxu0 0.0
        %3495 = vmatprep.subr.mxu0 0.0
        %3496 = vmatpush1.msra.mxu0 0.0
        %3497 = vmatprep.subr.mxu0 0.0
        %3498 = vmatpush1.msra.mxu0 0.0
        %3499 = vmatprep.subr.mxu0 0.0
        %3500 = vmatpush1.msra.mxu0 0.0
        %3501 = vmatprep.subr.mxu0 0.0
        %3502 = vmatpush1.msra.mxu0 0.0
        %3503 = vmatprep.subr.mxu0 0.0
        %3504 = vmatpush1.msra.mxu0 0.0
        %3505 = vmatprep.subr.mxu0 0.0
        %3506 = vmatpush1.msra.mxu0 0.0
        %3507 = vmatprep.subr.mxu0 0.0
        %3508 = vmatpush1.msra.mxu0 0.0
        %3509 = vmatprep.subr.mxu0 0.0
        %3510 = vmatpush1.msra.mxu0 0.0
        %3511 = vmatprep.subr.mxu0 0.0
        %3512 = vmatpush1.msra.mxu0 0.0
        %3513 = vmatprep.subr.mxu0 0.0
        %3514 = vmatpush1.msra.mxu0 0.0
        %3515 = vmatprep.mubr.f32.mxu0 0.0
        %3516 = vmatmul.mubr.f32.gmra.mrb[0].mxu0 %v3309
        %v3517 = vpop.f32.mrb[0].mxu0
        %v3518 = vadd.f32 0.0, %v3517
        %v3519 = vpop.f32.mrb[0].mxu0
        %3520 = vdwg.mxu0
        %3521 = vmatprep.subr.mxu0 0.0
        %3522 = vmatpush1.msra.mxu0 %v1085
        %3523 = vmatprep.subr.mxu0 0.0
        %3524 = vmatpush1.msra.mxu0 %v1086
        %3525 = vmatprep.subr.mxu0 0.0
        %3526 = vmatpush1.msra.mxu0 %v1087
        %3527 = vmatprep.subr.mxu0 0.0
        %3528 = vmatpush1.msra.mxu0 %v1088
        %3529 = vmatprep.subr.mxu0 0.0
        %3530 = vmatpush1.msra.mxu0 0.0
        %3531 = vmatprep.subr.mxu0 0.0
        %3532 = vmatpush1.msra.mxu0 0.0
        %3533 = vmatprep.subr.mxu0 0.0
        %3534 = vmatpush1.msra.mxu0 0.0
        %3535 = vmatprep.subr.mxu0 0.0
        %3536 = vmatpush1.msra.mxu0 0.0
        %3537 = vmatprep.subr.mxu0 0.0
        %3538 = vmatpush1.msra.mxu0 0.0
        %3539 = vmatprep.subr.mxu0 0.0
        %3540 = vmatpush1.msra.mxu0 0.0
        %3541 = vmatprep.subr.mxu0 0.0
        %3542 = vmatpush1.msra.mxu0 0.0
        %3543 = vmatprep.subr.mxu0 0.0
        %3544 = vmatpush1.msra.mxu0 0.0
        %3545 = vmatprep.subr.mxu0 0.0
        %3546 = vmatpush1.msra.mxu0 0.0
        %3547 = vmatprep.subr.mxu0 0.0
        %3548 = vmatpush1.msra.mxu0 0.0
        %3549 = vmatprep.subr.mxu0 0.0
        %3550 = vmatpush1.msra.mxu0 0.0
        %3551 = vmatprep.subr.mxu0 0.0
        %3552 = vmatpush1.msra.mxu0 0.0
        %3553 = vmatprep.subr.mxu0 0.0
        %3554 = vmatpush1.msra.mxu0 0.0
        %3555 = vmatprep.subr.mxu0 0.0
        %3556 = vmatpush1.msra.mxu0 0.0
        %3557 = vmatprep.subr.mxu0 0.0
        %3558 = vmatpush1.msra.mxu0 0.0
        %3559 = vmatprep.subr.mxu0 0.0
        %3560 = vmatpush1.msra.mxu0 0.0
        %3561 = vmatprep.subr.mxu0 0.0
        %3562 = vmatpush1.msra.mxu0 0.0
        %3563 = vmatprep.subr.mxu0 0.0
        %3564 = vmatpush1.msra.mxu0 0.0
        %3565 = vmatprep.subr.mxu0 0.0
        %3566 = vmatpush1.msra.mxu0 0.0
        %3567 = vmatprep.subr.mxu0 0.0
        %3568 = vmatpush1.msra.mxu0 0.0
        %3569 = vmatprep.subr.mxu0 0.0
        %3570 = vmatpush1.msra.mxu0 0.0
        %3571 = vmatprep.subr.mxu0 0.0
        %3572 = vmatpush1.msra.mxu0 0.0
        %3573 = vmatprep.subr.mxu0 0.0
        %3574 = vmatpush1.msra.mxu0 0.0
        %3575 = vmatprep.subr.mxu0 0.0
        %3576 = vmatpush1.msra.mxu0 0.0
        %3577 = vmatprep.subr.mxu0 0.0
        %3578 = vmatpush1.msra.mxu0 0.0
        %3579 = vmatprep.subr.mxu0 0.0
        %3580 = vmatpush1.msra.mxu0 0.0
        %3581 = vmatprep.subr.mxu0 0.0
        %3582 = vmatpush1.msra.mxu0 0.0
        %3583 = vmatprep.subr.mxu0 0.0
        %3584 = vmatpush1.msra.mxu0 0.0
        %3585 = vmatprep.mubr.f32.mxu0 0.0
        %3586 = vmatmul.mubr.f32.gmra.mrb[0].mxu0 %v3309
        %v3587 = vpop.f32.mrb[0].mxu0
        %v3588 = vadd.f32 0.0, %v3587
        %v3589 = vpop.f32.mrb[0].mxu0
        %3590 = vdwg.mxu0
        %3591 = vmatprep.subr.mxu0 0.0
        %3592 = vmatpush1.msra.mxu0 %v1089
        %3593 = vmatprep.subr.mxu0 0.0
        %3594 = vmatpush1.msra.mxu0 %v1090
        %3595 = vmatprep.subr.mxu0 0.0
        %3596 = vmatpush1.msra.mxu0 %v1091
        %3597 = vmatprep.subr.mxu0 0.0
        %3598 = vmatpush1.msra.mxu0 %v1092
        %3599 = vmatprep.subr.mxu0 0.0
        %3600 = vmatpush1.msra.mxu0 0.0
        %3601 = vmatprep.subr.mxu0 0.0
        %3602 = vmatpush1.msra.mxu0 0.0
        %3603 = vmatprep.subr.mxu0 0.0
        %3604 = vmatpush1.msra.mxu0 0.0
        %3605 = vmatprep.subr.mxu0 0.0
        %3606 = vmatpush1.msra.mxu0 0.0
        %3607 = vmatprep.subr.mxu0 0.0
        %3608 = vmatpush1.msra.mxu0 0.0
        %3609 = vmatprep.subr.mxu0 0.0
        %3610 = vmatpush1.msra.mxu0 0.0
        %3611 = vmatprep.subr.mxu0 0.0
        %3612 = vmatpush1.msra.mxu0 0.0
        %3613 = vmatprep.subr.mxu0 0.0
        %3614 = vmatpush1.msra.mxu0 0.0
        %3615 = vmatprep.subr.mxu0 0.0
        %3616 = vmatpush1.msra.mxu0 0.0
        %3617 = vmatprep.subr.mxu0 0.0
        %3618 = vmatpush1.msra.mxu0 0.0
        %3619 = vmatprep.subr.mxu0 0.0
        %3620 = vmatpush1.msra.mxu0 0.0
        %3621 = vmatprep.subr.mxu0 0.0
        %3622 = vmatpush1.msra.mxu0 0.0
        %3623 = vmatprep.subr.mxu0 0.0
        %3624 = vmatpush1.msra.mxu0 0.0
        %3625 = vmatprep.subr.mxu0 0.0
        %3626 = vmatpush1.msra.mxu0 0.0
        %3627 = vmatprep.subr.mxu0 0.0
        %3628 = vmatpush1.msra.mxu0 0.0
        %3629 = vmatprep.subr.mxu0 0.0
        %3630 = vmatpush1.msra.mxu0 0.0
        %3631 = vmatprep.subr.mxu0 0.0
        %3632 = vmatpush1.msra.mxu0 0.0
        %3633 = vmatprep.subr.mxu0 0.0
        %3634 = vmatpush1.msra.mxu0 0.0
        %3635 = vmatprep.subr.mxu0 0.0
        %3636 = vmatpush1.msra.mxu0 0.0
        %3637 = vmatprep.subr.mxu0 0.0
        %3638 = vmatpush1.msra.mxu0 0.0
        %3639 = vmatprep.subr.mxu0 0.0
        %3640 = vmatpush1.msra.mxu0 0.0
        %3641 = vmatprep.subr.mxu0 0.0
        %3642 = vmatpush1.msra.mxu0 0.0
        %3643 = vmatprep.subr.mxu0 0.0
        %3644 = vmatpush1.msra.mxu0 0.0
        %3645 = vmatprep.subr.mxu0 0.0
        %3646 = vmatpush1.msra.mxu0 0.0
        %3647 = vmatprep.subr.mxu0 0.0
        %3648 = vmatpush1.msra.mxu0 0.0
        %3649 = vmatprep.subr.mxu0 0.0
        %3650 = vmatpush1.msra.mxu0 0.0
        %3651 = vmatprep.subr.mxu0 0.0
        %3652 = vmatpush1.msra.mxu0 0.0
        %3653 = vmatprep.subr.mxu0 0.0
        %3654 = vmatpush1.msra.mxu0 0.0
        %3655 = vmatprep.mubr.f32.mxu0 0.0
        %3656 = vmatmul.mubr.f32.gmra.mrb[0].mxu0 %v1517
        %v3657 = vpop.f32.mrb[0].mxu0
        %v3658 = vadd.f32 0.0, %v3657
        %v3659 = vpop.f32.mrb[0].mxu0
        %3660 = vmatprep.mubr.f32.mxu0 0.0
        %3661 = vmatmul.mubr.f32.gmra.mrb[0].mxu0 %v1520
        %v3662 = vpop.f32.mrb[0].mxu0
        %v3663 = vadd.f32 0.0, %v3662
        %v3664 = vpop.f32.mrb[0].mxu0
        %3665 = vmatprep.mubr.f32.mxu0 0.0
        %3666 = vmatmul.mubr.f32.gmra.mrb[0].mxu0 %v3309
        %v3667 = vpop.f32.mrb[0].mxu0
        %v3668 = vadd.f32 0.0, %v3667
        %v3669 = vpop.f32.mrb[0].mxu0
        %3670 = vdwg.mxu0
        %3671 = vmatprep.subr.mxu0 0.0
        %3672 = vmatpush1.msra.mxu0 %v1093
        %3673 = vmatprep.subr.mxu0 0.0
        %3674 = vmatpush1.msra.mxu0 %v1094
        %3675 = vmatprep.subr.mxu0 0.0
        %3676 = vmatpush1.msra.mxu0 %v1095
        %3677 = vmatprep.subr.mxu0 0.0
        %3678 = vmatpush1.msra.mxu0 %v1096
        %3679 = vmatprep.subr.mxu0 0.0
        %3680 = vmatpush1.msra.mxu0 0.0
        %3681 = vmatprep.subr.mxu0 0.0
        %3682 = vmatpush1.msra.mxu0 0.0
        %3683 = vmatprep.subr.mxu0 0.0
        %3684 = vmatpush1.msra.mxu0 0.0
        %3685 = vmatprep.subr.mxu0 0.0
        %3686 = vmatpush1.msra.mxu0 0.0
        %3687 = vmatprep.subr.mxu0 0.0
        %3688 = vmatpush1.msra.mxu0 0.0
        %3689 = vmatprep.subr.mxu0 0.0
        %3690 = vmatpush1.msra.mxu0 0.0
        %3691 = vmatprep.subr.mxu0 0.0
        %3692 = vmatpush1.msra.mxu0 0.0
        %3693 = vmatprep.subr.mxu0 0.0
        %3694 = vmatpush1.msra.mxu0 0.0
        %3695 = vmatprep.subr.mxu0 0.0
        %3696 = vmatpush1.msra.mxu0 0.0
        %3697 = vmatprep.subr.mxu0 0.0
        %3698 = vmatpush1.msra.mxu0 0.0
        %3699 = vmatprep.subr.mxu0 0.0
        %3700 = vmatpush1.msra.mxu0 0.0
        %3701 = vmatprep.subr.mxu0 0.0
        %3702 = vmatpush1.msra.mxu0 0.0
        %3703 = vmatprep.subr.mxu0 0.0
        %3704 = vmatpush1.msra.mxu0 0.0
        %3705 = vmatprep.subr.mxu0 0.0
        %3706 = vmatpush1.msra.mxu0 0.0
        %3707 = vmatprep.subr.mxu0 0.0
        %3708 = vmatpush1.msra.mxu0 0.0
        %3709 = vmatprep.subr.mxu0 0.0
        %3710 = vmatpush1.msra.mxu0 0.0
        %3711 = vmatprep.subr.mxu0 0.0
        %3712 = vmatpush1.msra.mxu0 0.0
        %3713 = vmatprep.subr.mxu0 0.0
        %3714 = vmatpush1.msra.mxu0 0.0
        %3715 = vmatprep.subr.mxu0 0.0
        %3716 = vmatpush1.msra.mxu0 0.0
        %3717 = vmatprep.subr.mxu0 0.0
        %3718 = vmatpush1.msra.mxu0 0.0
        %3719 = vmatprep.subr.mxu0 0.0
        %3720 = vmatpush1.msra.mxu0 0.0
        %3721 = vmatprep.subr.mxu0 0.0
        %3722 = vmatpush1.msra.mxu0 0.0
        %3723 = vmatprep.subr.mxu0 0.0
        %3724 = vmatpush1.msra.mxu0 0.0
        %3725 = vmatprep.subr.mxu0 0.0
        %3726 = vmatpush1.msra.mxu0 0.0
        %3727 = vmatprep.subr.mxu0 0.0
        %3728 = vmatpush1.msra.mxu0 0.0
        %3729 = vmatprep.subr.mxu0 0.0
        %3730 = vmatpush1.msra.mxu0 0.0
        %3731 = vmatprep.subr.mxu0 0.0
        %3732 = vmatpush1.msra.mxu0 0.0
        %3733 = vmatprep.subr.mxu0 0.0
        %3734 = vmatpush1.msra.mxu0 0.0
        %3735 = vmatprep.mubr.f32.mxu0 0.0
        %3736 = vmatmul.mubr.f32.gmra.mrb[0].mxu0 %v1517
        %v3737 = vpop.f32.mrb[0].mxu0
        %v3738 = vadd.f32 0.0, %v3737
        %v3739 = vpop.f32.mrb[0].mxu0
        %3740 = vmatprep.mubr.f32.mxu0 0.0
        %3741 = vmatmul.mubr.f32.gmra.mrb[0].mxu0 %v1520
        %v3742 = vpop.f32.mrb[0].mxu0
        %v3743 = vadd.f32 0.0, %v3742
        %v3744 = vpop.f32.mrb[0].mxu0
        %3745 = vmatprep.mubr.f32.mxu0 0.0
        %3746 = vmatmul.mubr.f32.gmra.mrb[0].mxu0 %v3309
        %v3747 = vpop.f32.mrb[0].mxu0
        %v3748 = vadd.f32 0.0, %v3747
        %v3749 = vpop.f32.mrb[0].mxu0
        %3750 = vdwg.mxu0
        %3751 = vmatprep.subr.mxu0 0.0
        %3752 = vmatpush1.msra.mxu0 %v1097
        %3753 = vmatprep.subr.mxu0 0.0
        %3754 = vmatpush1.msra.mxu0 %v1098
        %3755 = vmatprep.subr.mxu0 0.0
        %3756 = vmatpush1.msra.mxu0 %v1099
        %3757 = vmatprep.subr.mxu0 0.0
        %3758 = vmatpush1.msra.mxu0 %v1100
        %3759 = vmatprep.subr.mxu0 0.0
        %3760 = vmatpush1.msra.mxu0 0.0
        %3761 = vmatprep.subr.mxu0 0.0
        %3762 = vmatpush1.msra.mxu0 0.0
        %3763 = vmatprep.subr.mxu0 0.0
        %3764 = vmatpush1.msra.mxu0 0.0
        %3765 = vmatprep.subr.mxu0 0.0
        %3766 = vmatpush1.msra.mxu0 0.0
        %3767 = vmatprep.subr.mxu0 0.0
        %3768 = vmatpush1.msra.mxu0 0.0
        %3769 = vmatprep.subr.mxu0 0.0
        %3770 = vmatpush1.msra.mxu0 0.0
        %3771 = vmatprep.subr.mxu0 0.0
        %3772 = vmatpush1.msra.mxu0 0.0
        %3773 = vmatprep.subr.mxu0 0.0
        %3774 = vmatpush1.msra.mxu0 0.0
        %3775 = vmatprep.subr.mxu0 0.0
        %3776 = vmatpush1.msra.mxu0 0.0
        %3777 = vmatprep.subr.mxu0 0.0
        %3778 = vmatpush1.msra.mxu0 0.0
        %3779 = vmatprep.subr.mxu0 0.0
        %3780 = vmatpush1.msra.mxu0 0.0
        %3781 = vmatprep.subr.mxu0 0.0
        %3782 = vmatpush1.msra.mxu0 0.0
        %3783 = vmatprep.subr.mxu0 0.0
        %3784 = vmatpush1.msra.mxu0 0.0
        %3785 = vmatprep.subr.mxu0 0.0
        %3786 = vmatpush1.msra.mxu0 0.0
        %3787 = vmatprep.subr.mxu0 0.0
        %3788 = vmatpush1.msra.mxu0 0.0
        %3789 = vmatprep.subr.mxu0 0.0
        %3790 = vmatpush1.msra.mxu0 0.0
        %3791 = vmatprep.subr.mxu0 0.0
        %3792 = vmatpush1.msra.mxu0 0.0
        %3793 = vmatprep.subr.mxu0 0.0
        %3794 = vmatpush1.msra.mxu0 0.0
        %3795 = vmatprep.subr.mxu0 0.0
        %3796 = vmatpush1.msra.mxu0 0.0
        %3797 = vmatprep.subr.mxu0 0.0
        %3798 = vmatpush1.msra.mxu0 0.0
        %3799 = vmatprep.subr.mxu0 0.0
        %3800 = vmatpush1.msra.mxu0 0.0
        %3801 = vmatprep.subr.mxu0 0.0
        %3802 = vmatpush1.msra.mxu0 0.0
        %3803 = vmatprep.subr.mxu0 0.0
        %3804 = vmatpush1.msra.mxu0 0.0
        %3805 = vmatprep.subr.mxu0 0.0
        %3806 = vmatpush1.msra.mxu0 0.0
        %3807 = vmatprep.subr.mxu0 0.0
        %3808 = vmatpush1.msra.mxu0 0.0
        %3809 = vmatprep.subr.mxu0 0.0
        %3810 = vmatpush1.msra.mxu0 0.0
        %3811 = vmatprep.subr.mxu0 0.0
        %3812 = vmatpush1.msra.mxu0 0.0
        %3813 = vmatprep.subr.mxu0 0.0
        %3814 = vmatpush1.msra.mxu0 0.0
        %3815 = vmatprep.mubr.f32.mxu0 0.0
        %3816 = vmatmul.mubr.f32.gmra.mrb[0].mxu0 %v1517
        %v3817 = vpop.f32.mrb[0].mxu0
        %v3818 = vadd.f32 0.0, %v3817
        %v3819 = vpop.f32.mrb[0].mxu0
        %3820 = vmatprep.mubr.f32.mxu0 0.0
        %3821 = vmatmul.mubr.f32.gmra.mrb[0].mxu0 %v1520
        %v3822 = vpop.f32.mrb[0].mxu0
        %v3823 = vadd.f32 0.0, %v3822
        %v3824 = vpop.f32.mrb[0].mxu0
        %3825 = vmatprep.mubr.f32.mxu0 0.0
        %3826 = vmatmul.mubr.f32.gmra.mrb[0].mxu0 %v3309
        %v3827 = vpop.f32.mrb[0].mxu0
        %v3828 = vadd.f32 0.0, %v3827
        %v3829 = vpop.f32.mrb[0].mxu0
        %3830 = vdwg.mxu0
        %3831 = vmatprep.subr.mxu0 0.0
        %3832 = vmatpush1.msra.mxu0 %v1101
        %3833 = vmatprep.subr.mxu0 0.0
        %3834 = vmatpush1.msra.mxu0 %v1102
        %3835 = vmatprep.subr.mxu0 0.0
        %3836 = vmatpush1.msra.mxu0 %v1103
        %3837 = vmatprep.subr.mxu0 0.0
        %3838 = vmatpush1.msra.mxu0 %v1104
        %3839 = vmatprep.subr.mxu0 0.0
        %3840 = vmatpush1.msra.mxu0 0.0
        %3841 = vmatprep.subr.mxu0 0.0
        %3842 = vmatpush1.msra.mxu0 0.0
        %3843 = vmatprep.subr.mxu0 0.0
        %3844 = vmatpush1.msra.mxu0 0.0
        %3845 = vmatprep.subr.mxu0 0.0
        %3846 = vmatpush1.msra.mxu0 0.0
        %3847 = vmatprep.subr.mxu0 0.0
        %3848 = vmatpush1.msra.mxu0 0.0
        %3849 = vmatprep.subr.mxu0 0.0
        %3850 = vmatpush1.msra.mxu0 0.0
        %3851 = vmatprep.subr.mxu0 0.0
        %3852 = vmatpush1.msra.mxu0 0.0
        %3853 = vmatprep.subr.mxu0 0.0
        %3854 = vmatpush1.msra.mxu0 0.0
        %3855 = vmatprep.subr.mxu0 0.0
        %3856 = vmatpush1.msra.mxu0 0.0
        %3857 = vmatprep.subr.mxu0 0.0
        %3858 = vmatpush1.msra.mxu0 0.0
        %3859 = vmatprep.subr.mxu0 0.0
        %3860 = vmatpush1.msra.mxu0 0.0
        %3861 = vmatprep.subr.mxu0 0.0
        %3862 = vmatpush1.msra.mxu0 0.0
        %3863 = vmatprep.subr.mxu0 0.0
        %3864 = vmatpush1.msra.mxu0 0.0
        %3865 = vmatprep.subr.mxu0 0.0
        %3866 = vmatpush1.msra.mxu0 0.0
        %3867 = vmatprep.subr.mxu0 0.0
        %3868 = vmatpush1.msra.mxu0 0.0
        %3869 = vmatprep.subr.mxu0 0.0
        %3870 = vmatpush1.msra.mxu0 0.0
        %3871 = vmatprep.subr.mxu0 0.0
        %3872 = vmatpush1.msra.mxu0 0.0
        %3873 = vmatprep.subr.mxu0 0.0
        %3874 = vmatpush1.msra.mxu0 0.0
        %3875 = vmatprep.subr.mxu0 0.0
        %3876 = vmatpush1.msra.mxu0 0.0
        %3877 = vmatprep.subr.mxu0 0.0
        %3878 = vmatpush1.msra.mxu0 0.0
        %3879 = vmatprep.subr.mxu0 0.0
        %3880 = vmatpush1.msra.mxu0 0.0
        %3881 = vmatprep.subr.mxu0 0.0
        %3882 = vmatpush1.msra.mxu0 0.0
        %3883 = vmatprep.subr.mxu0 0.0
        %3884 = vmatpush1.msra.mxu0 0.0
        %3885 = vmatprep.subr.mxu0 0.0
        %3886 = vmatpush1.msra.mxu0 0.0
        %3887 = vmatprep.subr.mxu0 0.0
        %3888 = vmatpush1.msra.mxu0 0.0
        %3889 = vmatprep.subr.mxu0 0.0
        %3890 = vmatpush1.msra.mxu0 0.0
        %3891 = vmatprep.subr.mxu0 0.0
        %3892 = vmatpush1.msra.mxu0 0.0
        %3893 = vmatprep.subr.mxu0 0.0
        %3894 = vmatpush1.msra.mxu0 0.0
        %3895 = vmatprep.mubr.f32.mxu0 0.0
        %3896 = vmatmul.mubr.f32.gmra.mrb[0].mxu0 %v1517
        %v3897 = vpop.f32.mrb[0].mxu0
        %v3898 = vadd.f32 0.0, %v3897
        %v3899 = vpop.f32.mrb[0].mxu0
        %3900 = vmatprep.mubr.f32.mxu0 0.0
        %3901 = vmatmul.mubr.f32.gmra.mrb[0].mxu0 %v1520
        %v3902 = vpop.f32.mrb[0].mxu0
        %v3903 = vadd.f32 0.0, %v3902
        %v3904 = vpop.f32.mrb[0].mxu0
        %3905 = vmatprep.mubr.f32.mxu0 0.0
        %3906 = vmatmul.mubr.f32.gmra.mrb[0].mxu0 %v3309
        %v3907 = vpop.f32.mrb[0].mxu0
        %v3908 = vadd.f32 0.0, %v3907
        %v3909 = vpop.f32.mrb[0].mxu0
        %3910 = vdwg.mxu0
        %3911 = vmatprep.subr.mxu0 0.0
        %3912 = vmatpush1.msra.mxu0 %v1105
        %3913 = vmatprep.subr.mxu0 0.0
        %3914 = vmatpush1.msra.mxu0 %v1106
        %3915 = vmatprep.subr.mxu0 0.0
        %3916 = vmatpush1.msra.mxu0 %v1107
        %3917 = vmatprep.subr.mxu0 0.0
        %3918 = vmatpush1.msra.mxu0 %v1108
        %3919 = vmatprep.subr.mxu0 0.0
        %3920 = vmatpush1.msra.mxu0 0.0
        %3921 = vmatprep.subr.mxu0 0.0
        %3922 = vmatpush1.msra.mxu0 0.0
        %3923 = vmatprep.subr.mxu0 0.0
        %3924 = vmatpush1.msra.mxu0 0.0
        %3925 = vmatprep.subr.mxu0 0.0
        %3926 = vmatpush1.msra.mxu0 0.0
        %3927 = vmatprep.subr.mxu0 0.0
        %3928 = vmatpush1.msra.mxu0 0.0
        %3929 = vmatprep.subr.mxu0 0.0
        %3930 = vmatpush1.msra.mxu0 0.0
        %3931 = vmatprep.subr.mxu0 0.0
        %3932 = vmatpush1.msra.mxu0 0.0
        %3933 = vmatprep.subr.mxu0 0.0
        %3934 = vmatpush1.msra.mxu0 0.0
        %3935 = vmatprep.subr.mxu0 0.0
        %3936 = vmatpush1.msra.mxu0 0.0
        %3937 = vmatprep.subr.mxu0 0.0
        %3938 = vmatpush1.msra.mxu0 0.0
        %3939 = vmatprep.subr.mxu0 0.0
        %3940 = vmatpush1.msra.mxu0 0.0
        %3941 = vmatprep.subr.mxu0 0.0
        %3942 = vmatpush1.msra.mxu0 0.0
        %3943 = vmatprep.subr.mxu0 0.0
        %3944 = vmatpush1.msra.mxu0 0.0
        %3945 = vmatprep.subr.mxu0 0.0
        %3946 = vmatpush1.msra.mxu0 0.0
        %3947 = vmatprep.subr.mxu0 0.0
        %3948 = vmatpush1.msra.mxu0 0.0
        %3949 = vmatprep.subr.mxu0 0.0
        %3950 = vmatpush1.msra.mxu0 0.0
        %3951 = vmatprep.subr.mxu0 0.0
        %3952 = vmatpush1.msra.mxu0 0.0
        %3953 = vmatprep.subr.mxu0 0.0
        %3954 = vmatpush1.msra.mxu0 0.0
        %3955 = vmatprep.subr.mxu0 0.0
        %3956 = vmatpush1.msra.mxu0 0.0
        %3957 = vmatprep.subr.mxu0 0.0
        %3958 = vmatpush1.msra.mxu0 0.0
        %3959 = vmatprep.subr.mxu0 0.0
        %3960 = vmatpush1.msra.mxu0 0.0
        %3961 = vmatprep.subr.mxu0 0.0
        %3962 = vmatpush1.msra.mxu0 0.0
        %3963 = vmatprep.subr.mxu0 0.0
        %3964 = vmatpush1.msra.mxu0 0.0
        %3965 = vmatprep.subr.mxu0 0.0
        %3966 = vmatpush1.msra.mxu0 0.0
        %3967 = vmatprep.subr.mxu0 0.0
        %3968 = vmatpush1.msra.mxu0 0.0
        %3969 = vmatprep.subr.mxu0 0.0
        %3970 = vmatpush1.msra.mxu0 0.0
        %3971 = vmatprep.subr.mxu0 0.0
        %3972 = vmatpush1.msra.mxu0 0.0
        %3973 = vmatprep.subr.mxu0 0.0
        %3974 = vmatpush1.msra.mxu0 0.0
        %3975 = vmatprep.mubr.f32.mxu0 0.0
        %3976 = vmatmul.mubr.f32.gmra.mrb[0].mxu0 %v1517
        %v3977 = vpop.f32.mrb[0].mxu0
        %v3978 = vadd.f32 0.0, %v3977
        %v3979 = vpop.f32.mrb[0].mxu0
        %3980 = vmatprep.mubr.f32.mxu0 0.0
        %3981 = vmatmul.mubr.f32.gmra.mrb[0].mxu0 %v1520
        %v3982 = vpop.f32.mrb[0].mxu0
        %v3983 = vadd.f32 0.0, %v3982
        %v3984 = vpop.f32.mrb[0].mxu0
        %3985 = vmatprep.mubr.f32.mxu0 0.0
        %3986 = vmatmul.mubr.f32.gmra.mrb[0].mxu0 %v3309
        %v3987 = vpop.f32.mrb[0].mxu0
        %v3988 = vadd.f32 0.0, %v3987
        %v3989 = vpop.f32.mrb[0].mxu0
        %3990 = vdwg.mxu0
        %3991 = vmatprep.subr.mxu0 0.0
        %3992 = vmatpush1.msra.mxu0 %v1109
        %3993 = vmatprep.subr.mxu0 0.0
        %3994 = vmatpush1.msra.mxu0 %v1110
        %3995 = vmatprep.subr.mxu0 0.0
        %3996 = vmatpush1.msra.mxu0 %v1111
        %3997 = vmatprep.subr.mxu0 0.0
        %3998 = vmatpush1.msra.mxu0 %v1112
        %3999 = vmatprep.subr.mxu0 0.0
        %4000 = vmatpush1.msra.mxu0 0.0
        %4001 = vmatprep.subr.mxu0 0.0
        %4002 = vmatpush1.msra.mxu0 0.0
        %4003 = vmatprep.subr.mxu0 0.0
        %4004 = vmatpush1.msra.mxu0 0.0
        %4005 = vmatprep.subr.mxu0 0.0
        %4006 = vmatpush1.msra.mxu0 0.0
        %4007 = vmatprep.subr.mxu0 0.0
        %4008 = vmatpush1.msra.mxu0 0.0
        %4009 = vmatprep.subr.mxu0 0.0
        %4010 = vmatpush1.msra.mxu0 0.0
        %4011 = vmatprep.subr.mxu0 0.0
        %4012 = vmatpush1.msra.mxu0 0.0
        %4013 = vmatprep.subr.mxu0 0.0
        %4014 = vmatpush1.msra.mxu0 0.0
        %4015 = vmatprep.subr.mxu0 0.0
        %4016 = vmatpush1.msra.mxu0 0.0
        %4017 = vmatprep.subr.mxu0 0.0
        %4018 = vmatpush1.msra.mxu0 0.0
        %4019 = vmatprep.subr.mxu0 0.0
        %4020 = vmatpush1.msra.mxu0 0.0
        %4021 = vmatprep.subr.mxu0 0.0
        %4022 = vmatpush1.msra.mxu0 0.0
        %4023 = vmatprep.subr.mxu0 0.0
        %4024 = vmatpush1.msra.mxu0 0.0
        %4025 = vmatprep.subr.mxu0 0.0
        %4026 = vmatpush1.msra.mxu0 0.0
        %4027 = vmatprep.subr.mxu0 0.0
        %4028 = vmatpush1.msra.mxu0 0.0
        %4029 = vmatprep.subr.mxu0 0.0
        %4030 = vmatpush1.msra.mxu0 0.0
        %4031 = vmatprep.subr.mxu0 0.0
        %4032 = vmatpush1.msra.mxu0 0.0
        %4033 = vmatprep.subr.mxu0 0.0
        %4034 = vmatpush1.msra.mxu0 0.0
        %4035 = vmatprep.subr.mxu0 0.0
        %4036 = vmatpush1.msra.mxu0 0.0
        %4037 = vmatprep.subr.mxu0 0.0
        %4038 = vmatpush1.msra.mxu0 0.0
        %4039 = vmatprep.subr.mxu0 0.0
        %4040 = vmatpush1.msra.mxu0 0.0
        %4041 = vmatprep.subr.mxu0 0.0
        %4042 = vmatpush1.msra.mxu0 0.0
        %4043 = vmatprep.subr.mxu0 0.0
        %4044 = vmatpush1.msra.mxu0 0.0
        %4045 = vmatprep.subr.mxu0 0.0
        %4046 = vmatpush1.msra.mxu0 0.0
        %4047 = vmatprep.subr.mxu0 0.0
        %4048 = vmatpush1.msra.mxu0 0.0
        %4049 = vmatprep.subr.mxu0 0.0
        %4050 = vmatpush1.msra.mxu0 0.0
        %4051 = vmatprep.subr.mxu0 0.0
        %4052 = vmatpush1.msra.mxu0 0.0
        %4053 = vmatprep.subr.mxu0 0.0
        %4054 = vmatpush1.msra.mxu0 0.0
        %4055 = vmatprep.mubr.f32.mxu0 0.0
        %4056 = vmatmul.mubr.f32.gmra.mrb[0].mxu0 %v1517
        %v4057 = vpop.f32.mrb[0].mxu0
        %v4058 = vadd.f32 0.0, %v4057
        %v4059 = vpop.f32.mrb[0].mxu0
        %4060 = vmatprep.mubr.f32.mxu0 0.0
        %4061 = vmatmul.mubr.f32.gmra.mrb[0].mxu0 %v1520
        %v4062 = vpop.f32.mrb[0].mxu0
        %v4063 = vadd.f32 0.0, %v4062
        %v4064 = vpop.f32.mrb[0].mxu0
        %4065 = vmatprep.mubr.f32.mxu0 0.0
        %4066 = vmatmul.mubr.f32.gmra.mrb[0].mxu0 %v3309
        %v4067 = vpop.f32.mrb[0].mxu0
        %v4068 = vadd.f32 0.0, %v4067
        %v4069 = vpop.f32.mrb[0].mxu0
        %4070 = vdwg.mxu0
        %4071 = vmatprep.subr.mxu0 0.0
        %4072 = vmatpush1.msra.mxu0 %v1113
        %4073 = vmatprep.subr.mxu0 0.0
        %4074 = vmatpush1.msra.mxu0 %v1114
        %4075 = vmatprep.subr.mxu0 0.0
        %4076 = vmatpush1.msra.mxu0 %v1115
        %4077 = vmatprep.subr.mxu0 0.0
        %4078 = vmatpush1.msra.mxu0 %v1116
        %4079 = vmatprep.subr.mxu0 0.0
        %4080 = vmatpush1.msra.mxu0 0.0
        %4081 = vmatprep.subr.mxu0 0.0
        %4082 = vmatpush1.msra.mxu0 0.0
        %4083 = vmatprep.subr.mxu0 0.0
        %4084 = vmatpush1.msra.mxu0 0.0
        %4085 = vmatprep.subr.mxu0 0.0
        %4086 = vmatpush1.msra.mxu0 0.0
        %4087 = vmatprep.subr.mxu0 0.0
        %4088 = vmatpush1.msra.mxu0 0.0
        %4089 = vmatprep.subr.mxu0 0.0
        %4090 = vmatpush1.msra.mxu0 0.0
        %4091 = vmatprep.subr.mxu0 0.0
        %4092 = vmatpush1.msra.mxu0 0.0
        %4093 = vmatprep.subr.mxu0 0.0
        %4094 = vmatpush1.msra.mxu0 0.0
        %4095 = vmatprep.subr.mxu0 0.0
        %4096 = vmatpush1.msra.mxu0 0.0
        %4097 = vmatprep.subr.mxu0 0.0
        %4098 = vmatpush1.msra.mxu0 0.0
        %4099 = vmatprep.subr.mxu0 0.0
        %4100 = vmatpush1.msra.mxu0 0.0
        %4101 = vmatprep.subr.mxu0 0.0
        %4102 = vmatpush1.msra.mxu0 0.0
        %4103 = vmatprep.subr.mxu0 0.0
        %4104 = vmatpush1.msra.mxu0 0.0
        %4105 = vmatprep.subr.mxu0 0.0
        %4106 = vmatpush1.msra.mxu0 0.0
        %4107 = vmatprep.subr.mxu0 0.0
        %4108 = vmatpush1.msra.mxu0 0.0
        %4109 = vmatprep.subr.mxu0 0.0
        %4110 = vmatpush1.msra.mxu0 0.0
        %4111 = vmatprep.subr.mxu0 0.0
        %4112 = vmatpush1.msra.mxu0 0.0
        %4113 = vmatprep.subr.mxu0 0.0
        %4114 = vmatpush1.msra.mxu0 0.0
        %4115 = vmatprep.subr.mxu0 0.0
        %4116 = vmatpush1.msra.mxu0 0.0
        %4117 = vmatprep.subr.mxu0 0.0
        %4118 = vmatpush1.msra.mxu0 0.0
        %4119 = vmatprep.subr.mxu0 0.0
        %4120 = vmatpush1.msra.mxu0 0.0
        %4121 = vmatprep.subr.mxu0 0.0
        %4122 = vmatpush1.msra.mxu0 0.0
        %4123 = vmatprep.subr.mxu0 0.0
        %4124 = vmatpush1.msra.mxu0 0.0
        %4125 = vmatprep.subr.mxu0 0.0
        %4126 = vmatpush1.msra.mxu0 0.0
        %4127 = vmatprep.subr.mxu0 0.0
        %4128 = vmatpush1.msra.mxu0 0.0
        %4129 = vmatprep.subr.mxu0 0.0
        %4130 = vmatpush1.msra.mxu0 0.0
        %4131 = vmatprep.subr.mxu0 0.0
        %4132 = vmatpush1.msra.mxu0 0.0
        %4133 = vmatprep.subr.mxu0 0.0
        %4134 = vmatpush1.msra.mxu0 0.0
        %4135 = vmatprep.mubr.f32.mxu0 0.0
        %4136 = vmatmul.mubr.f32.gmra.mrb[0].mxu0 %v1517
        %v4137 = vpop.f32.mrb[0].mxu0
        %v4138 = vadd.f32 0.0, %v4137
        %v4139 = vpop.f32.mrb[0].mxu0
        %4140 = vmatprep.mubr.f32.mxu0 0.0
        %4141 = vmatmul.mubr.f32.gmra.mrb[0].mxu0 %v1520
        %v4142 = vpop.f32.mrb[0].mxu0
        %v4143 = vadd.f32 0.0, %v4142
        %v4144 = vpop.f32.mrb[0].mxu0
        %4145 = vmatprep.mubr.f32.mxu0 0.0
        %4146 = vmatmul.mubr.f32.gmra.mrb[0].mxu0 %v3309
        %v4147 = vpop.f32.mrb[0].mxu0
        %v4148 = vadd.f32 0.0, %v4147
        %v4149 = vpop.f32.mrb[0].mxu0
        %4150 = vdwg.mxu0
        %4151 = vmatprep.subr.mxu0 0.0
        %4152 = vmatpush1.msra.mxu0 %v1117
        %4153 = vmatprep.subr.mxu0 0.0
        %4154 = vmatpush1.msra.mxu0 %v1118
        %4155 = vmatprep.subr.mxu0 0.0
        %4156 = vmatpush1.msra.mxu0 %v1119
        %4157 = vmatprep.subr.mxu0 0.0
        %4158 = vmatpush1.msra.mxu0 %v1120
        %4159 = vmatprep.subr.mxu0 0.0
        %4160 = vmatpush1.msra.mxu0 0.0
        %4161 = vmatprep.subr.mxu0 0.0
        %4162 = vmatpush1.msra.mxu0 0.0
        %4163 = vmatprep.subr.mxu0 0.0
        %4164 = vmatpush1.msra.mxu0 0.0
        %4165 = vmatprep.subr.mxu0 0.0
        %4166 = vmatpush1.msra.mxu0 0.0
        %4167 = vmatprep.subr.mxu0 0.0
        %4168 = vmatpush1.msra.mxu0 0.0
        %4169 = vmatprep.subr.mxu0 0.0
        %4170 = vmatpush1.msra.mxu0 0.0
        %4171 = vmatprep.subr.mxu0 0.0
        %4172 = vmatpush1.msra.mxu0 0.0
        %4173 = vmatprep.subr.mxu0 0.0
        %4174 = vmatpush1.msra.mxu0 0.0
        %4175 = vmatprep.subr.mxu0 0.0
        %4176 = vmatpush1.msra.mxu0 0.0
        %4177 = vmatprep.subr.mxu0 0.0
        %4178 = vmatpush1.msra.mxu0 0.0
        %4179 = vmatprep.subr.mxu0 0.0
        %4180 = vmatpush1.msra.mxu0 0.0
        %4181 = vmatprep.subr.mxu0 0.0
        %4182 = vmatpush1.msra.mxu0 0.0
        %4183 = vmatprep.subr.mxu0 0.0
        %4184 = vmatpush1.msra.mxu0 0.0
        %4185 = vmatprep.subr.mxu0 0.0
        %4186 = vmatpush1.msra.mxu0 0.0
        %4187 = vmatprep.subr.mxu0 0.0
        %4188 = vmatpush1.msra.mxu0 0.0
        %4189 = vmatprep.subr.mxu0 0.0
        %4190 = vmatpush1.msra.mxu0 0.0
        %4191 = vmatprep.subr.mxu0 0.0
        %4192 = vmatpush1.msra.mxu0 0.0
        %4193 = vmatprep.subr.mxu0 0.0
        %4194 = vmatpush1.msra.mxu0 0.0
        %4195 = vmatprep.subr.mxu0 0.0
        %4196 = vmatpush1.msra.mxu0 0.0
        %4197 = vmatprep.subr.mxu0 0.0
        %4198 = vmatpush1.msra.mxu0 0.0
        %4199 = vmatprep.subr.mxu0 0.0
        %4200 = vmatpush1.msra.mxu0 0.0
        %4201 = vmatprep.subr.mxu0 0.0
        %4202 = vmatpush1.msra.mxu0 0.0
        %4203 = vmatprep.subr.mxu0 0.0
        %4204 = vmatpush1.msra.mxu0 0.0
        %4205 = vmatprep.subr.mxu0 0.0
        %4206 = vmatpush1.msra.mxu0 0.0
        %4207 = vmatprep.subr.mxu0 0.0
        %4208 = vmatpush1.msra.mxu0 0.0
        %4209 = vmatprep.subr.mxu0 0.0
        %4210 = vmatpush1.msra.mxu0 0.0
        %4211 = vmatprep.subr.mxu0 0.0
        %4212 = vmatpush1.msra.mxu0 0.0
        %4213 = vmatprep.subr.mxu0 0.0
        %4214 = vmatpush1.msra.mxu0 0.0
        %4215 = vmatprep.mubr.f32.mxu0 0.0
        %4216 = vmatmul.mubr.f32.gmra.mrb[0].mxu0 %v1517
        %v4217 = vpop.f32.mrb[0].mxu0
        %v4218 = vadd.f32 0.0, %v4217
        %v4219 = vpop.f32.mrb[0].mxu0
        %4220 = vmatprep.mubr.f32.mxu0 0.0
        %4221 = vmatmul.mubr.f32.gmra.mrb[0].mxu0 %v1520
        %v4222 = vpop.f32.mrb[0].mxu0
        %v4223 = vadd.f32 0.0, %v4222
        %v4224 = vpop.f32.mrb[0].mxu0
        %4225 = vmatprep.mubr.f32.mxu0 0.0
        %4226 = vmatmul.mubr.f32.gmra.mrb[0].mxu0 %v3309
        %v4227 = vpop.f32.mrb[0].mxu0
        %v4228 = vadd.f32 0.0, %v4227
        %v4229 = vpop.f32.mrb[0].mxu0
        %4230 = vdwg.mxu0
        %v4232 = vsel %vm2122, %v3378, 0
        %v4235 = vsel %vm2122, %v3658, 0
        %v4238 = vsel %vm2122, %v3663, 0
        %v4241 = vsel %vm2122, %v3668, 0
        %4243 = vmatprep.subr.mxu0 0.0
        %4244 = vmatpush1.xpose.msra.mxu0 %v4235
        %4245 = vmatprep.subr.mxu0 0.0
        %4246 = vmatpush1.xpose.msra.mxu0 %v4238
        %4247 = vmatprep.subr.mxu0 0.0
        %4248 = vmatpush1.xpose.msra.mxu0 %v4241
        %4249 = vmatprep.subr.mxu0 0.0
        %4250 = vmatpush1.xpose.msra.mxu0 0.0
        %4251 = vmatprep.subr.mxu0 0.0
        %4252 = vmatpush1.xpose.msra.mxu0 0.0
        %4253 = vmatprep.subr.mxu0 0.0
        %4254 = vmatpush1.xpose.msra.mxu0 0.0
        %4255 = vmatprep.subr.mxu0 0.0
        %4256 = vmatpush1.xpose.msra.mxu0 0.0
        %4257 = vmatprep.subr.mxu0 0.0
        %4258 = vmatpush1.xpose.msra.mxu0 0.0
        %4259 = vmatprep.subr.mxu0 0.0
        %4260 = vmatpush1.xpose.msra.mxu0 0.0
        %4261 = vmatprep.subr.mxu0 0.0
        %4262 = vmatpush1.xpose.msra.mxu0 0.0
        %4263 = vmatprep.subr.mxu0 0.0
        %4264 = vmatpush1.xpose.msra.mxu0 0.0
        %4265 = vmatprep.subr.mxu0 0.0
        %4266 = vmatpush1.xpose.msra.mxu0 0.0
        %4267 = vmatprep.subr.mxu0 0.0
        %4268 = vmatpush1.xpose.msra.mxu0 0.0
        %4269 = vmatprep.subr.mxu0 0.0
        %4270 = vmatpush1.xpose.msra.mxu0 0.0
        %4271 = vmatprep.subr.mxu0 0.0
        %4272 = vmatpush1.xpose.msra.mxu0 0.0
        %4273 = vmatprep.subr.mxu0 0.0
        %4274 = vmatpush1.xpose.msra.mxu0 0.0
        %4275 = vmatprep.subr.mxu0 0.0
        %4276 = vmatpush1.xpose.msra.mxu0 0.0
        %4277 = vmatprep.subr.mxu0 0.0
        %4278 = vmatpush1.xpose.msra.mxu0 0.0
        %4279 = vmatprep.subr.mxu0 0.0
        %4280 = vmatpush1.xpose.msra.mxu0 0.0
        %4281 = vmatprep.subr.mxu0 0.0
        %4282 = vmatpush1.xpose.msra.mxu0 0.0
        %4283 = vmatprep.subr.mxu0 0.0
        %4284 = vmatpush1.xpose.msra.mxu0 0.0
        %4285 = vmatprep.subr.mxu0 0.0
        %4286 = vmatpush1.xpose.msra.mxu0 0.0
        %4287 = vmatprep.subr.mxu0 0.0
        %4288 = vmatpush1.xpose.msra.mxu0 0.0
        %4289 = vmatprep.subr.mxu0 0.0
        %4290 = vmatpush1.xpose.msra.mxu0 0.0
        %4291 = vmatprep.subr.mxu0 0.0
        %4292 = vmatpush1.xpose.msra.mxu0 0.0
        %4293 = vmatprep.subr.mxu0 0.0
        %4294 = vmatpush1.xpose.msra.mxu0 0.0
        %4295 = vmatprep.subr.mxu0 0.0
        %4296 = vmatpush1.xpose.msra.mxu0 0.0
        %4297 = vmatprep.subr.mxu0 0.0
        %4298 = vmatpush1.xpose.msra.mxu0 0.0
        %4299 = vmatprep.subr.mxu0 0.0
        %4300 = vmatpush1.xpose.msra.mxu0 0.0
        %4301 = vmatprep.subr.mxu0 0.0
        %4302 = vmatpush1.xpose.msra.mxu0 0.0
        %4303 = vmatprep.subr.mxu0 0.0
        %4304 = vmatpush1.xpose.msra.mxu0 0.0
        %4305 = vmatprep.subr.mxu0 0.0
        %4306 = vmatpush1.xpose.msra.mxu0 0.0
        %4307 = vmatprep.mubr.f32.mxu0 0.0
        %4308 = vmatmul.mubr.f32.gmra.mrb[0].mxu0 %v4232
        %v4309 = vpop.f32.mrb[0].mxu0
        %v4310 = vadd.f32 0.0, %v4309
        %v4311 = vpop.f32.mrb[0].mxu0
        %4312 = vdwg.mxu0
        %v4314 = vsel %vm2122, %v3448, 0
        %v4317 = vsel %vm2122, %v3738, 0
        %v4320 = vsel %vm2122, %v3743, 0
        %v4323 = vsel %vm2122, %v3748, 0
        %4325 = vmatprep.subr.mxu0 0.0
        %4326 = vmatpush1.xpose.msra.mxu0 %v4317
        %4327 = vmatprep.subr.mxu0 0.0
        %4328 = vmatpush1.xpose.msra.mxu0 %v4320
        %4329 = vmatprep.subr.mxu0 0.0
        %4330 = vmatpush1.xpose.msra.mxu0 %v4323
        %4331 = vmatprep.subr.mxu0 0.0
        %4332 = vmatpush1.xpose.msra.mxu0 0.0
        %4333 = vmatprep.subr.mxu0 0.0
        %4334 = vmatpush1.xpose.msra.mxu0 0.0
        %4335 = vmatprep.subr.mxu0 0.0
        %4336 = vmatpush1.xpose.msra.mxu0 0.0
        %4337 = vmatprep.subr.mxu0 0.0
        %4338 = vmatpush1.xpose.msra.mxu0 0.0
        %4339 = vmatprep.subr.mxu0 0.0
        %4340 = vmatpush1.xpose.msra.mxu0 0.0
        %4341 = vmatprep.subr.mxu0 0.0
        %4342 = vmatpush1.xpose.msra.mxu0 0.0
        %4343 = vmatprep.subr.mxu0 0.0
        %4344 = vmatpush1.xpose.msra.mxu0 0.0
        %4345 = vmatprep.subr.mxu0 0.0
        %4346 = vmatpush1.xpose.msra.mxu0 0.0
        %4347 = vmatprep.subr.mxu0 0.0
        %4348 = vmatpush1.xpose.msra.mxu0 0.0
        %4349 = vmatprep.subr.mxu0 0.0
        %4350 = vmatpush1.xpose.msra.mxu0 0.0
        %4351 = vmatprep.subr.mxu0 0.0
        %4352 = vmatpush1.xpose.msra.mxu0 0.0
        %4353 = vmatprep.subr.mxu0 0.0
        %4354 = vmatpush1.xpose.msra.mxu0 0.0
        %4355 = vmatprep.subr.mxu0 0.0
        %4356 = vmatpush1.xpose.msra.mxu0 0.0
        %4357 = vmatprep.subr.mxu0 0.0
        %4358 = vmatpush1.xpose.msra.mxu0 0.0
        %4359 = vmatprep.subr.mxu0 0.0
        %4360 = vmatpush1.xpose.msra.mxu0 0.0
        %4361 = vmatprep.subr.mxu0 0.0
        %4362 = vmatpush1.xpose.msra.mxu0 0.0
        %4363 = vmatprep.subr.mxu0 0.0
        %4364 = vmatpush1.xpose.msra.mxu0 0.0
        %4365 = vmatprep.subr.mxu0 0.0
        %4366 = vmatpush1.xpose.msra.mxu0 0.0
        %4367 = vmatprep.subr.mxu0 0.0
        %4368 = vmatpush1.xpose.msra.mxu0 0.0
        %4369 = vmatprep.subr.mxu0 0.0
        %4370 = vmatpush1.xpose.msra.mxu0 0.0
        %4371 = vmatprep.subr.mxu0 0.0
        %4372 = vmatpush1.xpose.msra.mxu0 0.0
        %4373 = vmatprep.subr.mxu0 0.0
        %4374 = vmatpush1.xpose.msra.mxu0 0.0
        %4375 = vmatprep.subr.mxu0 0.0
        %4376 = vmatpush1.xpose.msra.mxu0 0.0
        %4377 = vmatprep.subr.mxu0 0.0
        %4378 = vmatpush1.xpose.msra.mxu0 0.0
        %4379 = vmatprep.subr.mxu0 0.0
        %4380 = vmatpush1.xpose.msra.mxu0 0.0
        %4381 = vmatprep.subr.mxu0 0.0
        %4382 = vmatpush1.xpose.msra.mxu0 0.0
        %4383 = vmatprep.subr.mxu0 0.0
        %4384 = vmatpush1.xpose.msra.mxu0 0.0
        %4385 = vmatprep.subr.mxu0 0.0
        %4386 = vmatpush1.xpose.msra.mxu0 0.0
        %4387 = vmatprep.subr.mxu0 0.0
        %4388 = vmatpush1.xpose.msra.mxu0 0.0
        %4389 = vmatprep.mubr.f32.mxu0 0.0
        %4390 = vmatmul.mubr.f32.gmra.mrb[0].mxu0 %v4314
        %v4391 = vpop.f32.mrb[0].mxu0
        %v4392 = vadd.f32 0.0, %v4391
        %v4393 = vpop.f32.mrb[0].mxu0
        %4394 = vdwg.mxu0
        %v4396 = vsel %vm2122, %v3518, 0
        %v4399 = vsel %vm2122, %v3818, 0
        %v4402 = vsel %vm2122, %v3823, 0
        %v4405 = vsel %vm2122, %v3828, 0
        %4407 = vmatprep.subr.mxu0 0.0
        %4408 = vmatpush1.xpose.msra.mxu0 %v4399
        %4409 = vmatprep.subr.mxu0 0.0
        %4410 = vmatpush1.xpose.msra.mxu0 %v4402
        %4411 = vmatprep.subr.mxu0 0.0
        %4412 = vmatpush1.xpose.msra.mxu0 %v4405
        %4413 = vmatprep.subr.mxu0 0.0
        %4414 = vmatpush1.xpose.msra.mxu0 0.0
        %4415 = vmatprep.subr.mxu0 0.0
        %4416 = vmatpush1.xpose.msra.mxu0 0.0
        %4417 = vmatprep.subr.mxu0 0.0
        %4418 = vmatpush1.xpose.msra.mxu0 0.0
        %4419 = vmatprep.subr.mxu0 0.0
        %4420 = vmatpush1.xpose.msra.mxu0 0.0
        %4421 = vmatprep.subr.mxu0 0.0
        %4422 = vmatpush1.xpose.msra.mxu0 0.0
        %4423 = vmatprep.subr.mxu0 0.0
        %4424 = vmatpush1.xpose.msra.mxu0 0.0
        %4425 = vmatprep.subr.mxu0 0.0
        %4426 = vmatpush1.xpose.msra.mxu0 0.0
        %4427 = vmatprep.subr.mxu0 0.0
        %4428 = vmatpush1.xpose.msra.mxu0 0.0
        %4429 = vmatprep.subr.mxu0 0.0
        %4430 = vmatpush1.xpose.msra.mxu0 0.0
        %4431 = vmatprep.subr.mxu0 0.0
        %4432 = vmatpush1.xpose.msra.mxu0 0.0
        %4433 = vmatprep.subr.mxu0 0.0
        %4434 = vmatpush1.xpose.msra.mxu0 0.0
        %4435 = vmatprep.subr.mxu0 0.0
        %4436 = vmatpush1.xpose.msra.mxu0 0.0
        %4437 = vmatprep.subr.mxu0 0.0
        %4438 = vmatpush1.xpose.msra.mxu0 0.0
        %4439 = vmatprep.subr.mxu0 0.0
        %4440 = vmatpush1.xpose.msra.mxu0 0.0
        %4441 = vmatprep.subr.mxu0 0.0
        %4442 = vmatpush1.xpose.msra.mxu0 0.0
        %4443 = vmatprep.subr.mxu0 0.0
        %4444 = vmatpush1.xpose.msra.mxu0 0.0
        %4445 = vmatprep.subr.mxu0 0.0
        %4446 = vmatpush1.xpose.msra.mxu0 0.0
        %4447 = vmatprep.subr.mxu0 0.0
        %4448 = vmatpush1.xpose.msra.mxu0 0.0
        %4449 = vmatprep.subr.mxu0 0.0
        %4450 = vmatpush1.xpose.msra.mxu0 0.0
        %4451 = vmatprep.subr.mxu0 0.0
        %4452 = vmatpush1.xpose.msra.mxu0 0.0
        %4453 = vmatprep.subr.mxu0 0.0
        %4454 = vmatpush1.xpose.msra.mxu0 0.0
        %4455 = vmatprep.subr.mxu0 0.0
        %4456 = vmatpush1.xpose.msra.mxu0 0.0
        %4457 = vmatprep.subr.mxu0 0.0
        %4458 = vmatpush1.xpose.msra.mxu0 0.0
        %4459 = vmatprep.subr.mxu0 0.0
        %4460 = vmatpush1.xpose.msra.mxu0 0.0
        %4461 = vmatprep.subr.mxu0 0.0
        %4462 = vmatpush1.xpose.msra.mxu0 0.0
        %4463 = vmatprep.subr.mxu0 0.0
        %4464 = vmatpush1.xpose.msra.mxu0 0.0
        %4465 = vmatprep.subr.mxu0 0.0
        %4466 = vmatpush1.xpose.msra.mxu0 0.0
        %4467 = vmatprep.subr.mxu0 0.0
        %4468 = vmatpush1.xpose.msra.mxu0 0.0
        %4469 = vmatprep.subr.mxu0 0.0
        %4470 = vmatpush1.xpose.msra.mxu0 0.0
        %4471 = vmatprep.mubr.f32.mxu0 0.0
        %4472 = vmatmul.mubr.f32.gmra.mrb[0].mxu0 %v4396
        %v4473 = vpop.f32.mrb[0].mxu0
        %v4474 = vadd.f32 0.0, %v4473
        %v4475 = vpop.f32.mrb[0].mxu0
        %4476 = vdwg.mxu0
        %v4478 = vsel %vm2122, %v3588, 0
        %v4481 = vsel %vm2122, %v3898, 0
        %v4484 = vsel %vm2122, %v3903, 0
        %v4487 = vsel %vm2122, %v3908, 0
        %4489 = vmatprep.subr.mxu0 0.0
        %4490 = vmatpush1.xpose.msra.mxu0 %v4481
        %4491 = vmatprep.subr.mxu0 0.0
        %4492 = vmatpush1.xpose.msra.mxu0 %v4484
        %4493 = vmatprep.subr.mxu0 0.0
        %4494 = vmatpush1.xpose.msra.mxu0 %v4487
        %4495 = vmatprep.subr.mxu0 0.0
        %4496 = vmatpush1.xpose.msra.mxu0 0.0
        %4497 = vmatprep.subr.mxu0 0.0
        %4498 = vmatpush1.xpose.msra.mxu0 0.0
        %4499 = vmatprep.subr.mxu0 0.0
        %4500 = vmatpush1.xpose.msra.mxu0 0.0
        %4501 = vmatprep.subr.mxu0 0.0
        %4502 = vmatpush1.xpose.msra.mxu0 0.0
        %4503 = vmatprep.subr.mxu0 0.0
        %4504 = vmatpush1.xpose.msra.mxu0 0.0
        %4505 = vmatprep.subr.mxu0 0.0
        %4506 = vmatpush1.xpose.msra.mxu0 0.0
        %4507 = vmatprep.subr.mxu0 0.0
        %4508 = vmatpush1.xpose.msra.mxu0 0.0
        %4509 = vmatprep.subr.mxu0 0.0
        %4510 = vmatpush1.xpose.msra.mxu0 0.0
        %4511 = vmatprep.subr.mxu0 0.0
        %4512 = vmatpush1.xpose.msra.mxu0 0.0
        %4513 = vmatprep.subr.mxu0 0.0
        %4514 = vmatpush1.xpose.msra.mxu0 0.0
        %4515 = vmatprep.subr.mxu0 0.0
        %4516 = vmatpush1.xpose.msra.mxu0 0.0
        %4517 = vmatprep.subr.mxu0 0.0
        %4518 = vmatpush1.xpose.msra.mxu0 0.0
        %4519 = vmatprep.subr.mxu0 0.0
        %4520 = vmatpush1.xpose.msra.mxu0 0.0
        %4521 = vmatprep.subr.mxu0 0.0
        %4522 = vmatpush1.xpose.msra.mxu0 0.0
        %4523 = vmatprep.subr.mxu0 0.0
        %4524 = vmatpush1.xpose.msra.mxu0 0.0
        %4525 = vmatprep.subr.mxu0 0.0
        %4526 = vmatpush1.xpose.msra.mxu0 0.0
        %4527 = vmatprep.subr.mxu0 0.0
        %4528 = vmatpush1.xpose.msra.mxu0 0.0
        %4529 = vmatprep.subr.mxu0 0.0
        %4530 = vmatpush1.xpose.msra.mxu0 0.0
        %4531 = vmatprep.subr.mxu0 0.0
        %4532 = vmatpush1.xpose.msra.mxu0 0.0
        %4533 = vmatprep.subr.mxu0 0.0
        %4534 = vmatpush1.xpose.msra.mxu0 0.0
        %4535 = vmatprep.subr.mxu0 0.0
        %4536 = vmatpush1.xpose.msra.mxu0 0.0
        %4537 = vmatprep.subr.mxu0 0.0
        %4538 = vmatpush1.xpose.msra.mxu0 0.0
        %4539 = vmatprep.subr.mxu0 0.0
        %4540 = vmatpush1.xpose.msra.mxu0 0.0
        %4541 = vmatprep.subr.mxu0 0.0
        %4542 = vmatpush1.xpose.msra.mxu0 0.0
        %4543 = vmatprep.subr.mxu0 0.0
        %4544 = vmatpush1.xpose.msra.mxu0 0.0
        %4545 = vmatprep.subr.mxu0 0.0
        %4546 = vmatpush1.xpose.msra.mxu0 0.0
        %4547 = vmatprep.subr.mxu0 0.0
        %4548 = vmatpush1.xpose.msra.mxu0 0.0
        %4549 = vmatprep.subr.mxu0 0.0
        %4550 = vmatpush1.xpose.msra.mxu0 0.0
        %4551 = vmatprep.subr.mxu0 0.0
        %4552 = vmatpush1.xpose.msra.mxu0 0.0
        %4553 = vmatprep.mubr.f32.mxu0 0.0
        %4554 = vmatmul.mubr.f32.gmra.mrb[0].mxu0 %v4478
        %v4555 = vpop.f32.mrb[0].mxu0
        %v4556 = vadd.f32 0.0, %v4555
        %v4557 = vpop.f32.mrb[0].mxu0
        %4558 = vdwg.mxu0
        %v4559 = vmul.f32 %v4310, 0.35355338
        %v4560 = vmul.f32 %v4392, 0.35355338
        %v4561 = vmul.f32 %v4474, 0.35355338
        %v4562 = vmul.f32 %v4556, 0.35355338
        %v4563 = vsel %vm3307, 1, 0
        %vm4564 = vcmp.eq.s32.totalorder %v4563, 1
        %v4565 = vsel %vm4564, -1e+09, %v4559
        %v4566 = vsel %vm4564, -1e+09, %v4560
        %v4567 = vsel %vm4564, -1e+09, %v4561
        %v4568 = vsel %vm4564, -1e+09, %v4562
        %vm4569 = vcmask 195584
        %v4570 = vsel %vm4569, %v4565, -inf
        %4571 = vmax.xlane.f32.xlu0 %v4570
        %v4572 = vpop.xlane.xlu0 %4571
        %v4573 = vsel %vm4569, %v4566, -inf
        %4574 = vmax.xlane.f32.xlu0 %v4573
        %v4575 = vpop.xlane.xlu0 %4574
        %v4576 = vsel %vm4569, %v4567, -inf
        %4577 = vmax.xlane.f32.xlu0 %v4576
        %v4578 = vpop.xlane.xlu0 %4577
        %v4579 = vsel %vm4569, %v4568, -inf
        %4580 = vmax.xlane.f32.xlu0 %v4579
        %v4581 = vpop.xlane.xlu0 %4580
        %v4582 = vsub.f32 %v4565, %v4572
        %v4583 = vsub.f32 %v4566, %v4575
        %v4584 = vsub.f32 %v4567, %v4578
        %v4585 = vsub.f32 %v4568, %v4581
        %v4586 = vmul.f32 %v4582, 1.442695
        %v4587 = vpow.pop %v4586
        %v4588 = vmul.f32 %v4583, 1.442695
        %v4589 = vpow.pop %v4588
        %v4590 = vmul.f32 %v4584, 1.442695
        %v4591 = vpow.pop %v4590
        %v4592 = vmul.f32 %v4585, 1.442695
        %v4593 = vpow.pop %v4592
        %v4594 = vsel %vm4569, %v4587, 0.0
        %4595 = vadd.xlane.f32.xlu0 %v4594
        %v4596 = vpop.xlane.xlu0 %4595
        %v4597 = vsel %vm4569, %v4589, 0.0
        %4598 = vadd.xlane.f32.xlu0 %v4597
        %v4599 = vpop.xlane.xlu0 %4598
        %v4600 = vsel %vm4569, %v4591, 0.0
        %4601 = vadd.xlane.f32.xlu0 %v4600
        %v4602 = vpop.xlane.xlu0 %4601
        %v4603 = vsel %vm4569, %v4593, 0.0
        %4604 = vadd.xlane.f32.xlu0 %v4603
        %v4605 = vpop.xlane.xlu0 %4604
        %v4606 = vrcp.pop %v4596
        %v4607 = vrcp.pop %v4599
        %v4608 = vrcp.pop %v4602
        %v4609 = vrcp.pop %v4605
        %v4610 = vmul.f32 %v4587, %v4606
        %v4611 = vmul.f32 %v4589, %v4607
        %v4612 = vmul.f32 %v4591, %v4608
        %v4613 = vmul.f32 %v4593, %v4609
        %v4615 = vsel %vm4569, %v4610, 0
        %4617 = vmatprep.subr.mxu0 0.0
        %4618 = vmatpush1.msra.mxu0 %v3978
        %4619 = vmatprep.subr.mxu0 0.0
        %4620 = vmatpush1.msra.mxu0 %v3983
        %4621 = vmatprep.subr.mxu0 0.0
        %4622 = vmatpush1.msra.mxu0 %v3988
        %4623 = vmatprep.subr.mxu0 0.0
        %4624 = vmatpush1.msra.mxu0 0.0
        %4625 = vmatprep.subr.mxu0 0.0
        %4626 = vmatpush1.msra.mxu0 0.0
        %4627 = vmatprep.subr.mxu0 0.0
        %4628 = vmatpush1.msra.mxu0 0.0
        %4629 = vmatprep.subr.mxu0 0.0
        %4630 = vmatpush1.msra.mxu0 0.0
        %4631 = vmatprep.subr.mxu0 0.0
        %4632 = vmatpush1.msra.mxu0 0.0
        %4633 = vmatprep.subr.mxu0 0.0
        %4634 = vmatpush1.msra.mxu0 0.0
        %4635 = vmatprep.subr.mxu0 0.0
        %4636 = vmatpush1.msra.mxu0 0.0
        %4637 = vmatprep.subr.mxu0 0.0
        %4638 = vmatpush1.msra.mxu0 0.0
        %4639 = vmatprep.subr.mxu0 0.0
        %4640 = vmatpush1.msra.mxu0 0.0
        %4641 = vmatprep.subr.mxu0 0.0
        %4642 = vmatpush1.msra.mxu0 0.0
        %4643 = vmatprep.subr.mxu0 0.0
        %4644 = vmatpush1.msra.mxu0 0.0
        %4645 = vmatprep.subr.mxu0 0.0
        %4646 = vmatpush1.msra.mxu0 0.0
        %4647 = vmatprep.subr.mxu0 0.0
        %4648 = vmatpush1.msra.mxu0 0.0
        %4649 = vmatprep.subr.mxu0 0.0
        %4650 = vmatpush1.msra.mxu0 0.0
        %4651 = vmatprep.subr.mxu0 0.0
        %4652 = vmatpush1.msra.mxu0 0.0
        %4653 = vmatprep.subr.mxu0 0.0
        %4654 = vmatpush1.msra.mxu0 0.0
        %4655 = vmatprep.subr.mxu0 0.0
        %4656 = vmatpush1.msra.mxu0 0.0
        %4657 = vmatprep.subr.mxu0 0.0
        %4658 = vmatpush1.msra.mxu0 0.0
        %4659 = vmatprep.subr.mxu0 0.0
        %4660 = vmatpush1.msra.mxu0 0.0
        %4661 = vmatprep.subr.mxu0 0.0
        %4662 = vmatpush1.msra.mxu0 0.0
        %4663 = vmatprep.subr.mxu0 0.0
        %4664 = vmatpush1.msra.mxu0 0.0
        %4665 = vmatprep.subr.mxu0 0.0
        %4666 = vmatpush1.msra.mxu0 0.0
        %4667 = vmatprep.subr.mxu0 0.0
        %4668 = vmatpush1.msra.mxu0 0.0
        %4669 = vmatprep.subr.mxu0 0.0
        %4670 = vmatpush1.msra.mxu0 0.0
        %4671 = vmatprep.subr.mxu0 0.0
        %4672 = vmatpush1.msra.mxu0 0.0
        %4673 = vmatprep.subr.mxu0 0.0
        %4674 = vmatpush1.msra.mxu0 0.0
        %4675 = vmatprep.subr.mxu0 0.0
        %4676 = vmatpush1.msra.mxu0 0.0
        %4677 = vmatprep.subr.mxu0 0.0
        %4678 = vmatpush1.msra.mxu0 0.0
        %4679 = vmatprep.subr.mxu0 0.0
        %4680 = vmatpush1.msra.mxu0 0.0
        %4681 = vmatprep.mubr.f32.mxu0 0.0
        %4682 = vmatmul.mubr.f32.gmra.mrb[0].mxu0 %v4615
        %v4683 = vpop.f32.mrb[0].mxu0
        %v4684 = vadd.f32 0.0, %v4683
        %v4685 = vpop.f32.mrb[0].mxu0
        %4686 = vdwg.mxu0
        %v4688 = vsel %vm4569, %v4611, 0
        %4690 = vmatprep.subr.mxu0 0.0
        %4691 = vmatpush1.msra.mxu0 %v4058
        %4692 = vmatprep.subr.mxu0 0.0
        %4693 = vmatpush1.msra.mxu0 %v4063
        %4694 = vmatprep.subr.mxu0 0.0
        %4695 = vmatpush1.msra.mxu0 %v4068
        %4696 = vmatprep.subr.mxu0 0.0
        %4697 = vmatpush1.msra.mxu0 0.0
        %4698 = vmatprep.subr.mxu0 0.0
        %4699 = vmatpush1.msra.mxu0 0.0
        %4700 = vmatprep.subr.mxu0 0.0
        %4701 = vmatpush1.msra.mxu0 0.0
        %4702 = vmatprep.subr.mxu0 0.0
        %4703 = vmatpush1.msra.mxu0 0.0
        %4704 = vmatprep.subr.mxu0 0.0
        %4705 = vmatpush1.msra.mxu0 0.0
        %4706 = vmatprep.subr.mxu0 0.0
        %4707 = vmatpush1.msra.mxu0 0.0
        %4708 = vmatprep.subr.mxu0 0.0
        %4709 = vmatpush1.msra.mxu0 0.0
        %4710 = vmatprep.subr.mxu0 0.0
        %4711 = vmatpush1.msra.mxu0 0.0
        %4712 = vmatprep.subr.mxu0 0.0
        %4713 = vmatpush1.msra.mxu0 0.0
        %4714 = vmatprep.subr.mxu0 0.0
        %4715 = vmatpush1.msra.mxu0 0.0
        %4716 = vmatprep.subr.mxu0 0.0
        %4717 = vmatpush1.msra.mxu0 0.0
        %4718 = vmatprep.subr.mxu0 0.0
        %4719 = vmatpush1.msra.mxu0 0.0
        %4720 = vmatprep.subr.mxu0 0.0
        %4721 = vmatpush1.msra.mxu0 0.0
        %4722 = vmatprep.subr.mxu0 0.0
        %4723 = vmatpush1.msra.mxu0 0.0
        %4724 = vmatprep.subr.mxu0 0.0
        %4725 = vmatpush1.msra.mxu0 0.0
        %4726 = vmatprep.subr.mxu0 0.0
        %4727 = vmatpush1.msra.mxu0 0.0
        %4728 = vmatprep.subr.mxu0 0.0
        %4729 = vmatpush1.msra.mxu0 0.0
        %4730 = vmatprep.subr.mxu0 0.0
        %4731 = vmatpush1.msra.mxu0 0.0
        %4732 = vmatprep.subr.mxu0 0.0
        %4733 = vmatpush1.msra.mxu0 0.0
        %4734 = vmatprep.subr.mxu0 0.0
        %4735 = vmatpush1.msra.mxu0 0.0
        %4736 = vmatprep.subr.mxu0 0.0
        %4737 = vmatpush1.msra.mxu0 0.0
        %4738 = vmatprep.subr.mxu0 0.0
        %4739 = vmatpush1.msra.mxu0 0.0
        %4740 = vmatprep.subr.mxu0 0.0
        %4741 = vmatpush1.msra.mxu0 0.0
        %4742 = vmatprep.subr.mxu0 0.0
        %4743 = vmatpush1.msra.mxu0 0.0
        %4744 = vmatprep.subr.mxu0 0.0
        %4745 = vmatpush1.msra.mxu0 0.0
        %4746 = vmatprep.subr.mxu0 0.0
        %4747 = vmatpush1.msra.mxu0 0.0
        %4748 = vmatprep.subr.mxu0 0.0
        %4749 = vmatpush1.msra.mxu0 0.0
        %4750 = vmatprep.subr.mxu0 0.0
        %4751 = vmatpush1.msra.mxu0 0.0
        %4752 = vmatprep.subr.mxu0 0.0
        %4753 = vmatpush1.msra.mxu0 0.0
        %4754 = vmatprep.mubr.f32.mxu0 0.0
        %4755 = vmatmul.mubr.f32.gmra.mrb[0].mxu0 %v4688
        %v4756 = vpop.f32.mrb[0].mxu0
        %v4757 = vadd.f32 0.0, %v4756
        %v4758 = vpop.f32.mrb[0].mxu0
        %4759 = vdwg.mxu0
        %v4761 = vsel %vm4569, %v4612, 0
        %4763 = vmatprep.subr.mxu0 0.0
        %4764 = vmatpush1.msra.mxu0 %v4138
        %4765 = vmatprep.subr.mxu0 0.0
        %4766 = vmatpush1.msra.mxu0 %v4143
        %4767 = vmatprep.subr.mxu0 0.0
        %4768 = vmatpush1.msra.mxu0 %v4148
        %4769 = vmatprep.subr.mxu0 0.0
        %4770 = vmatpush1.msra.mxu0 0.0
        %4771 = vmatprep.subr.mxu0 0.0
        %4772 = vmatpush1.msra.mxu0 0.0
        %4773 = vmatprep.subr.mxu0 0.0
        %4774 = vmatpush1.msra.mxu0 0.0
        %4775 = vmatprep.subr.mxu0 0.0
        %4776 = vmatpush1.msra.mxu0 0.0
        %4777 = vmatprep.subr.mxu0 0.0
        %4778 = vmatpush1.msra.mxu0 0.0
        %4779 = vmatprep.subr.mxu0 0.0
        %4780 = vmatpush1.msra.mxu0 0.0
        %4781 = vmatprep.subr.mxu0 0.0
        %4782 = vmatpush1.msra.mxu0 0.0
        %4783 = vmatprep.subr.mxu0 0.0
        %4784 = vmatpush1.msra.mxu0 0.0
        %4785 = vmatprep.subr.mxu0 0.0
        %4786 = vmatpush1.msra.mxu0 0.0
        %4787 = vmatprep.subr.mxu0 0.0
        %4788 = vmatpush1.msra.mxu0 0.0
        %4789 = vmatprep.subr.mxu0 0.0
        %4790 = vmatpush1.msra.mxu0 0.0
        %4791 = vmatprep.subr.mxu0 0.0
        %4792 = vmatpush1.msra.mxu0 0.0
        %4793 = vmatprep.subr.mxu0 0.0
        %4794 = vmatpush1.msra.mxu0 0.0
        %4795 = vmatprep.subr.mxu0 0.0
        %4796 = vmatpush1.msra.mxu0 0.0
        %4797 = vmatprep.subr.mxu0 0.0
        %4798 = vmatpush1.msra.mxu0 0.0
        %4799 = vmatprep.subr.mxu0 0.0
        %4800 = vmatpush1.msra.mxu0 0.0
        %4801 = vmatprep.subr.mxu0 0.0
        %4802 = vmatpush1.msra.mxu0 0.0
        %4803 = vmatprep.subr.mxu0 0.0
        %4804 = vmatpush1.msra.mxu0 0.0
        %4805 = vmatprep.subr.mxu0 0.0
        %4806 = vmatpush1.msra.mxu0 0.0
        %4807 = vmatprep.subr.mxu0 0.0
        %4808 = vmatpush1.msra.mxu0 0.0
        %4809 = vmatprep.subr.mxu0 0.0
        %4810 = vmatpush1.msra.mxu0 0.0
        %4811 = vmatprep.subr.mxu0 0.0
        %4812 = vmatpush1.msra.mxu0 0.0
        %4813 = vmatprep.subr.mxu0 0.0
        %4814 = vmatpush1.msra.mxu0 0.0
        %4815 = vmatprep.subr.mxu0 0.0
        %4816 = vmatpush1.msra.mxu0 0.0
        %4817 = vmatprep.subr.mxu0 0.0
        %4818 = vmatpush1.msra.mxu0 0.0
        %4819 = vmatprep.subr.mxu0 0.0
        %4820 = vmatpush1.msra.mxu0 0.0
        %4821 = vmatprep.subr.mxu0 0.0
        %4822 = vmatpush1.msra.mxu0 0.0
        %4823 = vmatprep.subr.mxu0 0.0
        %4824 = vmatpush1.msra.mxu0 0.0
        %4825 = vmatprep.subr.mxu0 0.0
        %4826 = vmatpush1.msra.mxu0 0.0
        %4827 = vmatprep.mubr.f32.mxu0 0.0
        %4828 = vmatmul.mubr.f32.gmra.mrb[0].mxu0 %v4761
        %v4829 = vpop.f32.mrb[0].mxu0
        %v4830 = vadd.f32 0.0, %v4829
        %v4831 = vpop.f32.mrb[0].mxu0
        %4832 = vdwg.mxu0
        %v4834 = vsel %vm4569, %v4613, 0
        %4836 = vmatprep.subr.mxu0 0.0
        %4837 = vmatpush1.msra.mxu0 %v4218
        %4838 = vmatprep.subr.mxu0 0.0
        %4839 = vmatpush1.msra.mxu0 %v4223
        %4840 = vmatprep.subr.mxu0 0.0
        %4841 = vmatpush1.msra.mxu0 %v4228
        %4842 = vmatprep.subr.mxu0 0.0
        %4843 = vmatpush1.msra.mxu0 0.0
        %4844 = vmatprep.subr.mxu0 0.0
        %4845 = vmatpush1.msra.mxu0 0.0
        %4846 = vmatprep.subr.mxu0 0.0
        %4847 = vmatpush1.msra.mxu0 0.0
        %4848 = vmatprep.subr.mxu0 0.0
        %4849 = vmatpush1.msra.mxu0 0.0
        %4850 = vmatprep.subr.mxu0 0.0
        %4851 = vmatpush1.msra.mxu0 0.0
        %4852 = vmatprep.subr.mxu0 0.0
        %4853 = vmatpush1.msra.mxu0 0.0
        %4854 = vmatprep.subr.mxu0 0.0
        %4855 = vmatpush1.msra.mxu0 0.0
        %4856 = vmatprep.subr.mxu0 0.0
        %4857 = vmatpush1.msra.mxu0 0.0
        %4858 = vmatprep.subr.mxu0 0.0
        %4859 = vmatpush1.msra.mxu0 0.0
        %4860 = vmatprep.subr.mxu0 0.0
        %4861 = vmatpush1.msra.mxu0 0.0
        %4862 = vmatprep.subr.mxu0 0.0
        %4863 = vmatpush1.msra.mxu0 0.0
        %4864 = vmatprep.subr.mxu0 0.0
        %4865 = vmatpush1.msra.mxu0 0.0
        %4866 = vmatprep.subr.mxu0 0.0
        %4867 = vmatpush1.msra.mxu0 0.0
        %4868 = vmatprep.subr.mxu0 0.0
        %4869 = vmatpush1.msra.mxu0 0.0
        %4870 = vmatprep.subr.mxu0 0.0
        %4871 = vmatpush1.msra.mxu0 0.0
        %4872 = vmatprep.subr.mxu0 0.0
        %4873 = vmatpush1.msra.mxu0 0.0
        %4874 = vmatprep.subr.mxu0 0.0
        %4875 = vmatpush1.msra.mxu0 0.0
        %4876 = vmatprep.subr.mxu0 0.0
        %4877 = vmatpush1.msra.mxu0 0.0
        %4878 = vmatprep.subr.mxu0 0.0
        %4879 = vmatpush1.msra.mxu0 0.0
        %4880 = vmatprep.subr.mxu0 0.0
        %4881 = vmatpush1.msra.mxu0 0.0
        %4882 = vmatprep.subr.mxu0 0.0
        %4883 = vmatpush1.msra.mxu0 0.0
        %4884 = vmatprep.subr.mxu0 0.0
        %4885 = vmatpush1.msra.mxu0 0.0
        %4886 = vmatprep.subr.mxu0 0.0
        %4887 = vmatpush1.msra.mxu0 0.0
        %4888 = vmatprep.subr.mxu0 0.0
        %4889 = vmatpush1.msra.mxu0 0.0
        %4890 = vmatprep.subr.mxu0 0.0
        %4891 = vmatpush1.msra.mxu0 0.0
        %4892 = vmatprep.subr.mxu0 0.0
        %4893 = vmatpush1.msra.mxu0 0.0
        %4894 = vmatprep.subr.mxu0 0.0
        %4895 = vmatpush1.msra.mxu0 0.0
        %4896 = vmatprep.subr.mxu0 0.0
        %4897 = vmatpush1.msra.mxu0 0.0
        %4898 = vmatprep.subr.mxu0 0.0
        %4899 = vmatpush1.msra.mxu0 0.0
        %4900 = vmatprep.mubr.f32.mxu0 0.0
        %4901 = vmatmul.mubr.f32.gmra.mrb[0].mxu0 %v4834
        %v4902 = vpop.f32.mrb[0].mxu0
        %v4903 = vadd.f32 0.0, %v4902
        %v4904 = vpop.f32.mrb[0].mxu0
        %4905 = vdwg.mxu0
        %v4907 = vsel %vm2122, %v4684, 0
        %4909 = vmatprep.subr.mxu0 0.0
        %4910 = vmatpush1.msra.mxu0 %v1121
        %4911 = vmatprep.subr.mxu0 0.0
        %4912 = vmatpush1.msra.mxu0 0.0
        %4913 = vmatprep.subr.mxu0 0.0
        %4914 = vmatpush1.msra.mxu0 0.0
        %4915 = vmatprep.subr.mxu0 0.0
        %4916 = vmatpush1.msra.mxu0 0.0
        %4917 = vmatprep.subr.mxu0 0.0
        %4918 = vmatpush1.msra.mxu0 0.0
        %4919 = vmatprep.subr.mxu0 0.0
        %4920 = vmatpush1.msra.mxu0 0.0
        %4921 = vmatprep.subr.mxu0 0.0
        %4922 = vmatpush1.msra.mxu0 0.0
        %4923 = vmatprep.subr.mxu0 0.0
        %4924 = vmatpush1.msra.mxu0 0.0
        %4925 = vmatprep.subr.mxu0 0.0
        %4926 = vmatpush1.msra.mxu0 0.0
        %4927 = vmatprep.subr.mxu0 0.0
        %4928 = vmatpush1.msra.mxu0 0.0
        %4929 = vmatprep.subr.mxu0 0.0
        %4930 = vmatpush1.msra.mxu0 0.0
        %4931 = vmatprep.subr.mxu0 0.0
        %4932 = vmatpush1.msra.mxu0 0.0
        %4933 = vmatprep.subr.mxu0 0.0
        %4934 = vmatpush1.msra.mxu0 0.0
        %4935 = vmatprep.subr.mxu0 0.0
        %4936 = vmatpush1.msra.mxu0 0.0
        %4937 = vmatprep.subr.mxu0 0.0
        %4938 = vmatpush1.msra.mxu0 0.0
        %4939 = vmatprep.subr.mxu0 0.0
        %4940 = vmatpush1.msra.mxu0 0.0
        %4941 = vmatprep.subr.mxu0 0.0
        %4942 = vmatpush1.msra.mxu0 0.0
        %4943 = vmatprep.subr.mxu0 0.0
        %4944 = vmatpush1.msra.mxu0 0.0
        %4945 = vmatprep.subr.mxu0 0.0
        %4946 = vmatpush1.msra.mxu0 0.0
        %4947 = vmatprep.subr.mxu0 0.0
        %4948 = vmatpush1.msra.mxu0 0.0
        %4949 = vmatprep.subr.mxu0 0.0
        %4950 = vmatpush1.msra.mxu0 0.0
        %4951 = vmatprep.subr.mxu0 0.0
        %4952 = vmatpush1.msra.mxu0 0.0
        %4953 = vmatprep.subr.mxu0 0.0
        %4954 = vmatpush1.msra.mxu0 0.0
        %4955 = vmatprep.subr.mxu0 0.0
        %4956 = vmatpush1.msra.mxu0 0.0
        %4957 = vmatprep.subr.mxu0 0.0
        %4958 = vmatpush1.msra.mxu0 0.0
        %4959 = vmatprep.subr.mxu0 0.0
        %4960 = vmatpush1.msra.mxu0 0.0
        %4961 = vmatprep.subr.mxu0 0.0
        %4962 = vmatpush1.msra.mxu0 0.0
        %4963 = vmatprep.subr.mxu0 0.0
        %4964 = vmatpush1.msra.mxu0 0.0
        %4965 = vmatprep.subr.mxu0 0.0
        %4966 = vmatpush1.msra.mxu0 0.0
        %4967 = vmatprep.subr.mxu0 0.0
        %4968 = vmatpush1.msra.mxu0 0.0
        %4969 = vmatprep.subr.mxu0 0.0
        %4970 = vmatpush1.msra.mxu0 0.0
        %4971 = vmatprep.subr.mxu0 0.0
        %4972 = vmatpush1.msra.mxu0 0.0
        %4973 = vmatprep.mubr.f32.mxu0 0.0
        %4974 = vmatmul.mubr.f32.gmra.mrb[0].mxu0 %v4907
        %v4975 = vpop.f32.mrb[0].mxu0
        %v4976 = vadd.f32 0.0, %v4975
        %v4977 = vpop.f32.mrb[0].mxu0
        %4978 = vdwg.mxu0
        %v4980 = vsel %vm2122, %v4757, 0
        %4982 = vmatprep.subr.mxu0 0.0
        %4983 = vmatpush1.msra.mxu0 %v1122
        %4984 = vmatprep.subr.mxu0 0.0
        %4985 = vmatpush1.msra.mxu0 0.0
        %4986 = vmatprep.subr.mxu0 0.0
        %4987 = vmatpush1.msra.mxu0 0.0
        %4988 = vmatprep.subr.mxu0 0.0
        %4989 = vmatpush1.msra.mxu0 0.0
        %4990 = vmatprep.subr.mxu0 0.0
        %4991 = vmatpush1.msra.mxu0 0.0
        %4992 = vmatprep.subr.mxu0 0.0
        %4993 = vmatpush1.msra.mxu0 0.0
        %4994 = vmatprep.subr.mxu0 0.0
        %4995 = vmatpush1.msra.mxu0 0.0
        %4996 = vmatprep.subr.mxu0 0.0
        %4997 = vmatpush1.msra.mxu0 0.0
        %4998 = vmatprep.subr.mxu0 0.0
        %4999 = vmatpush1.msra.mxu0 0.0
        %5000 = vmatprep.subr.mxu0 0.0
        %5001 = vmatpush1.msra.mxu0 0.0
        %5002 = vmatprep.subr.mxu0 0.0
        %5003 = vmatpush1.msra.mxu0 0.0
        %5004 = vmatprep.subr.mxu0 0.0
        %5005 = vmatpush1.msra.mxu0 0.0
        %5006 = vmatprep.subr.mxu0 0.0
        %5007 = vmatpush1.msra.mxu0 0.0
        %5008 = vmatprep.subr.mxu0 0.0
        %5009 = vmatpush1.msra.mxu0 0.0
        %5010 = vmatprep.subr.mxu0 0.0
        %5011 = vmatpush1.msra.mxu0 0.0
        %5012 = vmatprep.subr.mxu0 0.0
        %5013 = vmatpush1.msra.mxu0 0.0
        %5014 = vmatprep.subr.mxu0 0.0
        %5015 = vmatpush1.msra.mxu0 0.0
        %5016 = vmatprep.subr.mxu0 0.0
        %5017 = vmatpush1.msra.mxu0 0.0
        %5018 = vmatprep.subr.mxu0 0.0
        %5019 = vmatpush1.msra.mxu0 0.0
        %5020 = vmatprep.subr.mxu0 0.0
        %5021 = vmatpush1.msra.mxu0 0.0
        %5022 = vmatprep.subr.mxu0 0.0
        %5023 = vmatpush1.msra.mxu0 0.0
        %5024 = vmatprep.subr.mxu0 0.0
        %5025 = vmatpush1.msra.mxu0 0.0
        %5026 = vmatprep.subr.mxu0 0.0
        %5027 = vmatpush1.msra.mxu0 0.0
        %5028 = vmatprep.subr.mxu0 0.0
        %5029 = vmatpush1.msra.mxu0 0.0
        %5030 = vmatprep.subr.mxu0 0.0
        %5031 = vmatpush1.msra.mxu0 0.0
        %5032 = vmatprep.subr.mxu0 0.0
        %5033 = vmatpush1.msra.mxu0 0.0
        %5034 = vmatprep.subr.mxu0 0.0
        %5035 = vmatpush1.msra.mxu0 0.0
        %5036 = vmatprep.subr.mxu0 0.0
        %5037 = vmatpush1.msra.mxu0 0.0
        %5038 = vmatprep.subr.mxu0 0.0
        %5039 = vmatpush1.msra.mxu0 0.0
        %5040 = vmatprep.subr.mxu0 0.0
        %5041 = vmatpush1.msra.mxu0 0.0
        %5042 = vmatprep.subr.mxu0 0.0
        %5043 = vmatpush1.msra.mxu0 0.0
        %5044 = vmatprep.subr.mxu0 0.0
        %5045 = vmatpush1.msra.mxu0 0.0
        %5046 = vmatprep.mubr.f32.mxu0 0.0
        %5047 = vmatmul.mubr.f32.gmra.mrb[0].mxu0 %v4980
        %v5048 = vpop.f32.mrb[0].mxu0
        %v5049 = vadd.f32 0.0, %v5048
        %v5050 = vpop.f32.mrb[0].mxu0
        %5051 = vdwg.mxu0
        %v5053 = vsel %vm2122, %v4830, 0
        %5055 = vmatprep.subr.mxu0 0.0
        %5056 = vmatpush1.msra.mxu0 %v1123
        %5057 = vmatprep.subr.mxu0 0.0
        %5058 = vmatpush1.msra.mxu0 0.0
        %5059 = vmatprep.subr.mxu0 0.0
        %5060 = vmatpush1.msra.mxu0 0.0
        %5061 = vmatprep.subr.mxu0 0.0
        %5062 = vmatpush1.msra.mxu0 0.0
        %5063 = vmatprep.subr.mxu0 0.0
        %5064 = vmatpush1.msra.mxu0 0.0
        %5065 = vmatprep.subr.mxu0 0.0
        %5066 = vmatpush1.msra.mxu0 0.0
        %5067 = vmatprep.subr.mxu0 0.0
        %5068 = vmatpush1.msra.mxu0 0.0
        %5069 = vmatprep.subr.mxu0 0.0
        %5070 = vmatpush1.msra.mxu0 0.0
        %5071 = vmatprep.subr.mxu0 0.0
        %5072 = vmatpush1.msra.mxu0 0.0
        %5073 = vmatprep.subr.mxu0 0.0
        %5074 = vmatpush1.msra.mxu0 0.0
        %5075 = vmatprep.subr.mxu0 0.0
        %5076 = vmatpush1.msra.mxu0 0.0
        %5077 = vmatprep.subr.mxu0 0.0
        %5078 = vmatpush1.msra.mxu0 0.0
        %5079 = vmatprep.subr.mxu0 0.0
        %5080 = vmatpush1.msra.mxu0 0.0
        %5081 = vmatprep.subr.mxu0 0.0
        %5082 = vmatpush1.msra.mxu0 0.0
        %5083 = vmatprep.subr.mxu0 0.0
        %5084 = vmatpush1.msra.mxu0 0.0
        %5085 = vmatprep.subr.mxu0 0.0
        %5086 = vmatpush1.msra.mxu0 0.0
        %5087 = vmatprep.subr.mxu0 0.0
        %5088 = vmatpush1.msra.mxu0 0.0
        %5089 = vmatprep.subr.mxu0 0.0
        %5090 = vmatpush1.msra.mxu0 0.0
        %5091 = vmatprep.subr.mxu0 0.0
        %5092 = vmatpush1.msra.mxu0 0.0
        %5093 = vmatprep.subr.mxu0 0.0
        %5094 = vmatpush1.msra.mxu0 0.0
        %5095 = vmatprep.subr.mxu0 0.0
        %5096 = vmatpush1.msra.mxu0 0.0
        %5097 = vmatprep.subr.mxu0 0.0
        %5098 = vmatpush1.msra.mxu0 0.0
        %5099 = vmatprep.subr.mxu0 0.0
        %5100 = vmatpush1.msra.mxu0 0.0
        %5101 = vmatprep.subr.mxu0 0.0
        %5102 = vmatpush1.msra.mxu0 0.0
        %5103 = vmatprep.subr.mxu0 0.0
        %5104 = vmatpush1.msra.mxu0 0.0
        %5105 = vmatprep.subr.mxu0 0.0
        %5106 = vmatpush1.msra.mxu0 0.0
        %5107 = vmatprep.subr.mxu0 0.0
        %5108 = vmatpush1.msra.mxu0 0.0
        %5109 = vmatprep.subr.mxu0 0.0
        %5110 = vmatpush1.msra.mxu0 0.0
        %5111 = vmatprep.subr.mxu0 0.0
        %5112 = vmatpush1.msra.mxu0 0.0
        %5113 = vmatprep.subr.mxu0 0.0
        %5114 = vmatpush1.msra.mxu0 0.0
        %5115 = vmatprep.subr.mxu0 0.0
        %5116 = vmatpush1.msra.mxu0 0.0
        %5117 = vmatprep.subr.mxu0 0.0
        %5118 = vmatpush1.msra.mxu0 0.0
        %5119 = vmatprep.mubr.f32.mxu0 0.0
        %5120 = vmatmul.mubr.f32.gmra.mrb[0].mxu0 %v5053
        %v5121 = vpop.f32.mrb[0].mxu0
        %v5122 = vadd.f32 0.0, %v5121
        %v5123 = vpop.f32.mrb[0].mxu0
        %5124 = vdwg.mxu0
        %v5126 = vsel %vm2122, %v4903, 0
        %5128 = vmatprep.subr.mxu0 0.0
        %5129 = vmatpush1.msra.mxu0 %v1124
        %5130 = vmatprep.subr.mxu0 0.0
        %5131 = vmatpush1.msra.mxu0 0.0
        %5132 = vmatprep.subr.mxu0 0.0
        %5133 = vmatpush1.msra.mxu0 0.0
        %5134 = vmatprep.subr.mxu0 0.0
        %5135 = vmatpush1.msra.mxu0 0.0
        %5136 = vmatprep.subr.mxu0 0.0
        %5137 = vmatpush1.msra.mxu0 0.0
        %5138 = vmatprep.subr.mxu0 0.0
        %5139 = vmatpush1.msra.mxu0 0.0
        %5140 = vmatprep.subr.mxu0 0.0
        %5141 = vmatpush1.msra.mxu0 0.0
        %5142 = vmatprep.subr.mxu0 0.0
        %5143 = vmatpush1.msra.mxu0 0.0
        %5144 = vmatprep.subr.mxu0 0.0
        %5145 = vmatpush1.msra.mxu0 0.0
        %5146 = vmatprep.subr.mxu0 0.0
        %5147 = vmatpush1.msra.mxu0 0.0
        %5148 = vmatprep.subr.mxu0 0.0
        %5149 = vmatpush1.msra.mxu0 0.0
        %5150 = vmatprep.subr.mxu0 0.0
        %5151 = vmatpush1.msra.mxu0 0.0
        %5152 = vmatprep.subr.mxu0 0.0
        %5153 = vmatpush1.msra.mxu0 0.0
        %5154 = vmatprep.subr.mxu0 0.0
        %5155 = vmatpush1.msra.mxu0 0.0
        %5156 = vmatprep.subr.mxu0 0.0
        %5157 = vmatpush1.msra.mxu0 0.0
        %5158 = vmatprep.subr.mxu0 0.0
        %5159 = vmatpush1.msra.mxu0 0.0
        %5160 = vmatprep.subr.mxu0 0.0
        %5161 = vmatpush1.msra.mxu0 0.0
        %5162 = vmatprep.subr.mxu0 0.0
        %5163 = vmatpush1.msra.mxu0 0.0
        %5164 = vmatprep.subr.mxu0 0.0
        %5165 = vmatpush1.msra.mxu0 0.0
        %5166 = vmatprep.subr.mxu0 0.0
        %5167 = vmatpush1.msra.mxu0 0.0
        %5168 = vmatprep.subr.mxu0 0.0
        %5169 = vmatpush1.msra.mxu0 0.0
        %5170 = vmatprep.subr.mxu0 0.0
        %5171 = vmatpush1.msra.mxu0 0.0
        %5172 = vmatprep.subr.mxu0 0.0
        %5173 = vmatpush1.msra.mxu0 0.0
        %5174 = vmatprep.subr.mxu0 0.0
        %5175 = vmatpush1.msra.mxu0 0.0
        %5176 = vmatprep.subr.mxu0 0.0
        %5177 = vmatpush1.msra.mxu0 0.0
        %5178 = vmatprep.subr.mxu0 0.0
        %5179 = vmatpush1.msra.mxu0 0.0
        %5180 = vmatprep.subr.mxu0 0.0
        %5181 = vmatpush1.msra.mxu0 0.0
        %5182 = vmatprep.subr.mxu0 0.0
        %5183 = vmatpush1.msra.mxu0 0.0
        %5184 = vmatprep.subr.mxu0 0.0
        %5185 = vmatpush1.msra.mxu0 0.0
        %5186 = vmatprep.subr.mxu0 0.0
        %5187 = vmatpush1.msra.mxu0 0.0
        %5188 = vmatprep.subr.mxu0 0.0
        %5189 = vmatpush1.msra.mxu0 0.0
        %5190 = vmatprep.subr.mxu0 0.0
        %5191 = vmatpush1.msra.mxu0 0.0
        %5192 = vmatprep.mubr.f32.mxu0 0.0
        %5193 = vmatmul.mubr.f32.gmra.mrb[0].mxu0 %v5126
        %v5194 = vpop.f32.mrb[0].mxu0
        %v5195 = vadd.f32 0.0, %v5194
        %v5196 = vpop.f32.mrb[0].mxu0
        %5197 = vdwg.mxu0
        %v5198 = vsel %vm1232, %v4976, 0.0
        %v5199 = vsel %vm1232, %v5049, 0.0
        %v5200 = vadd.f32 %v5198, %v5199
        %v5201 = vsel %vm1232, %v5122, 0.0
        %v5202 = vadd.f32 %v5200, %v5201
        %v5203 = vsel %vm1232, %v5195, 0.0
        %v5204 = vadd.f32 %v5202, %v5203
        %v5206 = vlaneseq
        %v5207 = vshrl.u32 %v5206, 7
        %v5208 = vsub.s32 0, %v5207
        %v5209 = vrot.slane %v1125, %v5208
        %v5211 = vadd.f32 %v5204, %v5209
        %v5212 = vadd.f32 %v5211, %v3305
        %v5213 = vsel %vm1232, %v5212, 0.0
        %5214 = vadd.xlane.f32.xlu0 %v5213
        %v5215 = vpop.xlane.xlu0 %5214
        %v5216 = vmul.f32 %v5215, %v3089
        %v5217 = vsub.f32 %v5212, %v5216
        %v5218 = vmul.f32 %v5217, %v5217
        %v5219 = vsel %vm1232, %v5218, 0.0
        %5220 = vadd.xlane.f32.xlu0 %v5219
        %v5221 = vpop.xlane.xlu0 %5220
        %v5222 = vmul.f32 %v5221, %v3089
        %v5223 = vadd.f32 %v5222, 1e-06
        %v5224 = vrsqrt.pop %v5223
        %v5225 = vmul.f32 %v5217, %v5224
        %v5227 = vlaneseq
        %v5228 = vshrl.u32 %v5227, 7
        %v5229 = vsub.s32 0, %v5228
        %v5230 = vrot.slane %v1126, %v5229
        %v5232 = vmul.f32 %v5225, %v5230
        %v5234 = vlaneseq
        %v5235 = vshrl.u32 %v5234, 7
        %v5236 = vsub.s32 0, %v5235
        %v5237 = vrot.slane %v1127, %v5236
        %v5239 = vadd.f32 %v5232, %v5237
        %v5241 = vlaneseq
        %v5242 = vshrl.u32 %v5241, 7
        %v5243 = vsub.s32 0, %v5242
        %v5244 = vrot.slane %v1132, %v5243
        %v5247 = vsel %vm1232, %v5239, 0
        %5249 = vmatprep.subr.mxu0 0.0
        %5250 = vmatpush1.msra.mxu0 %v1128
        %5251 = vmatprep.subr.mxu0 0.0
        %5252 = vmatpush1.msra.mxu0 %v1129
        %5253 = vmatprep.subr.mxu0 0.0
        %5254 = vmatpush1.msra.mxu0 %v1130
        %5255 = vmatprep.subr.mxu0 0.0
        %5256 = vmatpush1.msra.mxu0 %v1131
        %5257 = vmatprep.subr.mxu0 0.0
        %5258 = vmatpush1.msra.mxu0 0.0
        %5259 = vmatprep.subr.mxu0 0.0
        %5260 = vmatpush1.msra.mxu0 0.0
        %5261 = vmatprep.subr.mxu0 0.0
        %5262 = vmatpush1.msra.mxu0 0.0
        %5263 = vmatprep.subr.mxu0 0.0
        %5264 = vmatpush1.msra.mxu0 0.0
        %5265 = vmatprep.subr.mxu0 0.0
        %5266 = vmatpush1.msra.mxu0 0.0
        %5267 = vmatprep.subr.mxu0 0.0
        %5268 = vmatpush1.msra.mxu0 0.0
        %5269 = vmatprep.subr.mxu0 0.0
        %5270 = vmatpush1.msra.mxu0 0.0
        %5271 = vmatprep.subr.mxu0 0.0
        %5272 = vmatpush1.msra.mxu0 0.0
        %5273 = vmatprep.subr.mxu0 0.0
        %5274 = vmatpush1.msra.mxu0 0.0
        %5275 = vmatprep.subr.mxu0 0.0
        %5276 = vmatpush1.msra.mxu0 0.0
        %5277 = vmatprep.subr.mxu0 0.0
        %5278 = vmatpush1.msra.mxu0 0.0
        %5279 = vmatprep.subr.mxu0 0.0
        %5280 = vmatpush1.msra.mxu0 0.0
        %5281 = vmatprep.subr.mxu0 0.0
        %5282 = vmatpush1.msra.mxu0 0.0
        %5283 = vmatprep.subr.mxu0 0.0
        %5284 = vmatpush1.msra.mxu0 0.0
        %5285 = vmatprep.subr.mxu0 0.0
        %5286 = vmatpush1.msra.mxu0 0.0
        %5287 = vmatprep.subr.mxu0 0.0
        %5288 = vmatpush1.msra.mxu0 0.0
        %5289 = vmatprep.subr.mxu0 0.0
        %5290 = vmatpush1.msra.mxu0 0.0
        %5291 = vmatprep.subr.mxu0 0.0
        %5292 = vmatpush1.msra.mxu0 0.0
        %5293 = vmatprep.subr.mxu0 0.0
        %5294 = vmatpush1.msra.mxu0 0.0
        %5295 = vmatprep.subr.mxu0 0.0
        %5296 = vmatpush1.msra.mxu0 0.0
        %5297 = vmatprep.subr.mxu0 0.0
        %5298 = vmatpush1.msra.mxu0 0.0
        %5299 = vmatprep.subr.mxu0 0.0
        %5300 = vmatpush1.msra.mxu0 0.0
        %5301 = vmatprep.subr.mxu0 0.0
        %5302 = vmatpush1.msra.mxu0 0.0
        %5303 = vmatprep.subr.mxu0 0.0
        %5304 = vmatpush1.msra.mxu0 0.0
        %5305 = vmatprep.subr.mxu0 0.0
        %5306 = vmatpush1.msra.mxu0 0.0
        %5307 = vmatprep.subr.mxu0 0.0
        %5308 = vmatpush1.msra.mxu0 0.0
        %5309 = vmatprep.subr.mxu0 0.0
        %5310 = vmatpush1.msra.mxu0 0.0
        %5311 = vmatprep.subr.mxu0 0.0
        %5312 = vmatpush1.msra.mxu0 0.0
        %5313 = vmatprep.mubr.f32.mxu0 0.0
        %5314 = vmatmul.mubr.f32.gmra.mrb[0].mxu0 %v5247
        %v5315 = vpop.f32.mrb[0].mxu0
        %v5316 = vadd.f32 %v5244, %v5315
        %v5317 = vpop.f32.mrb[0].mxu0
        %5318 = vdwg.mxu0
        %v5319 = vmul.f32 %v5316, 0.5
        %v5320 = vmul.f32 %v5316, 0.70710677
        %v5321 = verf.f32.pop %v5320
        %v5322 = vadd.f32 %v5321, 1.0
        %v5323 = vmul.f32 %v5319, %v5322
        %v5325 = vlaneseq
        %v5326 = vshrl.u32 %v5325, 7
        %v5327 = vsub.s32 0, %v5326
        %v5328 = vrot.slane %v1141, %v5327
        %v5331 = vsel %vm3204, %v5323, 0
        %5333 = vmatprep.subr.mxu0 0.0
        %5334 = vmatpush1.msra.mxu0 %v1133
        %5335 = vmatprep.subr.mxu0 0.0
        %5336 = vmatpush1.msra.mxu0 %v1134
        %5337 = vmatprep.subr.mxu0 0.0
        %5338 = vmatpush1.msra.mxu0 %v1135
        %5339 = vmatprep.subr.mxu0 0.0
        %5340 = vmatpush1.msra.mxu0 %v1136
        %5341 = vmatprep.subr.mxu0 0.0
        %5342 = vmatpush1.msra.mxu0 %v1137
        %5343 = vmatprep.subr.mxu0 0.0
        %5344 = vmatpush1.msra.mxu0 %v1138
        %5345 = vmatprep.subr.mxu0 0.0
        %5346 = vmatpush1.msra.mxu0 %v1139
        %5347 = vmatprep.subr.mxu0 0.0
        %5348 = vmatpush1.msra.mxu0 %v1140
        %5349 = vmatprep.subr.mxu0 0.0
        %5350 = vmatpush1.msra.mxu0 0.0
        %5351 = vmatprep.subr.mxu0 0.0
        %5352 = vmatpush1.msra.mxu0 0.0
        %5353 = vmatprep.subr.mxu0 0.0
        %5354 = vmatpush1.msra.mxu0 0.0
        %5355 = vmatprep.subr.mxu0 0.0
        %5356 = vmatpush1.msra.mxu0 0.0
        %5357 = vmatprep.subr.mxu0 0.0
        %5358 = vmatpush1.msra.mxu0 0.0
        %5359 = vmatprep.subr.mxu0 0.0
        %5360 = vmatpush1.msra.mxu0 0.0
        %5361 = vmatprep.subr.mxu0 0.0
        %5362 = vmatpush1.msra.mxu0 0.0
        %5363 = vmatprep.subr.mxu0 0.0
        %5364 = vmatpush1.msra.mxu0 0.0
        %5365 = vmatprep.subr.mxu0 0.0
        %5366 = vmatpush1.msra.mxu0 0.0
        %5367 = vmatprep.subr.mxu0 0.0
        %5368 = vmatpush1.msra.mxu0 0.0
        %5369 = vmatprep.subr.mxu0 0.0
        %5370 = vmatpush1.msra.mxu0 0.0
        %5371 = vmatprep.subr.mxu0 0.0
        %5372 = vmatpush1.msra.mxu0 0.0
        %5373 = vmatprep.subr.mxu0 0.0
        %5374 = vmatpush1.msra.mxu0 0.0
        %5375 = vmatprep.subr.mxu0 0.0
        %5376 = vmatpush1.msra.mxu0 0.0
        %5377 = vmatprep.subr.mxu0 0.0
        %5378 = vmatpush1.msra.mxu0 0.0
        %5379 = vmatprep.subr.mxu0 0.0
        %5380 = vmatpush1.msra.mxu0 0.0
        %5381 = vmatprep.subr.mxu0 0.0
        %5382 = vmatpush1.msra.mxu0 0.0
        %5383 = vmatprep.subr.mxu0 0.0
        %5384 = vmatpush1.msra.mxu0 0.0
        %5385 = vmatprep.subr.mxu0 0.0
        %5386 = vmatpush1.msra.mxu0 0.0
        %5387 = vmatprep.subr.mxu0 0.0
        %5388 = vmatpush1.msra.mxu0 0.0
        %5389 = vmatprep.subr.mxu0 0.0
        %5390 = vmatpush1.msra.mxu0 0.0
        %5391 = vmatprep.subr.mxu0 0.0
        %5392 = vmatpush1.msra.mxu0 0.0
        %5393 = vmatprep.subr.mxu0 0.0
        %5394 = vmatpush1.msra.mxu0 0.0
        %5395 = vmatprep.subr.mxu0 0.0
        %5396 = vmatpush1.msra.mxu0 0.0
        %5397 = vmatprep.mubr.f32.mxu0 0.0
        %5398 = vmatmul.mubr.f32.gmra.mrb[0].mxu0 %v5331
        %v5399 = vpop.f32.mrb[0].mxu0
        %v5400 = vadd.f32 %v5328, %v5399
        %v5401 = vpop.f32.mrb[0].mxu0
        %5402 = vdwg.mxu0
        %v5403 = vadd.f32 %v5400, %v5239
        %v5404 = vsel %vm1232, %v5403, 0.0
        %5405 = vadd.xlane.f32.xlu0 %v5404
        %v5406 = vpop.xlane.xlu0 %5405
        %v5407 = vmul.f32 %v5406, %v3089
        %v5408 = vsub.f32 %v5403, %v5407
        %v5409 = vmul.f32 %v5408, %v5408
        %v5410 = vsel %vm1232, %v5409, 0.0
        %5411 = vadd.xlane.f32.xlu0 %v5410
        %v5412 = vpop.xlane.xlu0 %5411
        %v5413 = vmul.f32 %v5412, %v3089
        %v5414 = vadd.f32 %v5413, 1e-06
        %v5415 = vrsqrt.pop %v5414
        %v5416 = vmul.f32 %v5408, %v5415
        %v5418 = vlaneseq
        %v5419 = vshrl.u32 %v5418, 7
        %v5420 = vsub.s32 0, %v5419
        %v5421 = vrot.slane %v1142, %v5420
        %v5423 = vmul.f32 %v5416, %v5421
        %v5425 = vlaneseq
        %v5426 = vshrl.u32 %v5425, 7
        %v5427 = vsub.s32 0, %v5426
        %v5428 = vrot.slane %v1143, %v5427
        %v5430 = vadd.f32 %v5423, %v5428
        %5431 = vst.msk [vmem:[%s992] sm:$0xff] %vm1232, %v5430
        %s5432 = sand.u32 %s769, 1
        %s5433 = scalar_lea.sflag [#allocation3], %s5432
        %s5434 = sand.u32 %s769, 1
        %s5435 = smul.addr %s5434, 8
        %s5436 = scalar_lea.vmem [#allocation2], %s5435
        // Predicated region
        $region149: #{tpu_custom_call.1} parent=147 // pred_check
          %p5437 = pneg %p779
        $region150: #{tpu_custom_call.1} parent=147 // pred_check_branch
          %5439 = sbr.rel (%p5437) target = $region152
        $region151: #{tpu_custom_call.1} parent=147 // pred_region
          %s5441 = ssub.s32 128, 128
          %5442 = vsyncadd %s5433, %s5441
          %s5443 = smul.addr %s79, 128
          %s5444 = scalar_lea.hbm %s65, %s5443
          %s5446 = sshll.u32 %s5436, 4
          %s5447 = int_to_ptr.vmem [resolvable:$true] %s5446
          %5449 = dma.vmem_to_hbm [thread:$0]  %s5447, 128, %s5444, %s5433
        $region152: #{tpu_custom_call.1} parent=147 // pred_fallthru
          _
      $region148: #{tpu_custom_call.1} parent=5 // pred_fallthru
        _
      %p5450 = scmp.le.s32.totalorder 2, %s74
      // Predicated region
      $region153: #{tpu_custom_call.1} parent=5 // pred_check
        %p5451 = pneg %p5450
      $region154: #{tpu_custom_call.1} parent=5 // pred_check_branch
        %5453 = sbr.rel (%p5451) target = $region156
      $region155: #{tpu_custom_call.1} parent=5 // pred_region
        %s5454 = ssub.s32 %s74, 2
        // Predicated region
        $region157: #{tpu_custom_call.1} parent=155 // pred_check
          %p5455 = pneg %p785
        $region158: #{tpu_custom_call.1} parent=155 // pred_check_branch
          %5457 = sbr.rel (%p5455) target = $region160
        $region159: #{tpu_custom_call.1} parent=155 // pred_region
          %s5458 = sand.u32 %s770, 1
          %s5459 = scalar_lea.sflag [#allocation3], %s5458
          %s5460 = sand.u32 %s770, 1
          %s5461 = smul.addr %s5460, 8
          %s5462 = scalar_lea.vmem [#allocation2], %s5461
          %5463 = dma.done %s5459, 128
        $region160: #{tpu_custom_call.1} parent=155 // pred_fallthru
          _
      $region156: #{tpu_custom_call.1} parent=5 // pred_fallthru
        _
    $region6: #{tpu_custom_call.1} parent=1 // loop_footer
      %s78 = sadd.s32 1, %s74
    $region7: #{tpu_custom_call.1} parent=1 // loop_footer_branch
      %73 = sbr.rel target = $region3
    $region8: #{tpu_custom_call.1} parent=1 // loop_exit
      _
    %5464 = vsyncpa [#allocation3], 1
    %s5465 = scalar_lea.sflag [#allocation3], 1
    %5466 = vsyncpa %s5465, 1

</llo_original>
